<compile_context>
chip_gen: v5e
topology: v5e:2x2
jax: 0.10.0
libtpu: 0.0.40
codegen_flags: <defaults>
</compile_context>

<pallas_src>
import functools

import jax
import jax.numpy as jnp
from jax.experimental import pallas as pl
from jax.experimental.pallas import tpu as pltpu


def _attn_pool_kernel(x_ref, pos0_ref, poss_ref, seg_ref, segt_ref,
                      hind_ref, hexp_ref, wqkv_ref, bqkv_ref, wc_ref, bc_ref,
                      o_ref, *, num_heads, approx_recip):
    # x_ref:    (B, C, S)   raw activation block (NCHW with HW flattened)
    # pos0_ref: (1, C)      positional embedding of the mean token
    # poss_ref: (S, C)      positional embedding of the S spatial tokens
    # seg_ref:  (B, R)      0/1 row -> batch "segment sum" matrix, R = B*S + B
    # segt_ref: (R, B)      its transpose (batch -> row broadcast)
    # hind_ref: (C, H)      0/1 channel -> head indicator
    # hexp_ref: (H, C)      its transpose (head -> channel expand)
    # wqkv_ref: (C, 3C) bf16 fused, pre-transposed [Wq^T | Wk^T | Wv^T]
    # bqkv_ref: (1, 3C) f32  fused [bq | bk | bv]
    # wc_ref:   (C, D_out) bf16 pre-transposed output projection
    # bc_ref:   (1, D_out) f32
    # o_ref:    (B, D_out)
    f32 = jnp.float32
    bf16 = jnp.bfloat16

    B, C, S = x_ref.shape
    R = B * S + B
    H = num_heads
    head_dim = C // H
    scale = 1.0 / (head_dim ** 0.5)

    # --- NCHW -> (tokens, channels) relayout on VMEM-resident data (XLU) -----
    x = jnp.transpose(x_ref[...], (0, 2, 1)).astype(f32)          # (B, S, C)

    # mean token is computed on the raw activations (as in the PyTorch forward)
    mean_x = jnp.mean(x, axis=1)                                  # (B, C)

    # positional embeddings: spatial rows get pos[1:], mean rows get pos[0]
    x_wp = x + poss_ref[...][None, :, :]                          # (B, S, C)
    mean_wp = mean_x + pos0_ref[...]                              # (B, C)

    # stacked token slab: rows [0, B*S) spatial, rows [B*S, R) per-batch mean
    slab = jnp.concatenate(
        [x_wp.reshape(B * S, C).astype(bf16), mean_wp.astype(bf16)], axis=0)

    # --- fused q|k|v projection: one wide MXU matmul (M = R) -----------------
    qkv = (jnp.dot(slab, wqkv_ref[...], preferred_element_type=f32)
           + bqkv_ref[...])                                       # (R, 3C)
    q = qkv[B * S:, 0:C] * scale                                  # (B, C) mean-token query
    k = qkv[:, C:2 * C]                                           # (R, C)
    v = qkv[:, 2 * C:3 * C]                                       # (R, C)

    seg = seg_ref[...]                                            # (B, R)
    segt = segt_ref[...]                                          # (R, B)
    hind = hind_ref[...]                                          # (C, H)
    hexp = hexp_ref[...]                                          # (H, C)

    # per-head scores: s[r, h] = sum_{c in head h} q[batch(r), c] * k[r, c]
    q_rows = jnp.dot(segt, q, preferred_element_type=f32)         # (R, C)
    s = jnp.dot(q_rows * k, hind, preferred_element_type=f32)     # (R, H)

    # numerically stable softmax over L = S + 1 rows per (batch, head)
    m = jnp.maximum(s[:B * S].reshape(B, S, H).max(axis=1),       # (B, H)
                    s[B * S:])
    p = jnp.exp(s - jnp.dot(segt, m, preferred_element_type=f32)) # (R, H)
    denom = jnp.dot(seg, p, preferred_element_type=f32)           # (B, H)
    if approx_recip:
        inv = pl.reciprocal(denom, approx=True)                   # EUP, ~free
    else:
        inv = 1.0 / denom

    # weighted value sum, then per-(batch, head) normalization
    w = jnp.dot(p, hexp, preferred_element_type=f32) * v          # (R, C)
    acc = jnp.dot(seg, w, preferred_element_type=f32)             # (B, C)
    attn = acc * jnp.dot(inv, hexp, preferred_element_type=f32)   # (B, C)

    # output projection
    out = (jnp.dot(attn.astype(bf16), wc_ref[...],
                   preferred_element_type=f32) + bc_ref[...])     # (B, D_out)
    o_ref[...] = out.astype(o_ref.dtype)


def _physical_vmem_bytes():
    try:
        return int(pltpu.get_tpu_info().vmem_capacity_bytes)
    except Exception:
        return 64 << 20   # conservative: v7x per-TensorCore VMEM


def _pick_batch_block(n, requested):
    """Largest divisor of n that is <= requested and keeps BlockSpecs legal."""
    requested = max(1, min(int(requested), n))
    divisors = [d for d in range(1, n + 1) if n % d == 0]
    ok = [d for d in divisors if d <= requested and (d % 8 == 0 or d == n)]
    if ok:
        return max(ok)
    # Fall back to the full batch (block dims equal to the array dims are
    # always legal); only hit for small / odd N.
    return n


def attention_pool2d(x_nchw, params, num_heads, *, batch_block=None,
                     approx_recip=True):
    """AttentionPool2d forward.  x_nchw: (N, C, H, W) f32 -> (N, output_dim)."""
    N, C, H, W = x_nchw.shape
    S = H * W
    pos = params["pos"]                       # (S + 1, C)
    D_out = params["wc"].shape[0]
    head_dim = C // num_heads

    if batch_block is None:
        # Keep >= 2 "parallel" grid steps so 2-TC chips (v7x) use both cores;
        # the extra per-step overhead is negligible on 1-TC chips (v5e/v6e).
        batch_block = max(1, N // 2)
    B = _pick_batch_block(N, batch_block)
    grid = (N // B,)
    R = B * S + B

    # (N, C, H, W) -> (N, C, S) is a free reshape (no HBM relayout pass);
    # the token-major transpose happens in-kernel.
    x3 = x_nchw.reshape(N, C, S)

    # --- grid-invariant operands ---------------------------------------------
    pos0 = pos[0:1].astype(jnp.float32)                 # (1, C)
    pos_s = pos[1:].astype(jnp.float32)                 # (S, C), NOT tiled per batch

    rows = jnp.arange(B, dtype=jnp.int32)[:, None]
    cols = jnp.arange(R, dtype=jnp.int32)[None, :]
    col_batch = jnp.where(cols < B * S, cols // S, cols - B * S)
    seg = (col_batch == rows).astype(jnp.float32)       # (B, R)
    segT = jnp.transpose(seg)                           # (R, B)

    ch = jnp.arange(C, dtype=jnp.int32)[:, None]
    hh = jnp.arange(num_heads, dtype=jnp.int32)[None, :]
    hind = (ch // head_dim == hh).astype(jnp.float32)   # (C, H)
    hexp = jnp.transpose(hind)                          # (H, C)

    # fused, pre-transposed bf16 q|k|v projection weight + fused bias
    wqkv = jnp.concatenate(
        [jnp.transpose(params["wq"]), jnp.transpose(params["wk"]),
         jnp.transpose(params["wv"])], axis=1).astype(jnp.bfloat16)   # (C, 3C)
    bqkv = jnp.concatenate(
        [params["bq"], params["bk"], params["bv"]]
    ).reshape(1, 3 * C).astype(jnp.float32)                            # (1, 3C)
    wc_t = jnp.transpose(params["wc"]).astype(jnp.bfloat16)            # (C, D_out)
    bc2 = params["bc"].reshape(1, D_out).astype(jnp.float32)           # (1, D_out)

    invariants = (pos0, pos_s, seg, segT, hind, hexp, wqkv, bqkv, wc_t, bc2)

    # --- explicit VMEM budget, capped per chip --------------------------------
    phys = _physical_vmem_bytes()
    inv_bytes = sum(int(a.size) * a.dtype.itemsize for a in invariants)
    x_block_bytes = 2 * B * C * S * 4          # double-buffered input block
    out_block_bytes = 2 * B * D_out * 4        # double-buffered output block
    temp_bytes = R * (3 * C + 3 * C) * 4 + (4 << 20)   # qkv/k/v/q_rows/w temporaries
    want = 2 * inv_bytes + x_block_bytes + out_block_bytes + temp_bytes
    cap = (phys * 3) // 4                      # ~48 MiB on v7x, ~96 MiB on v5e/v6e
    vmem_limit = int(min(max(want, 16 << 20), max(cap, 16 << 20)))

    kernel = functools.partial(_attn_pool_kernel, num_heads=num_heads,
                               approx_recip=approx_recip)

    def _call(single_buffer_invariants):
        def inv_spec(arr):
            nd = arr.ndim
            kwargs = {}
            if single_buffer_invariants:
                # Invariant blocks are fetched once; one pipeline buffer suffices.
                kwargs["pipeline_mode"] = pl.Buffered(1)
            return pl.BlockSpec(arr.shape, lambda i, _nd=nd: (0,) * _nd, **kwargs)

        return pl.pallas_call(
            kernel,
            out_shape=jax.ShapeDtypeStruct((N, D_out), x_nchw.dtype),
            grid=grid,
            in_specs=[pl.BlockSpec((B, C, S), lambda i: (i, 0, 0))]
                     + [inv_spec(a) for a in invariants],
            out_specs=pl.BlockSpec((B, D_out), lambda i: (i, 0)),
            compiler_params=pltpu.CompilerParams(
                dimension_semantics=("parallel",),
                vmem_limit_bytes=vmem_limit),
        )(x3, *invariants)

    try:
        return _call(True)
    except Exception:
        # pipeline_mode=pl.Buffered(1) is not accepted by every jax/Mosaic
        # build for top-level pallas_call; fall back to default buffering.
        return _call(False)


def attention_pool2d_ref(x_nchw, params, num_heads):
    """Pure-JAX reference mirroring F.multi_head_attention_forward semantics."""
    N, C, H, W = x_nchw.shape
    S = H * W
    hp = jax.lax.Precision.HIGHEST
    x = jnp.transpose(x_nchw.reshape(N, C, S), (0, 2, 1))        # (N, S, C)
    mean_tok = jnp.mean(x, axis=1, keepdims=True)                # (N, 1, C)
    x = jnp.concatenate([mean_tok, x], axis=1)                   # (N, L, C)
    x = x + params["pos"][None, :, :]
    q = jnp.einsum("nlc,dc->nld", x[:, :1], params["wq"], precision=hp) + params["bq"]
    k = jnp.einsum("nlc,dc->nld", x, params["wk"], precision=hp) + params["bk"]
    v = jnp.einsum("nlc,dc->nld", x, params["wv"], precision=hp) + params["bv"]
    hd = C // num_heads
    q = q.reshape(N, 1, num_heads, hd) * (hd ** -0.5)
    k = k.reshape(N, -1, num_heads, hd)
    v = v.reshape(N, -1, num_heads, hd)
    scores = jnp.einsum("nqhd,nkhd->nhqk", q, k, precision=hp)
    p = jax.nn.softmax(scores, axis=-1)
    o = jnp.einsum("nhqk,nkhd->nqhd", p, v, precision=hp).reshape(N, 1, C)
    o = jnp.einsum("nlc,dc->nld", o, params["wc"], precision=hp) + params["bc"]
    return o[:, 0, :]


def make_params(key, spacial_dim, embed_dim, output_dim):
    L = spacial_dim * spacial_dim + 1
    ks = jax.random.split(key, 9)
    init_w = lambda k, shape: (jax.random.normal(k, shape, jnp.float32) * 0.05)
    return {
        "pos": jax.random.normal(ks[0], (L, embed_dim), jnp.float32)
               / (embed_dim ** 0.5),
        "wq": init_w(ks[1], (embed_dim, embed_dim)),
        "bq": init_w(ks[2], (embed_dim,)),
        "wk": init_w(ks[3], (embed_dim, embed_dim)),
        "bk": init_w(ks[4], (embed_dim,)),
        "wv": init_w(ks[5], (embed_dim, embed_dim)),
        "bv": init_w(ks[6], (embed_dim,)),
        "wc": init_w(ks[7], (output_dim, embed_dim)),
        "bc": init_w(ks[8], (output_dim,)),
    }


if __name__ == "__main__":
    # Small, module-consistent shapes (production tuning should use the real
    # ModifiedResNet dims, e.g. C=2048, S=49):
    #   batch N=16, embed_dim C=64, spacial_dim=4 (S=16 -> 17 tokens),
    #   num_heads=8 (head_dim=8), output_dim=128.
    #   Default batch_block keeps 2 parallel grid steps -> grid=(2,).
    N, embed_dim, spacial_dim, num_heads, output_dim = 16, 64, 4, 8, 128

    key = jax.random.PRNGKey(0)
    kx, kp = jax.random.split(key)
    x = jax.random.normal(kx, (N, embed_dim, spacial_dim, spacial_dim),
                          jnp.float32)
    params = make_params(kp, spacial_dim, embed_dim, output_dim)

    out = attention_pool2d(x, params, num_heads)
    out = jax.block_until_ready(out)

    ref = jax.block_until_ready(attention_pool2d_ref(x, params, num_heads))
    assert out.shape == (N, output_dim)
    max_err = float(jnp.max(jnp.abs(out - ref)))
    assert jnp.allclose(out, ref, rtol=5e-2, atol=2e-2), max_err

    print("KERNEL_OK")
</pallas_src>

<mosaic_0001>
module attributes {stable_mosaic.version = 11 : i64} {
  func.func @_attn_pool_kernel(%arg0: i32, %arg1: memref<8x64x16xf32, #tpu.memory_space<vmem>>, %arg2: memref<1x64xf32, #tpu.memory_space<vmem>>, %arg3: memref<16x64xf32, #tpu.memory_space<vmem>>, %arg4: memref<8x136xf32, #tpu.memory_space<vmem>>, %arg5: memref<136x8xf32, #tpu.memory_space<vmem>>, %arg6: memref<64x8xf32, #tpu.memory_space<vmem>>, %arg7: memref<8x64xf32, #tpu.memory_space<vmem>>, %arg8: memref<64x192xbf16, #tpu.memory_space<vmem>>, %arg9: memref<1x192xf32, #tpu.memory_space<vmem>>, %arg10: memref<64x128xbf16, #tpu.memory_space<vmem>>, %arg11: memref<1x128xf32, #tpu.memory_space<vmem>>, %arg12: memref<8x128xf32, #tpu.memory_space<vmem>>) attributes {dimension_semantics = [#tpu.dimension_semantics<parallel>], iteration_bounds = array<i64: 2>, scalar_prefetch = 0 : i64, scratch_operands = 0 : i64, tpu.core_type = #tpu.core_type<tc>, window_params = [{transform_indices = @transform_0, window_bounds = array<i64: 8, 64, 16>}, {pipeline_mode = #tpu.pipeline_mode<synchronous>, transform_indices = @transform_1, window_bounds = array<i64: 1, 64>}, {pipeline_mode = #tpu.pipeline_mode<synchronous>, transform_indices = @transform_2, window_bounds = array<i64: 16, 64>}, {pipeline_mode = #tpu.pipeline_mode<synchronous>, transform_indices = @transform_3, window_bounds = array<i64: 8, 136>}, {pipeline_mode = #tpu.pipeline_mode<synchronous>, transform_indices = @transform_4, window_bounds = array<i64: 136, 8>}, {pipeline_mode = #tpu.pipeline_mode<synchronous>, transform_indices = @transform_5, window_bounds = array<i64: 64, 8>}, {pipeline_mode = #tpu.pipeline_mode<synchronous>, transform_indices = @transform_6, window_bounds = array<i64: 8, 64>}, {pipeline_mode = #tpu.pipeline_mode<synchronous>, transform_indices = @transform_7, window_bounds = array<i64: 64, 192>}, {pipeline_mode = #tpu.pipeline_mode<synchronous>, transform_indices = @transform_8, window_bounds = array<i64: 1, 192>}, {pipeline_mode = #tpu.pipeline_mode<synchronous>, transform_indices = @transform_9, window_bounds = array<i64: 64, 128>}, {pipeline_mode = #tpu.pipeline_mode<synchronous>, transform_indices = @transform_10, window_bounds = array<i64: 1, 128>}, {transform_indices = @transform_11, window_bounds = array<i64: 8, 128>}]} {
    %c0 = arith.constant 0 : index
    %c0_0 = arith.constant 0 : index
    %c0_1 = arith.constant 0 : index
    %0 = vector.load %arg1[%c0, %c0_0, %c0_1] : memref<8x64x16xf32, #tpu.memory_space<vmem>>, vector<8x64x16xf32>
    %1 = tpu.transpose %0, [0, 2, 1] : vector<8x64x16xf32> -> vector<8x16x64xf32>
    %cst = arith.constant dense<0.000000e+00> : vector<8x64xf32>
    %2 = vector.multi_reduction <add>, %1, %cst [1] : vector<8x16x64xf32> to vector<8x64xf32>
    %cst_2 = arith.constant 1.600000e+01 : f32
    %3 = vector.broadcast %cst_2 : f32 to vector<8x64xf32>
    %4 = arith.divf %2, %3 : vector<8x64xf32>
    %c0_3 = arith.constant 0 : index
    %c0_4 = arith.constant 0 : index
    %5 = vector.load %arg3[%c0_3, %c0_4] : memref<16x64xf32, #tpu.memory_space<vmem>>, vector<16x64xf32>
    %6 = vector.shape_cast %5 : vector<16x64xf32> to vector<1x16x64xf32>
    %7 = vector.broadcast %6 : vector<1x16x64xf32> to vector<8x16x64xf32>
    %8 = arith.addf %1, %7 : vector<8x16x64xf32>
    %c0_5 = arith.constant 0 : index
    %c0_6 = arith.constant 0 : index
    %9 = vector.load %arg2[%c0_5, %c0_6] : memref<1x64xf32, #tpu.memory_space<vmem>>, vector<1x64xf32>
    %10 = vector.broadcast %9 : vector<1x64xf32> to vector<8x64xf32>
    %11 = arith.addf %4, %10 : vector<8x64xf32>
    %12 = vector.shape_cast %8 : vector<8x16x64xf32> to vector<128x64xf32>
    %13 = arith.truncf %12 : vector<128x64xf32> to vector<128x64xbf16>
    %14 = arith.truncf %11 : vector<8x64xf32> to vector<8x64xbf16>
    %15 = tpu.concatenate %13, %14 in 0 : vector<128x64xbf16>, vector<8x64xbf16> -> vector<136x64xbf16>
    %c0_7 = arith.constant 0 : index
    %c0_8 = arith.constant 0 : index
    %16 = vector.load %arg8[%c0_7, %c0_8] : memref<64x192xbf16, #tpu.memory_space<vmem>>, vector<64x192xbf16>
    %cst_9 = arith.constant dense<0.000000e+00> : vector<136x192xf32>
    %17 = tpu.matmul %15, %16, %cst_9 {dimension_numbers = #tpu.dot_dimension_numbers<[1], [0], [0], [1], [0, 0, 1, 1], [], []>} : vector<136x64xbf16>, vector<64x192xbf16>, vector<136x192xf32> -> vector<136x192xf32>
    %c0_10 = arith.constant 0 : index
    %c0_11 = arith.constant 0 : index
    %18 = vector.load %arg9[%c0_10, %c0_11] : memref<1x192xf32, #tpu.memory_space<vmem>>, vector<1x192xf32>
    %19 = vector.broadcast %18 : vector<1x192xf32> to vector<136x192xf32>
    %20 = arith.addf %17, %19 : vector<136x192xf32>
    %21 = vector.extract_strided_slice %20 {offsets = [128, 0], sizes = [8, 64], strides = [1, 1]} : vector<136x192xf32> to vector<8x64xf32>
    %cst_12 = arith.constant 0.353553385 : f32
    %22 = vector.broadcast %cst_12 : f32 to vector<8x64xf32>
    %23 = arith.mulf %21, %22 : vector<8x64xf32>
    %24 = vector.extract_strided_slice %20 {offsets = [0, 64], sizes = [136, 64], strides = [1, 1]} : vector<136x192xf32> to vector<136x64xf32>
    %25 = vector.extract_strided_slice %20 {offsets = [0, 128], sizes = [136, 64], strides = [1, 1]} : vector<136x192xf32> to vector<136x64xf32>
    %c0_13 = arith.constant 0 : index
    %c0_14 = arith.constant 0 : index
    %26 = vector.load %arg4[%c0_13, %c0_14] : memref<8x136xf32, #tpu.memory_space<vmem>>, vector<8x136xf32>
    %c0_15 = arith.constant 0 : index
    %c0_16 = arith.constant 0 : index
    %27 = vector.load %arg5[%c0_15, %c0_16] : memref<136x8xf32, #tpu.memory_space<vmem>>, vector<136x8xf32>
    %c0_17 = arith.constant 0 : index
    %c0_18 = arith.constant 0 : index
    %28 = vector.load %arg6[%c0_17, %c0_18] : memref<64x8xf32, #tpu.memory_space<vmem>>, vector<64x8xf32>
    %c0_19 = arith.constant 0 : index
    %c0_20 = arith.constant 0 : index
    %29 = vector.load %arg7[%c0_19, %c0_20] : memref<8x64xf32, #tpu.memory_space<vmem>>, vector<8x64xf32>
    %cst_21 = arith.constant dense<0.000000e+00> : vector<136x64xf32>
    %30 = tpu.matmul %27, %23, %cst_21 {dimension_numbers = #tpu.dot_dimension_numbers<[1], [0], [0], [1], [0, 0, 1, 1], [], []>} : vector<136x8xf32>, vector<8x64xf32>, vector<136x64xf32> -> vector<136x64xf32>
    %31 = arith.mulf %30, %24 : vector<136x64xf32>
    %cst_22 = arith.constant dense<0.000000e+00> : vector<136x8xf32>
    %32 = tpu.matmul %31, %28, %cst_22 {dimension_numbers = #tpu.dot_dimension_numbers<[1], [0], [0], [1], [0, 0, 1, 1], [], []>} : vector<136x64xf32>, vector<64x8xf32>, vector<136x8xf32> -> vector<136x8xf32>
    %33 = vector.extract_strided_slice %32 {offsets = [0, 0], sizes = [128, 8], strides = [1, 1]} : vector<136x8xf32> to vector<128x8xf32>
    %34 = vector.shape_cast %33 : vector<128x8xf32> to vector<8x16x8xf32>
    %cst_23 = arith.constant dense<0xFF800000> : vector<8x8xf32>
    %35 = vector.multi_reduction <maximumf>, %34, %cst_23 [1] : vector<8x16x8xf32> to vector<8x8xf32>
    %36 = vector.extract_strided_slice %32 {offsets = [128, 0], sizes = [8, 8], strides = [1, 1]} : vector<136x8xf32> to vector<8x8xf32>
    %37 = arith.maximumf %35, %36 : vector<8x8xf32>
    %cst_24 = arith.constant dense<0.000000e+00> : vector<136x8xf32>
    %38 = tpu.matmul %27, %37, %cst_24 {dimension_numbers = #tpu.dot_dimension_numbers<[1], [0], [0], [1], [0, 0, 1, 1], [], []>} : vector<136x8xf32>, vector<8x8xf32>, vector<136x8xf32> -> vector<136x8xf32>
    %39 = arith.subf %32, %38 : vector<136x8xf32>
    %40 = math.exp %39 : vector<136x8xf32>
    %cst_25 = arith.constant dense<0.000000e+00> : vector<8x8xf32>
    %41 = tpu.matmul %26, %40, %cst_25 {dimension_numbers = #tpu.dot_dimension_numbers<[1], [0], [0], [1], [0, 0, 1, 1], [], []>} : vector<8x136xf32>, vector<136x8xf32>, vector<8x8xf32> -> vector<8x8xf32>
    %42 = tpu.reciprocal %41 {approx = true} : vector<8x8xf32> -> vector<8x8xf32>
    %cst_26 = arith.constant dense<0.000000e+00> : vector<136x64xf32>
    %43 = tpu.matmul %40, %29, %cst_26 {dimension_numbers = #tpu.dot_dimension_numbers<[1], [0], [0], [1], [0, 0, 1, 1], [], []>} : vector<136x8xf32>, vector<8x64xf32>, vector<136x64xf32> -> vector<136x64xf32>
    %44 = arith.mulf %43, %25 : vector<136x64xf32>
    %cst_27 = arith.constant dense<0.000000e+00> : vector<8x64xf32>
    %45 = tpu.matmul %26, %44, %cst_27 {dimension_numbers = #tpu.dot_dimension_numbers<[1], [0], [0], [1], [0, 0, 1, 1], [], []>} : vector<8x136xf32>, vector<136x64xf32>, vector<8x64xf32> -> vector<8x64xf32>
    %cst_28 = arith.constant dense<0.000000e+00> : vector<8x64xf32>
    %46 = tpu.matmul %42, %29, %cst_28 {dimension_numbers = #tpu.dot_dimension_numbers<[1], [0], [0], [1], [0, 0, 1, 1], [], []>} : vector<8x8xf32>, vector<8x64xf32>, vector<8x64xf32> -> vector<8x64xf32>
    %47 = arith.mulf %45, %46 : vector<8x64xf32>
    %48 = arith.truncf %47 : vector<8x64xf32> to vector<8x64xbf16>
    %c0_29 = arith.constant 0 : index
    %c0_30 = arith.constant 0 : index
    %49 = vector.load %arg10[%c0_29, %c0_30] : memref<64x128xbf16, #tpu.memory_space<vmem>>, vector<64x128xbf16>
    %cst_31 = arith.constant dense<0.000000e+00> : vector<8x128xf32>
    %50 = tpu.matmul %48, %49, %cst_31 {dimension_numbers = #tpu.dot_dimension_numbers<[1], [0], [0], [1], [0, 0, 1, 1], [], []>} : vector<8x64xbf16>, vector<64x128xbf16>, vector<8x128xf32> -> vector<8x128xf32>
    %c0_32 = arith.constant 0 : index
    %c0_33 = arith.constant 0 : index
    %51 = vector.load %arg11[%c0_32, %c0_33] : memref<1x128xf32, #tpu.memory_space<vmem>>, vector<1x128xf32>
    %52 = vector.broadcast %51 : vector<1x128xf32> to vector<8x128xf32>
    %53 = arith.addf %50, %52 : vector<8x128xf32>
    %c0_34 = arith.constant 0 : index
    %c0_35 = arith.constant 0 : index
    %54 = vector.load %arg12[%c0_34, %c0_35] : memref<8x128xf32, #tpu.memory_space<vmem>>, vector<8x128xf32>
    tpu.vector_store %arg12[%c0_34, %c0_35], %53 {strides = array<i32>} : memref<8x128xf32, #tpu.memory_space<vmem>>, vector<8x128xf32>,
    return
  }
  func.func @transform_0(%arg0: i32) -> (i32, i32, i32) {
    %c0_i32 = arith.constant 0 : i32
    %c0_i32_0 = arith.constant 0 : i32
    %c0_i32_1 = arith.constant 0 : i32
    return %arg0, %c0_i32, %c0_i32_0 : i32, i32, i32
  }
  func.func @transform_1(%arg0: i32) -> (i32, i32) {
    %c0_i32 = arith.constant 0 : i32
    %c0_i32_0 = arith.constant 0 : i32
    %c0_i32_1 = arith.constant 0 : i32
    return %c0_i32, %c0_i32_0 : i32, i32
  }
  func.func @transform_2(%arg0: i32) -> (i32, i32) {
    %c0_i32 = arith.constant 0 : i32
    %c0_i32_0 = arith.constant 0 : i32
    %c0_i32_1 = arith.constant 0 : i32
    return %c0_i32, %c0_i32_0 : i32, i32
  }
  func.func @transform_3(%arg0: i32) -> (i32, i32) {
    %c0_i32 = arith.constant 0 : i32
    %c0_i32_0 = arith.constant 0 : i32
    %c0_i32_1 = arith.constant 0 : i32
    return %c0_i32, %c0_i32_0 : i32, i32
  }
  func.func @transform_4(%arg0: i32) -> (i32, i32) {
    %c0_i32 = arith.constant 0 : i32
    %c0_i32_0 = arith.constant 0 : i32
    %c0_i32_1 = arith.constant 0 : i32
    return %c0_i32, %c0_i32_0 : i32, i32
  }
  func.func @transform_5(%arg0: i32) -> (i32, i32) {
    %c0_i32 = arith.constant 0 : i32
    %c0_i32_0 = arith.constant 0 : i32
    %c0_i32_1 = arith.constant 0 : i32
    return %c0_i32, %c0_i32_0 : i32, i32
  }
  func.func @transform_6(%arg0: i32) -> (i32, i32) {
    %c0_i32 = arith.constant 0 : i32
    %c0_i32_0 = arith.constant 0 : i32
    %c0_i32_1 = arith.constant 0 : i32
    return %c0_i32, %c0_i32_0 : i32, i32
  }
  func.func @transform_7(%arg0: i32) -> (i32, i32) {
    %c0_i32 = arith.constant 0 : i32
    %c0_i32_0 = arith.constant 0 : i32
    %c0_i32_1 = arith.constant 0 : i32
    return %c0_i32, %c0_i32_0 : i32, i32
  }
  func.func @transform_8(%arg0: i32) -> (i32, i32) {
    %c0_i32 = arith.constant 0 : i32
    %c0_i32_0 = arith.constant 0 : i32
    %c0_i32_1 = arith.constant 0 : i32
    return %c0_i32, %c0_i32_0 : i32, i32
  }
  func.func @transform_9(%arg0: i32) -> (i32, i32) {
    %c0_i32 = arith.constant 0 : i32
    %c0_i32_0 = arith.constant 0 : i32
    %c0_i32_1 = arith.constant 0 : i32
    return %c0_i32, %c0_i32_0 : i32, i32
  }
  func.func @transform_10(%arg0: i32) -> (i32, i32) {
    %c0_i32 = arith.constant 0 : i32
    %c0_i32_0 = arith.constant 0 : i32
    %c0_i32_1 = arith.constant 0 : i32
    return %c0_i32, %c0_i32_0 : i32, i32
  }
  func.func @transform_11(%arg0: i32) -> (i32, i32) {
    %c0_i32 = arith.constant 0 : i32
    %c0_i32_0 = arith.constant 0 : i32
    return %arg0, %c0_i32 : i32, i32
  }
}

module attributes {stable_mosaic.version = 11 : i64} {
  func.func @_attn_pool_kernel(%arg0: i32, %arg1: memref<8x64x16xf32, #tpu.memory_space<vmem>>, %arg2: memref<1x64xf32, #tpu.memory_space<vmem>>, %arg3: memref<16x64xf32, #tpu.memory_space<vmem>>, %arg4: memref<8x136xf32, #tpu.memory_space<vmem>>, %arg5: memref<136x8xf32, #tpu.memory_space<vmem>>, %arg6: memref<64x8xf32, #tpu.memory_space<vmem>>, %arg7: memref<8x64xf32, #tpu.memory_space<vmem>>, %arg8: memref<64x192xbf16, #tpu.memory_space<vmem>>, %arg9: memref<1x192xf32, #tpu.memory_space<vmem>>, %arg10: memref<64x128xbf16, #tpu.memory_space<vmem>>, %arg11: memref<1x128xf32, #tpu.memory_space<vmem>>, %arg12: memref<8x128xf32, #tpu.memory_space<vmem>>) attributes {dimension_semantics = [#tpu.dimension_semantics<parallel>], iteration_bounds = array<i64: 2>, scalar_prefetch = 0 : i64, scratch_operands = 0 : i64, tpu.core_type = #tpu.core_type<tc>, window_params = [{transform_indices = @transform_0, window_bounds = array<i64: 8, 64, 16>}, {pipeline_mode = #tpu.pipeline_mode<synchronous>, transform_indices = @transform_1, window_bounds = array<i64: 1, 64>}, {pipeline_mode = #tpu.pipeline_mode<synchronous>, transform_indices = @transform_2, window_bounds = array<i64: 16, 64>}, {pipeline_mode = #tpu.pipeline_mode<synchronous>, transform_indices = @transform_3, window_bounds = array<i64: 8, 136>}, {pipeline_mode = #tpu.pipeline_mode<synchronous>, transform_indices = @transform_4, window_bounds = array<i64: 136, 8>}, {pipeline_mode = #tpu.pipeline_mode<synchronous>, transform_indices = @transform_5, window_bounds = array<i64: 64, 8>}, {pipeline_mode = #tpu.pipeline_mode<synchronous>, transform_indices = @transform_6, window_bounds = array<i64: 8, 64>}, {pipeline_mode = #tpu.pipeline_mode<synchronous>, transform_indices = @transform_7, window_bounds = array<i64: 64, 192>}, {pipeline_mode = #tpu.pipeline_mode<synchronous>, transform_indices = @transform_8, window_bounds = array<i64: 1, 192>}, {pipeline_mode = #tpu.pipeline_mode<synchronous>, transform_indices = @transform_9, window_bounds = array<i64: 64, 128>}, {pipeline_mode = #tpu.pipeline_mode<synchronous>, transform_indices = @transform_10, window_bounds = array<i64: 1, 128>}, {transform_indices = @transform_11, window_bounds = array<i64: 8, 128>}]} {
    %c0 = arith.constant 0 : index
    %c0_0 = arith.constant 0 : index
    %c0_1 = arith.constant 0 : index
    %0 = vector.load %arg1[%c0, %c0_0, %c0_1] : memref<8x64x16xf32, #tpu.memory_space<vmem>>, vector<8x64x16xf32>
    %1 = tpu.transpose %0, [0, 2, 1] : vector<8x64x16xf32> -> vector<8x16x64xf32>
    %cst = arith.constant dense<0.000000e+00> : vector<8x64xf32>
    %2 = vector.multi_reduction <add>, %1, %cst [1] : vector<8x16x64xf32> to vector<8x64xf32>
    %cst_2 = arith.constant 1.600000e+01 : f32
    %3 = vector.broadcast %cst_2 : f32 to vector<8x64xf32>
    %4 = arith.divf %2, %3 : vector<8x64xf32>
    %c0_3 = arith.constant 0 : index
    %c0_4 = arith.constant 0 : index
    %5 = vector.load %arg3[%c0_3, %c0_4] : memref<16x64xf32, #tpu.memory_space<vmem>>, vector<16x64xf32>
    %6 = vector.shape_cast %5 : vector<16x64xf32> to vector<1x16x64xf32>
    %7 = vector.broadcast %6 : vector<1x16x64xf32> to vector<8x16x64xf32>
    %8 = arith.addf %1, %7 : vector<8x16x64xf32>
    %c0_5 = arith.constant 0 : index
    %c0_6 = arith.constant 0 : index
    %9 = vector.load %arg2[%c0_5, %c0_6] : memref<1x64xf32, #tpu.memory_space<vmem>>, vector<1x64xf32>
    %10 = vector.broadcast %9 : vector<1x64xf32> to vector<8x64xf32>
    %11 = arith.addf %4, %10 : vector<8x64xf32>
    %12 = vector.shape_cast %8 : vector<8x16x64xf32> to vector<128x64xf32>
    %13 = arith.truncf %12 : vector<128x64xf32> to vector<128x64xbf16>
    %14 = arith.truncf %11 : vector<8x64xf32> to vector<8x64xbf16>
    %15 = tpu.concatenate %13, %14 in 0 : vector<128x64xbf16>, vector<8x64xbf16> -> vector<136x64xbf16>
    %c0_7 = arith.constant 0 : index
    %c0_8 = arith.constant 0 : index
    %16 = vector.load %arg8[%c0_7, %c0_8] : memref<64x192xbf16, #tpu.memory_space<vmem>>, vector<64x192xbf16>
    %cst_9 = arith.constant dense<0.000000e+00> : vector<136x192xf32>
    %17 = tpu.matmul %15, %16, %cst_9 {dimension_numbers = #tpu.dot_dimension_numbers<[1], [0], [0], [1], [0, 0, 1, 1], [], []>} : vector<136x64xbf16>, vector<64x192xbf16>, vector<136x192xf32> -> vector<136x192xf32>
    %c0_10 = arith.constant 0 : index
    %c0_11 = arith.constant 0 : index
    %18 = vector.load %arg9[%c0_10, %c0_11] : memref<1x192xf32, #tpu.memory_space<vmem>>, vector<1x192xf32>
    %19 = vector.broadcast %18 : vector<1x192xf32> to vector<136x192xf32>
    %20 = arith.addf %17, %19 : vector<136x192xf32>
    %21 = vector.extract_strided_slice %20 {offsets = [128, 0], sizes = [8, 64], strides = [1, 1]} : vector<136x192xf32> to vector<8x64xf32>
    %cst_12 = arith.constant 0.353553385 : f32
    %22 = vector.broadcast %cst_12 : f32 to vector<8x64xf32>
    %23 = arith.mulf %21, %22 : vector<8x64xf32>
    %24 = vector.extract_strided_slice %20 {offsets = [0, 64], sizes = [136, 64], strides = [1, 1]} : vector<136x192xf32> to vector<136x64xf32>
    %25 = vector.extract_strided_slice %20 {offsets = [0, 128], sizes = [136, 64], strides = [1, 1]} : vector<136x192xf32> to vector<136x64xf32>
    %c0_13 = arith.constant 0 : index
    %c0_14 = arith.constant 0 : index
    %26 = vector.load %arg4[%c0_13, %c0_14] : memref<8x136xf32, #tpu.memory_space<vmem>>, vector<8x136xf32>
    %c0_15 = arith.constant 0 : index
    %c0_16 = arith.constant 0 : index
    %27 = vector.load %arg5[%c0_15, %c0_16] : memref<136x8xf32, #tpu.memory_space<vmem>>, vector<136x8xf32>
    %c0_17 = arith.constant 0 : index
    %c0_18 = arith.constant 0 : index
    %28 = vector.load %arg6[%c0_17, %c0_18] : memref<64x8xf32, #tpu.memory_space<vmem>>, vector<64x8xf32>
    %c0_19 = arith.constant 0 : index
    %c0_20 = arith.constant 0 : index
    %29 = vector.load %arg7[%c0_19, %c0_20] : memref<8x64xf32, #tpu.memory_space<vmem>>, vector<8x64xf32>
    %cst_21 = arith.constant dense<0.000000e+00> : vector<136x64xf32>
    %30 = tpu.matmul %27, %23, %cst_21 {dimension_numbers = #tpu.dot_dimension_numbers<[1], [0], [0], [1], [0, 0, 1, 1], [], []>} : vector<136x8xf32>, vector<8x64xf32>, vector<136x64xf32> -> vector<136x64xf32>
    %31 = arith.mulf %30, %24 : vector<136x64xf32>
    %cst_22 = arith.constant dense<0.000000e+00> : vector<136x8xf32>
    %32 = tpu.matmul %31, %28, %cst_22 {dimension_numbers = #tpu.dot_dimension_numbers<[1], [0], [0], [1], [0, 0, 1, 1], [], []>} : vector<136x64xf32>, vector<64x8xf32>, vector<136x8xf32> -> vector<136x8xf32>
    %33 = vector.extract_strided_slice %32 {offsets = [0, 0], sizes = [128, 8], strides = [1, 1]} : vector<136x8xf32> to vector<128x8xf32>
    %34 = vector.shape_cast %33 : vector<128x8xf32> to vector<8x16x8xf32>
    %cst_23 = arith.constant dense<0xFF800000> : vector<8x8xf32>
    %35 = vector.multi_reduction <maximumf>, %34, %cst_23 [1] : vector<8x16x8xf32> to vector<8x8xf32>
    %36 = vector.extract_strided_slice %32 {offsets = [128, 0], sizes = [8, 8], strides = [1, 1]} : vector<136x8xf32> to vector<8x8xf32>
    %37 = arith.maximumf %35, %36 : vector<8x8xf32>
    %cst_24 = arith.constant dense<0.000000e+00> : vector<136x8xf32>
    %38 = tpu.matmul %27, %37, %cst_24 {dimension_numbers = #tpu.dot_dimension_numbers<[1], [0], [0], [1], [0, 0, 1, 1], [], []>} : vector<136x8xf32>, vector<8x8xf32>, vector<136x8xf32> -> vector<136x8xf32>
    %39 = arith.subf %32, %38 : vector<136x8xf32>
    %40 = math.exp %39 : vector<136x8xf32>
    %cst_25 = arith.constant dense<0.000000e+00> : vector<8x8xf32>
    %41 = tpu.matmul %26, %40, %cst_25 {dimension_numbers = #tpu.dot_dimension_numbers<[1], [0], [0], [1], [0, 0, 1, 1], [], []>} : vector<8x136xf32>, vector<136x8xf32>, vector<8x8xf32> -> vector<8x8xf32>
    %42 = tpu.reciprocal %41 {approx = true} : vector<8x8xf32> -> vector<8x8xf32>
    %cst_26 = arith.constant dense<0.000000e+00> : vector<136x64xf32>
    %43 = tpu.matmul %40, %29, %cst_26 {dimension_numbers = #tpu.dot_dimension_numbers<[1], [0], [0], [1], [0, 0, 1, 1], [], []>} : vector<136x8xf32>, vector<8x64xf32>, vector<136x64xf32> -> vector<136x64xf32>
    %44 = arith.mulf %43, %25 : vector<136x64xf32>
    %cst_27 = arith.constant dense<0.000000e+00> : vector<8x64xf32>
    %45 = tpu.matmul %26, %44, %cst_27 {dimension_numbers = #tpu.dot_dimension_numbers<[1], [0], [0], [1], [0, 0, 1, 1], [], []>} : vector<8x136xf32>, vector<136x64xf32>, vector<8x64xf32> -> vector<8x64xf32>
    %cst_28 = arith.constant dense<0.000000e+00> : vector<8x64xf32>
    %46 = tpu.matmul %42, %29, %cst_28 {dimension_numbers = #tpu.dot_dimension_numbers<[1], [0], [0], [1], [0, 0, 1, 1], [], []>} : vector<8x8xf32>, vector<8x64xf32>, vector<8x64xf32> -> vector<8x64xf32>
    %47 = arith.mulf %45, %46 : vector<8x64xf32>
    %48 = arith.truncf %47 : vector<8x64xf32> to vector<8x64xbf16>
    %c0_29 = arith.constant 0 : index
    %c0_30 = arith.constant 0 : index
    %49 = vector.load %arg10[%c0_29, %c0_30] : memref<64x128xbf16, #tpu.memory_space<vmem>>, vector<64x128xbf16>
    %cst_31 = arith.constant dense<0.000000e+00> : vector<8x128xf32>
    %50 = tpu.matmul %48, %49, %cst_31 {dimension_numbers = #tpu.dot_dimension_numbers<[1], [0], [0], [1], [0, 0, 1, 1], [], []>} : vector<8x64xbf16>, vector<64x128xbf16>, vector<8x128xf32> -> vector<8x128xf32>
    %c0_32 = arith.constant 0 : index
    %c0_33 = arith.constant 0 : index
    %51 = vector.load %arg11[%c0_32, %c0_33] : memref<1x128xf32, #tpu.memory_space<vmem>>, vector<1x128xf32>
    %52 = vector.broadcast %51 : vector<1x128xf32> to vector<8x128xf32>
    %53 = arith.addf %50, %52 : vector<8x128xf32>
    %c0_34 = arith.constant 0 : index
    %c0_35 = arith.constant 0 : index
    %54 = vector.load %arg12[%c0_34, %c0_35] : memref<8x128xf32, #tpu.memory_space<vmem>>, vector<8x128xf32>
    tpu.vector_store %arg12[%c0_34, %c0_35], %53 {strides = array<i32>} : memref<8x128xf32, #tpu.memory_space<vmem>>, vector<8x128xf32>,
    return
  }
  func.func @transform_0(%arg0: i32) -> (i32, i32, i32) {
    %c0_i32 = arith.constant 0 : i32
    %c0_i32_0 = arith.constant 0 : i32
    %c0_i32_1 = arith.constant 0 : i32
    return %arg0, %c0_i32, %c0_i32_0 : i32, i32, i32
  }
  func.func @transform_1(%arg0: i32) -> (i32, i32) {
    %c0_i32 = arith.constant 0 : i32
    %c0_i32_0 = arith.constant 0 : i32
    %c0_i32_1 = arith.constant 0 : i32
    return %c0_i32, %c0_i32_0 : i32, i32
  }
  func.func @transform_2(%arg0: i32) -> (i32, i32) {
    %c0_i32 = arith.constant 0 : i32
    %c0_i32_0 = arith.constant 0 : i32
    %c0_i32_1 = arith.constant 0 : i32
    return %c0_i32, %c0_i32_0 : i32, i32
  }
  func.func @transform_3(%arg0: i32) -> (i32, i32) {
    %c0_i32 = arith.constant 0 : i32
    %c0_i32_0 = arith.constant 0 : i32
    %c0_i32_1 = arith.constant 0 : i32
    return %c0_i32, %c0_i32_0 : i32, i32
  }
  func.func @transform_4(%arg0: i32) -> (i32, i32) {
    %c0_i32 = arith.constant 0 : i32
    %c0_i32_0 = arith.constant 0 : i32
    %c0_i32_1 = arith.constant 0 : i32
    return %c0_i32, %c0_i32_0 : i32, i32
  }
  func.func @transform_5(%arg0: i32) -> (i32, i32) {
    %c0_i32 = arith.constant 0 : i32
    %c0_i32_0 = arith.constant 0 : i32
    %c0_i32_1 = arith.constant 0 : i32
    return %c0_i32, %c0_i32_0 : i32, i32
  }
  func.func @transform_6(%arg0: i32) -> (i32, i32) {
    %c0_i32 = arith.constant 0 : i32
    %c0_i32_0 = arith.constant 0 : i32
    %c0_i32_1 = arith.constant 0 : i32
    return %c0_i32, %c0_i32_0 : i32, i32
  }
  func.func @transform_7(%arg0: i32) -> (i32, i32) {
    %c0_i32 = arith.constant 0 : i32
    %c0_i32_0 = arith.constant 0 : i32
    %c0_i32_1 = arith.constant 0 : i32
    return %c0_i32, %c0_i32_0 : i32, i32
  }
  func.func @transform_8(%arg0: i32) -> (i32, i32) {
    %c0_i32 = arith.constant 0 : i32
    %c0_i32_0 = arith.constant 0 : i32
    %c0_i32_1 = arith.constant 0 : i32
    return %c0_i32, %c0_i32_0 : i32, i32
  }
  func.func @transform_9(%arg0: i32) -> (i32, i32) {
    %c0_i32 = arith.constant 0 : i32
    %c0_i32_0 = arith.constant 0 : i32
    %c0_i32_1 = arith.constant 0 : i32
    return %c0_i32, %c0_i32_0 : i32, i32
  }
  func.func @transform_10(%arg0: i32) -> (i32, i32) {
    %c0_i32 = arith.constant 0 : i32
    %c0_i32_0 = arith.constant 0 : i32
    %c0_i32_1 = arith.constant 0 : i32
    return %c0_i32, %c0_i32_0 : i32, i32
  }
  func.func @transform_11(%arg0: i32) -> (i32, i32) {
    %c0_i32 = arith.constant 0 : i32
    %c0_i32_0 = arith.constant 0 : i32
    return %arg0, %c0_i32 : i32, i32
  }
}

</mosaic_0001>

<llo_original>
// kernel: tpu_custom_call.1
$region0: #{tpu_custom_call.1}
  #allocation0 [shape = 'u32[]', space=smem, size = 0x4, offset = 0x4, fixed_abs, tag = 'smem constant byte address 0x4 - core index']
  #allocation1 [shape = 'u32[72,128]{1,0:T(1,128)}', space=vmem, size = 0x9000, scoped, tag = 'internal scratch']
  %s0 = inlined_call_operand.vmem [shape: f32[16,64,16], index: 0, kind: input, shape index: {}]
  %s1 = inlined_call_operand.vmem [shape: f32[1,64], index: 1, kind: input, shape index: {}]
  %s2 = inlined_call_operand.vmem [shape: f32[16,64], index: 2, kind: input, shape index: {}]
  %s3 = inlined_call_operand.vmem [shape: f32[8,136], index: 3, kind: input, shape index: {}]
  %s4 = inlined_call_operand.vmem [shape: f32[136,8], index: 4, kind: input, shape index: {}]
  %s5 = inlined_call_operand.vmem [shape: f32[64,8], index: 5, kind: input, shape index: {}]
  %s6 = inlined_call_operand.vmem [shape: f32[8,64], index: 6, kind: input, shape index: {}]
  %s7 = inlined_call_operand.vmem [shape: bf16[64,192], index: 7, kind: input, shape index: {}]
  %s8 = inlined_call_operand.vmem [shape: f32[1,192], index: 8, kind: input, shape index: {}]
  %s9 = inlined_call_operand.vmem [shape: bf16[64,128], index: 9, kind: input, shape index: {}]
  %s10 = inlined_call_operand.vmem [shape: f32[1,128], index: 10, kind: input, shape index: {}]
  %s11 = inlined_call_operand.hbm [shape: f32[16,128], index: 11, kind: output, shape index: {}]
  %s12 = sld [smem:[#allocation0]]
  $region77: #{tpu_custom_call.1} parent=0
    _
  %s14 = ssub.s32 1, %s12
  %s15 = scalar_select 0, %s14, %s12
  $region1: #{tpu_custom_call.1} parent=0
    #allocation2 [shape = 'u8[8192]{0}', space=vmem, size = 0x2000, scoped, tag = 'output window, operand 0']
    #allocation3 [shape = 's32[2]{0}', space=sflag, size = 0x8, scoped, tag = 'scoped memory for tpu_custom_call.1']
    %16 = vsyncpa [#allocation3], 0
    %s17 = scalar_lea.sflag [#allocation3], 1
    %18 = vsyncpa %s17, 0
    loop: start=0, step=1, limit=4
    $region2: #{tpu_custom_call.1} parent=1 // loop_pre_header
      _
    $region3: #{tpu_custom_call.1} parent=1 // loop_header
      %s20 = sphi 0, %s24
      %p21 = scmp.ge.s32.totalorder %s20, 4
      %s30 = sphi 0, %s32
      %s33 = sphi 0, %s30
      %s34 = sphi 0, %s33
      %s50 = sphi 0, %s34
      %s54 = sphi 0, %s54
      %s56 = sphi 0, %s54
      %s57 = sphi 0, %s56
      %s71 = sphi 0, %s57
      %s75 = sphi 0, %s75
      %s77 = sphi 0, %s75
      %s78 = sphi 0, %s77
      %s92 = sphi 0, %s78
      %s96 = sphi 0, %s96
      %s98 = sphi 0, %s96
      %s99 = sphi 0, %s98
      %s113 = sphi 0, %s99
      %s117 = sphi 0, %s117
      %s119 = sphi 0, %s117
      %s120 = sphi 0, %s119
      %s134 = sphi 0, %s120
      %s138 = sphi 0, %s138
      %s140 = sphi 0, %s138
      %s141 = sphi 0, %s140
      %s155 = sphi 0, %s141
      %s159 = sphi 0, %s159
      %s161 = sphi 0, %s159
      %s162 = sphi 0, %s161
      %s176 = sphi 0, %s162
      %s180 = sphi 0, %s180
      %s182 = sphi 0, %s180
      %s183 = sphi 0, %s182
      %s197 = sphi 0, %s183
      %s201 = sphi 0, %s201
      %s203 = sphi 0, %s201
      %s204 = sphi 0, %s203
      %s218 = sphi 0, %s204
      %s222 = sphi 0, %s222
      %s224 = sphi 0, %s222
      %s225 = sphi 0, %s224
      %s239 = sphi 0, %s225
      %s243 = sphi 0, %s243
      %s245 = sphi 0, %s243
      %s246 = sphi 0, %s245
      %s260 = sphi 0, %s246
      %s266 = sphi 0, %s268
      %s269 = sphi 0, %s266
      %s270 = sphi 0, %s269
      %s286 = sphi 0, %s270
    $region4: #{tpu_custom_call.1} parent=1 // loop_header_branch
      %23 = sbr.rel (%p21) target = $region8
    $region5: #{tpu_custom_call.1} parent=1 // loop_body
      %s25 = ssub.s32 %s20, 1
      %s26 = ssub.s32 %s20, 2
      %s27 = sadd.s32 %s20, 1
      %s28 = ssub.s32 %s20, %s27
      %p29 = scmp.eq.s32.totalorder %s28, 0
      %s31 = sadd.s32 %s30, 1
      %s32 = scalar_select %p29, %s30, %s31
      %p35 = pneg %p29
      %p36 = scmp.eq.s32.totalorder %s20, 1
      %p37 = por %p35, %p36
      %p38 = scmp.ne.s32.totalorder %s30, %s33
      %p39 = scmp.eq.s32.totalorder %s20, 0
      %p40 = por %p38, %p39
      %p41 = scmp.ne.s32.totalorder %s30, %s33
      %p42 = scmp.eq.s32.totalorder %s25, 1
      %p43 = por %p41, %p42
      %p44 = scmp.ne.s32.totalorder %s33, %s34
      %p45 = scmp.eq.s32.totalorder %s25, 0
      %p46 = por %p44, %p45
      %p47 = scmp.ne.s32.totalorder %s33, %s34
      %p48 = scmp.eq.s32.totalorder %s26, 1
      %p49 = por %p47, %p48
      %p51 = scmp.ne.s32.totalorder %s34, %s50
      %p52 = scmp.eq.s32.totalorder %s26, 0
      %p53 = por %p51, %p52
      %s55 = sadd.s32 %s54, 1
      %p58 = scmp.eq.s32.totalorder %s20, 1
      %p59 = scmp.ne.s32.totalorder %s54, %s56
      %p60 = scmp.eq.s32.totalorder %s20, 0
      %p61 = por %p59, %p60
      %p62 = scmp.ne.s32.totalorder %s54, %s56
      %p63 = scmp.eq.s32.totalorder %s25, 1
      %p64 = por %p62, %p63
      %p65 = scmp.ne.s32.totalorder %s56, %s57
      %p66 = scmp.eq.s32.totalorder %s25, 0
      %p67 = por %p65, %p66
      %p68 = scmp.ne.s32.totalorder %s56, %s57
      %p69 = scmp.eq.s32.totalorder %s26, 1
      %p70 = por %p68, %p69
      %p72 = scmp.ne.s32.totalorder %s57, %s71
      %p73 = scmp.eq.s32.totalorder %s26, 0
      %p74 = por %p72, %p73
      %s76 = sadd.s32 %s75, 1
      %p79 = scmp.eq.s32.totalorder %s20, 1
      %p80 = scmp.ne.s32.totalorder %s75, %s77
      %p81 = scmp.eq.s32.totalorder %s20, 0
      %p82 = por %p80, %p81
      %p83 = scmp.ne.s32.totalorder %s75, %s77
      %p84 = scmp.eq.s32.totalorder %s25, 1
      %p85 = por %p83, %p84
      %p86 = scmp.ne.s32.totalorder %s77, %s78
      %p87 = scmp.eq.s32.totalorder %s25, 0
      %p88 = por %p86, %p87
      %p89 = scmp.ne.s32.totalorder %s77, %s78
      %p90 = scmp.eq.s32.totalorder %s26, 1
      %p91 = por %p89, %p90
      %p93 = scmp.ne.s32.totalorder %s78, %s92
      %p94 = scmp.eq.s32.totalorder %s26, 0
      %p95 = por %p93, %p94
      %s97 = sadd.s32 %s96, 1
      %p100 = scmp.eq.s32.totalorder %s20, 1
      %p101 = scmp.ne.s32.totalorder %s96, %s98
      %p102 = scmp.eq.s32.totalorder %s20, 0
      %p103 = por %p101, %p102
      %p104 = scmp.ne.s32.totalorder %s96, %s98
      %p105 = scmp.eq.s32.totalorder %s25, 1
      %p106 = por %p104, %p105
      %p107 = scmp.ne.s32.totalorder %s98, %s99
      %p108 = scmp.eq.s32.totalorder %s25, 0
      %p109 = por %p107, %p108
      %p110 = scmp.ne.s32.totalorder %s98, %s99
      %p111 = scmp.eq.s32.totalorder %s26, 1
      %p112 = por %p110, %p111
      %p114 = scmp.ne.s32.totalorder %s99, %s113
      %p115 = scmp.eq.s32.totalorder %s26, 0
      %p116 = por %p114, %p115
      %s118 = sadd.s32 %s117, 1
      %p121 = scmp.eq.s32.totalorder %s20, 1
      %p122 = scmp.ne.s32.totalorder %s117, %s119
      %p123 = scmp.eq.s32.totalorder %s20, 0
      %p124 = por %p122, %p123
      %p125 = scmp.ne.s32.totalorder %s117, %s119
      %p126 = scmp.eq.s32.totalorder %s25, 1
      %p127 = por %p125, %p126
      %p128 = scmp.ne.s32.totalorder %s119, %s120
      %p129 = scmp.eq.s32.totalorder %s25, 0
      %p130 = por %p128, %p129
      %p131 = scmp.ne.s32.totalorder %s119, %s120
      %p132 = scmp.eq.s32.totalorder %s26, 1
      %p133 = por %p131, %p132
      %p135 = scmp.ne.s32.totalorder %s120, %s134
      %p136 = scmp.eq.s32.totalorder %s26, 0
      %p137 = por %p135, %p136
      %s139 = sadd.s32 %s138, 1
      %p142 = scmp.eq.s32.totalorder %s20, 1
      %p143 = scmp.ne.s32.totalorder %s138, %s140
      %p144 = scmp.eq.s32.totalorder %s20, 0
      %p145 = por %p143, %p144
      %p146 = scmp.ne.s32.totalorder %s138, %s140
      %p147 = scmp.eq.s32.totalorder %s25, 1
      %p148 = por %p146, %p147
      %p149 = scmp.ne.s32.totalorder %s140, %s141
      %p150 = scmp.eq.s32.totalorder %s25, 0
      %p151 = por %p149, %p150
      %p152 = scmp.ne.s32.totalorder %s140, %s141
      %p153 = scmp.eq.s32.totalorder %s26, 1
      %p154 = por %p152, %p153
      %p156 = scmp.ne.s32.totalorder %s141, %s155
      %p157 = scmp.eq.s32.totalorder %s26, 0
      %p158 = por %p156, %p157
      %s160 = sadd.s32 %s159, 1
      %p163 = scmp.eq.s32.totalorder %s20, 1
      %p164 = scmp.ne.s32.totalorder %s159, %s161
      %p165 = scmp.eq.s32.totalorder %s20, 0
      %p166 = por %p164, %p165
      %p167 = scmp.ne.s32.totalorder %s159, %s161
      %p168 = scmp.eq.s32.totalorder %s25, 1
      %p169 = por %p167, %p168
      %p170 = scmp.ne.s32.totalorder %s161, %s162
      %p171 = scmp.eq.s32.totalorder %s25, 0
      %p172 = por %p170, %p171
      %p173 = scmp.ne.s32.totalorder %s161, %s162
      %p174 = scmp.eq.s32.totalorder %s26, 1
      %p175 = por %p173, %p174
      %p177 = scmp.ne.s32.totalorder %s162, %s176
      %p178 = scmp.eq.s32.totalorder %s26, 0
      %p179 = por %p177, %p178
      %s181 = sadd.s32 %s180, 1
      %p184 = scmp.eq.s32.totalorder %s20, 1
      %p185 = scmp.ne.s32.totalorder %s180, %s182
      %p186 = scmp.eq.s32.totalorder %s20, 0
      %p187 = por %p185, %p186
      %p188 = scmp.ne.s32.totalorder %s180, %s182
      %p189 = scmp.eq.s32.totalorder %s25, 1
      %p190 = por %p188, %p189
      %p191 = scmp.ne.s32.totalorder %s182, %s183
      %p192 = scmp.eq.s32.totalorder %s25, 0
      %p193 = por %p191, %p192
      %p194 = scmp.ne.s32.totalorder %s182, %s183
      %p195 = scmp.eq.s32.totalorder %s26, 1
      %p196 = por %p194, %p195
      %p198 = scmp.ne.s32.totalorder %s183, %s197
      %p199 = scmp.eq.s32.totalorder %s26, 0
      %p200 = por %p198, %p199
      %s202 = sadd.s32 %s201, 1
      %p205 = scmp.eq.s32.totalorder %s20, 1
      %p206 = scmp.ne.s32.totalorder %s201, %s203
      %p207 = scmp.eq.s32.totalorder %s20, 0
      %p208 = por %p206, %p207
      %p209 = scmp.ne.s32.totalorder %s201, %s203
      %p210 = scmp.eq.s32.totalorder %s25, 1
      %p211 = por %p209, %p210
      %p212 = scmp.ne.s32.totalorder %s203, %s204
      %p213 = scmp.eq.s32.totalorder %s25, 0
      %p214 = por %p212, %p213
      %p215 = scmp.ne.s32.totalorder %s203, %s204
      %p216 = scmp.eq.s32.totalorder %s26, 1
      %p217 = por %p215, %p216
      %p219 = scmp.ne.s32.totalorder %s204, %s218
      %p220 = scmp.eq.s32.totalorder %s26, 0
      %p221 = por %p219, %p220
      %s223 = sadd.s32 %s222, 1
      %p226 = scmp.eq.s32.totalorder %s20, 1
      %p227 = scmp.ne.s32.totalorder %s222, %s224
      %p228 = scmp.eq.s32.totalorder %s20, 0
      %p229 = por %p227, %p228
      %p230 = scmp.ne.s32.totalorder %s222, %s224
      %p231 = scmp.eq.s32.totalorder %s25, 1
      %p232 = por %p230, %p231
      %p233 = scmp.ne.s32.totalorder %s224, %s225
      %p234 = scmp.eq.s32.totalorder %s25, 0
      %p235 = por %p233, %p234
      %p236 = scmp.ne.s32.totalorder %s224, %s225
      %p237 = scmp.eq.s32.totalorder %s26, 1
      %p238 = por %p236, %p237
      %p240 = scmp.ne.s32.totalorder %s225, %s239
      %p241 = scmp.eq.s32.totalorder %s26, 0
      %p242 = por %p240, %p241
      %s244 = sadd.s32 %s243, 1
      %p247 = scmp.eq.s32.totalorder %s20, 1
      %p248 = scmp.ne.s32.totalorder %s243, %s245
      %p249 = scmp.eq.s32.totalorder %s20, 0
      %p250 = por %p248, %p249
      %p251 = scmp.ne.s32.totalorder %s243, %s245
      %p252 = scmp.eq.s32.totalorder %s25, 1
      %p253 = por %p251, %p252
      %p254 = scmp.ne.s32.totalorder %s245, %s246
      %p255 = scmp.eq.s32.totalorder %s25, 0
      %p256 = por %p254, %p255
      %p257 = scmp.ne.s32.totalorder %s245, %s246
      %p258 = scmp.eq.s32.totalorder %s26, 1
      %p259 = por %p257, %p258
      %p261 = scmp.ne.s32.totalorder %s246, %s260
      %p262 = scmp.eq.s32.totalorder %s26, 0
      %p263 = por %p261, %p262
      %s264 = ssub.s32 %s20, %s27
      %p265 = scmp.eq.s32.totalorder %s264, 0
      %s267 = sadd.s32 %s266, 1
      %s268 = scalar_select %p265, %s266, %s267
      %p271 = pneg %p265
      %p272 = scmp.eq.s32.totalorder %s20, 1
      %p273 = por %p271, %p272
      %p274 = scmp.ne.s32.totalorder %s266, %s269
      %p275 = scmp.eq.s32.totalorder %s20, 0
      %p276 = por %p274, %p275
      %p277 = scmp.ne.s32.totalorder %s266, %s269
      %p278 = scmp.eq.s32.totalorder %s25, 1
      %p279 = por %p277, %p278
      %p280 = scmp.ne.s32.totalorder %s269, %s270
      %p281 = scmp.eq.s32.totalorder %s25, 0
      %p282 = por %p280, %p281
      %p283 = scmp.ne.s32.totalorder %s269, %s270
      %p284 = scmp.eq.s32.totalorder %s26, 1
      %p285 = por %p283, %p284
      %p287 = scmp.ne.s32.totalorder %s270, %s286
      %p288 = scmp.eq.s32.totalorder %s26, 0
      %p289 = por %p287, %p288
      %p290 = scmp.le.s32.totalorder 1, %s20
      %p291 = scmp.lt.s32.totalorder %s20, 3
      %p292 = pnand %p290, %p291
      %p293 = pneg %p292
      // Predicated region
      $region9: #{tpu_custom_call.1} parent=5 // pred_check
        _
      $region10: #{tpu_custom_call.1} parent=5 // pred_check_branch
        %295 = sbr.rel (%p292) target = $region12
      $region11: #{tpu_custom_call.1} parent=5 // pred_region
        %s296 = ssub.s32 %s20, 1
        // Predicated region
        $region13: #{tpu_custom_call.1} parent=11 // pred_check
          %p297 = pneg %p67
        $region14: #{tpu_custom_call.1} parent=11 // pred_check_branch
          %299 = sbr.rel (%p297) target = $region16
        $region15: #{tpu_custom_call.1} parent=11 // pred_region
          _
        $region16: #{tpu_custom_call.1} parent=11 // pred_fallthru
          _
        // Predicated region
        $region17: #{tpu_custom_call.1} parent=11 // pred_check
          %p300 = pneg %p88
        $region18: #{tpu_custom_call.1} parent=11 // pred_check_branch
          %302 = sbr.rel (%p300) target = $region20
        $region19: #{tpu_custom_call.1} parent=11 // pred_region
          _
        $region20: #{tpu_custom_call.1} parent=11 // pred_fallthru
          _
        // Predicated region
        $region21: #{tpu_custom_call.1} parent=11 // pred_check
          %p303 = pneg %p109
        $region22: #{tpu_custom_call.1} parent=11 // pred_check_branch
          %305 = sbr.rel (%p303) target = $region24
        $region23: #{tpu_custom_call.1} parent=11 // pred_region
          _
        $region24: #{tpu_custom_call.1} parent=11 // pred_fallthru
          _
        // Predicated region
        $region25: #{tpu_custom_call.1} parent=11 // pred_check
          %p306 = pneg %p130
        $region26: #{tpu_custom_call.1} parent=11 // pred_check_branch
          %308 = sbr.rel (%p306) target = $region28
        $region27: #{tpu_custom_call.1} parent=11 // pred_region
          _
        $region28: #{tpu_custom_call.1} parent=11 // pred_fallthru
          _
        // Predicated region
        $region29: #{tpu_custom_call.1} parent=11 // pred_check
          %p309 = pneg %p151
        $region30: #{tpu_custom_call.1} parent=11 // pred_check_branch
          %311 = sbr.rel (%p309) target = $region32
        $region31: #{tpu_custom_call.1} parent=11 // pred_region
          _
        $region32: #{tpu_custom_call.1} parent=11 // pred_fallthru
          _
        // Predicated region
        $region33: #{tpu_custom_call.1} parent=11 // pred_check
          %p312 = pneg %p172
        $region34: #{tpu_custom_call.1} parent=11 // pred_check_branch
          %314 = sbr.rel (%p312) target = $region36
        $region35: #{tpu_custom_call.1} parent=11 // pred_region
          _
        $region36: #{tpu_custom_call.1} parent=11 // pred_fallthru
          _
        // Predicated region
        $region37: #{tpu_custom_call.1} parent=11 // pred_check
          %p315 = pneg %p193
        $region38: #{tpu_custom_call.1} parent=11 // pred_check_branch
          %317 = sbr.rel (%p315) target = $region40
        $region39: #{tpu_custom_call.1} parent=11 // pred_region
          _
        $region40: #{tpu_custom_call.1} parent=11 // pred_fallthru
          _
        // Predicated region
        $region41: #{tpu_custom_call.1} parent=11 // pred_check
          %p318 = pneg %p214
        $region42: #{tpu_custom_call.1} parent=11 // pred_check_branch
          %320 = sbr.rel (%p318) target = $region44
        $region43: #{tpu_custom_call.1} parent=11 // pred_region
          _
        $region44: #{tpu_custom_call.1} parent=11 // pred_fallthru
          _
        // Predicated region
        $region45: #{tpu_custom_call.1} parent=11 // pred_check
          %p321 = pneg %p235
        $region46: #{tpu_custom_call.1} parent=11 // pred_check_branch
          %323 = sbr.rel (%p321) target = $region48
        $region47: #{tpu_custom_call.1} parent=11 // pred_region
          _
        $region48: #{tpu_custom_call.1} parent=11 // pred_fallthru
          _
        // Predicated region
        $region49: #{tpu_custom_call.1} parent=11 // pred_check
          %p324 = pneg %p256
        $region50: #{tpu_custom_call.1} parent=11 // pred_check_branch
          %326 = sbr.rel (%p324) target = $region52
        $region51: #{tpu_custom_call.1} parent=11 // pred_region
          _
        $region52: #{tpu_custom_call.1} parent=11 // pred_fallthru
          _
      $region12: #{tpu_custom_call.1} parent=5 // pred_fallthru
        _
      %p327 = scmp.lt.s32.totalorder %s20, 2
      // Predicated region
      $region53: #{tpu_custom_call.1} parent=5 // pred_check
        %p328 = pneg %p327
      $region54: #{tpu_custom_call.1} parent=5 // pred_check_branch
        %330 = sbr.rel (%p328) target = $region56
      $region55: #{tpu_custom_call.1} parent=5 // pred_region
        // Predicated region
        $region57: #{tpu_custom_call.1} parent=55 // pred_check
          %p331 = pneg %p40
        $region58: #{tpu_custom_call.1} parent=55 // pred_check_branch
          %333 = sbr.rel (%p331) target = $region60
        $region59: #{tpu_custom_call.1} parent=55 // pred_region
          %s334 = smul.u32 8, %s20
          %p335 = scmp.lt.s32.totalorder %s334, 15
          %s336 = scalar_select %p335, %s334, 15
          %s337 = smul.addr %s336, 8
          %s338 = smul.addr %s337, 8
          %s339 = scalar_lea.vmem %s0, %s338
          %s340 = smul.u32 8, %s20
        $region60: #{tpu_custom_call.1} parent=55 // pred_fallthru
          _
      $region56: #{tpu_custom_call.1} parent=5 // pred_fallthru
        _
      %p341 = scmp.le.s32.totalorder 1, %s20
      %p342 = scmp.lt.s32.totalorder %s20, 3
      %p343 = pnand %p341, %p342
      %p344 = pneg %p343
      // Predicated region
      $region61: #{tpu_custom_call.1} parent=5 // pred_check
        _
      $region62: #{tpu_custom_call.1} parent=5 // pred_check_branch
        %346 = sbr.rel (%p343) target = $region64
      $region63: #{tpu_custom_call.1} parent=5 // pred_region
        %s347 = ssub.s32 %s20, 1
        %s348 = smul.u32 8, %s25
        %p349 = scmp.lt.s32.totalorder %s348, 15
        %s350 = scalar_select %p349, %s348, 15
        %s351 = smul.addr %s350, 8
        %s352 = smul.addr %s351, 8
        %s353 = scalar_lea.vmem %s0, %s352
        %p354 = pneg %p46
        %p355 = pneg %p43
        %p356 = pneg %p67
        %p357 = pneg %p64
        %p358 = pneg %p88
        %p359 = pneg %p85
        %p360 = pneg %p109
        %p361 = pneg %p106
        %p362 = pneg %p130
        %p363 = pneg %p127
        %p364 = pneg %p151
        %p365 = pneg %p148
        %p366 = pneg %p172
        %p367 = pneg %p169
        %p368 = pneg %p193
        %p369 = pneg %p190
        %p370 = pneg %p214
        %p371 = pneg %p211
        %p372 = pneg %p235
        %p373 = pneg %p232
        %p374 = pneg %p256
        %p375 = pneg %p253
        %p376 = pneg %p282
        %p377 = pneg %p279
        %s378 = sand.u32 %s269, 1
        %s379 = scalar_lea.sflag [#allocation3], %s378
        %s380 = sand.u32 %s269, 1
        %s381 = smul.addr %s380, 8
        %s382 = scalar_lea.vmem [#allocation2], %s381
        %s383 = smul.u32 8, %s25
        %p384 = scmp.lt.s32.totalorder %s383, 15
        %s385 = scalar_select %p384, %s383, 15
        %s386 = smul.addr %s385, 8
        %s387 = smul.addr %s386, 8
        %s388 = scalar_lea.vmem %s0, %s387
        %s389 = smul.u32 8, %s25
        %v391 = vld [vmem:[%s388] sm:$0xff]
        %v392 = vld [vmem:[%s388 + $0x8] sm:$0xff]
        %v393 = vld [vmem:[%s388 + $0x10] sm:$0xff]
        %v394 = vld [vmem:[%s388 + $0x18] sm:$0xff]
        %v395 = vld [vmem:[%s388 + $0x20] sm:$0xff]
        %v396 = vld [vmem:[%s388 + $0x28] sm:$0xff]
        %v397 = vld [vmem:[%s388 + $0x30] sm:$0xff]
        %v398 = vld [vmem:[%s388 + $0x38] sm:$0xff]
        %v399 = vld [vmem:[%s388 + $0x40] sm:$0xff]
        %v400 = vld [vmem:[%s388 + $0x48] sm:$0xff]
        %v401 = vld [vmem:[%s388 + $0x50] sm:$0xff]
        %v402 = vld [vmem:[%s388 + $0x58] sm:$0xff]
        %v403 = vld [vmem:[%s388 + $0x60] sm:$0xff]
        %v404 = vld [vmem:[%s388 + $0x68] sm:$0xff]
        %v405 = vld [vmem:[%s388 + $0x70] sm:$0xff]
        %v406 = vld [vmem:[%s388 + $0x78] sm:$0xff]
        %v407 = vld [vmem:[%s388 + $0x80] sm:$0xff]
        %v408 = vld [vmem:[%s388 + $0x88] sm:$0xff]
        %v409 = vld [vmem:[%s388 + $0x90] sm:$0xff]
        %v410 = vld [vmem:[%s388 + $0x98] sm:$0xff]
        %v411 = vld [vmem:[%s388 + $0xa0] sm:$0xff]
        %v412 = vld [vmem:[%s388 + $0xa8] sm:$0xff]
        %v413 = vld [vmem:[%s388 + $0xb0] sm:$0xff]
        %v414 = vld [vmem:[%s388 + $0xb8] sm:$0xff]
        %v415 = vld [vmem:[%s388 + $0xc0] sm:$0xff]
        %v416 = vld [vmem:[%s388 + $0xc8] sm:$0xff]
        %v417 = vld [vmem:[%s388 + $0xd0] sm:$0xff]
        %v418 = vld [vmem:[%s388 + $0xd8] sm:$0xff]
        %v419 = vld [vmem:[%s388 + $0xe0] sm:$0xff]
        %v420 = vld [vmem:[%s388 + $0xe8] sm:$0xff]
        %v421 = vld [vmem:[%s388 + $0xf0] sm:$0xff]
        %v422 = vld [vmem:[%s388 + $0xf8] sm:$0xff]
        %v423 = vld [vmem:[%s388 + $0x100] sm:$0xff]
        %v424 = vld [vmem:[%s388 + $0x108] sm:$0xff]
        %v425 = vld [vmem:[%s388 + $0x110] sm:$0xff]
        %v426 = vld [vmem:[%s388 + $0x118] sm:$0xff]
        %v427 = vld [vmem:[%s388 + $0x120] sm:$0xff]
        %v428 = vld [vmem:[%s388 + $0x128] sm:$0xff]
        %v429 = vld [vmem:[%s388 + $0x130] sm:$0xff]
        %v430 = vld [vmem:[%s388 + $0x138] sm:$0xff]
        %v431 = vld [vmem:[%s388 + $0x140] sm:$0xff]
        %v432 = vld [vmem:[%s388 + $0x148] sm:$0xff]
        %v433 = vld [vmem:[%s388 + $0x150] sm:$0xff]
        %v434 = vld [vmem:[%s388 + $0x158] sm:$0xff]
        %v435 = vld [vmem:[%s388 + $0x160] sm:$0xff]
        %v436 = vld [vmem:[%s388 + $0x168] sm:$0xff]
        %v437 = vld [vmem:[%s388 + $0x170] sm:$0xff]
        %v438 = vld [vmem:[%s388 + $0x178] sm:$0xff]
        %v439 = vld [vmem:[%s388 + $0x180] sm:$0xff]
        %v440 = vld [vmem:[%s388 + $0x188] sm:$0xff]
        %v441 = vld [vmem:[%s388 + $0x190] sm:$0xff]
        %v442 = vld [vmem:[%s388 + $0x198] sm:$0xff]
        %v443 = vld [vmem:[%s388 + $0x1a0] sm:$0xff]
        %v444 = vld [vmem:[%s388 + $0x1a8] sm:$0xff]
        %v445 = vld [vmem:[%s388 + $0x1b0] sm:$0xff]
        %v446 = vld [vmem:[%s388 + $0x1b8] sm:$0xff]
        %v447 = vld [vmem:[%s388 + $0x1c0] sm:$0xff]
        %v448 = vld [vmem:[%s388 + $0x1c8] sm:$0xff]
        %v449 = vld [vmem:[%s388 + $0x1d0] sm:$0xff]
        %v450 = vld [vmem:[%s388 + $0x1d8] sm:$0xff]
        %v451 = vld [vmem:[%s388 + $0x1e0] sm:$0xff]
        %v452 = vld [vmem:[%s388 + $0x1e8] sm:$0xff]
        %v453 = vld [vmem:[%s388 + $0x1f0] sm:$0xff]
        %v454 = vld [vmem:[%s388 + $0x1f8] sm:$0xff]
        %455 = vxpose.xlu0.b32.start [1/16] %v391, 128
        %456 = vxpose.xlu0.b32.cont [2/16] %v392, 128
        %457 = vxpose.xlu0.b32.cont [3/16] %v393, 128
        %458 = vxpose.xlu0.b32.cont [4/16] %v394, 128
        %459 = vxpose.xlu0.b32.cont [5/16] %v395, 128
        %460 = vxpose.xlu0.b32.cont [6/16] %v396, 128
        %461 = vxpose.xlu0.b32.cont [7/16] %v397, 128
        %462 = vxpose.xlu0.b32.cont [8/16] %v398, 128
        %463 = vxpose.xlu0.b32.cont [9/16] 0.0, 128
        %464 = vxpose.xlu0.b32.cont [10/16] 0.0, 128
        %465 = vxpose.xlu0.b32.cont [11/16] 0.0, 128
        %466 = vxpose.xlu0.b32.cont [12/16] 0.0, 128
        %467 = vxpose.xlu0.b32.cont [13/16] 0.0, 128
        %468 = vxpose.xlu0.b32.cont [14/16] 0.0, 128
        %469 = vxpose.xlu0.b32.cont [15/16] 0.0, 128
        %470 = vxpose.xlu0.b32.end [16/16] 0.0, 128
        %v471 = vpop.trf.xlu0
        %v472 = vpop.trf.xlu0
        %v473 = vpop.trf.xlu0
        %v474 = vpop.trf.xlu0
        %v475 = vpop.trf.xlu0
        %v476 = vpop.trf.xlu0
        %v477 = vpop.trf.xlu0
        %v478 = vpop.trf.xlu0
        %v479 = vpop.trf.xlu0
        %v480 = vpop.trf.xlu0
        %v481 = vpop.trf.xlu0
        %v482 = vpop.trf.xlu0
        %v483 = vpop.trf.xlu0
        %v484 = vpop.trf.xlu0
        %v485 = vpop.trf.xlu0
        %v486 = vpop.trf.xlu0
        %487 = vxpose.xlu0.b32.start [1/16] %v399, 128
        %488 = vxpose.xlu0.b32.cont [2/16] %v400, 128
        %489 = vxpose.xlu0.b32.cont [3/16] %v401, 128
        %490 = vxpose.xlu0.b32.cont [4/16] %v402, 128
        %491 = vxpose.xlu0.b32.cont [5/16] %v403, 128
        %492 = vxpose.xlu0.b32.cont [6/16] %v404, 128
        %493 = vxpose.xlu0.b32.cont [7/16] %v405, 128
        %494 = vxpose.xlu0.b32.cont [8/16] %v406, 128
        %495 = vxpose.xlu0.b32.cont [9/16] 0.0, 128
        %496 = vxpose.xlu0.b32.cont [10/16] 0.0, 128
        %497 = vxpose.xlu0.b32.cont [11/16] 0.0, 128
        %498 = vxpose.xlu0.b32.cont [12/16] 0.0, 128
        %499 = vxpose.xlu0.b32.cont [13/16] 0.0, 128
        %500 = vxpose.xlu0.b32.cont [14/16] 0.0, 128
        %501 = vxpose.xlu0.b32.cont [15/16] 0.0, 128
        %502 = vxpose.xlu0.b32.end [16/16] 0.0, 128
        %v503 = vpop.trf.xlu0
        %v504 = vpop.trf.xlu0
        %v505 = vpop.trf.xlu0
        %v506 = vpop.trf.xlu0
        %v507 = vpop.trf.xlu0
        %v508 = vpop.trf.xlu0
        %v509 = vpop.trf.xlu0
        %v510 = vpop.trf.xlu0
        %v511 = vpop.trf.xlu0
        %v512 = vpop.trf.xlu0
        %v513 = vpop.trf.xlu0
        %v514 = vpop.trf.xlu0
        %v515 = vpop.trf.xlu0
        %v516 = vpop.trf.xlu0
        %v517 = vpop.trf.xlu0
        %v518 = vpop.trf.xlu0
        %519 = vxpose.xlu0.b32.start [1/16] %v407, 128
        %520 = vxpose.xlu0.b32.cont [2/16] %v408, 128
        %521 = vxpose.xlu0.b32.cont [3/16] %v409, 128
        %522 = vxpose.xlu0.b32.cont [4/16] %v410, 128
        %523 = vxpose.xlu0.b32.cont [5/16] %v411, 128
        %524 = vxpose.xlu0.b32.cont [6/16] %v412, 128
        %525 = vxpose.xlu0.b32.cont [7/16] %v413, 128
        %526 = vxpose.xlu0.b32.cont [8/16] %v414, 128
        %527 = vxpose.xlu0.b32.cont [9/16] 0.0, 128
        %528 = vxpose.xlu0.b32.cont [10/16] 0.0, 128
        %529 = vxpose.xlu0.b32.cont [11/16] 0.0, 128
        %530 = vxpose.xlu0.b32.cont [12/16] 0.0, 128
        %531 = vxpose.xlu0.b32.cont [13/16] 0.0, 128
        %532 = vxpose.xlu0.b32.cont [14/16] 0.0, 128
        %533 = vxpose.xlu0.b32.cont [15/16] 0.0, 128
        %534 = vxpose.xlu0.b32.end [16/16] 0.0, 128
        %v535 = vpop.trf.xlu0
        %v536 = vpop.trf.xlu0
        %v537 = vpop.trf.xlu0
        %v538 = vpop.trf.xlu0
        %v539 = vpop.trf.xlu0
        %v540 = vpop.trf.xlu0
        %v541 = vpop.trf.xlu0
        %v542 = vpop.trf.xlu0
        %v543 = vpop.trf.xlu0
        %v544 = vpop.trf.xlu0
        %v545 = vpop.trf.xlu0
        %v546 = vpop.trf.xlu0
        %v547 = vpop.trf.xlu0
        %v548 = vpop.trf.xlu0
        %v549 = vpop.trf.xlu0
        %v550 = vpop.trf.xlu0
        %551 = vxpose.xlu0.b32.start [1/16] %v415, 128
        %552 = vxpose.xlu0.b32.cont [2/16] %v416, 128
        %553 = vxpose.xlu0.b32.cont [3/16] %v417, 128
        %554 = vxpose.xlu0.b32.cont [4/16] %v418, 128
        %555 = vxpose.xlu0.b32.cont [5/16] %v419, 128
        %556 = vxpose.xlu0.b32.cont [6/16] %v420, 128
        %557 = vxpose.xlu0.b32.cont [7/16] %v421, 128
        %558 = vxpose.xlu0.b32.cont [8/16] %v422, 128
        %559 = vxpose.xlu0.b32.cont [9/16] 0.0, 128
        %560 = vxpose.xlu0.b32.cont [10/16] 0.0, 128
        %561 = vxpose.xlu0.b32.cont [11/16] 0.0, 128
        %562 = vxpose.xlu0.b32.cont [12/16] 0.0, 128
        %563 = vxpose.xlu0.b32.cont [13/16] 0.0, 128
        %564 = vxpose.xlu0.b32.cont [14/16] 0.0, 128
        %565 = vxpose.xlu0.b32.cont [15/16] 0.0, 128
        %566 = vxpose.xlu0.b32.end [16/16] 0.0, 128
        %v567 = vpop.trf.xlu0
        %v568 = vpop.trf.xlu0
        %v569 = vpop.trf.xlu0
        %v570 = vpop.trf.xlu0
        %v571 = vpop.trf.xlu0
        %v572 = vpop.trf.xlu0
        %v573 = vpop.trf.xlu0
        %v574 = vpop.trf.xlu0
        %v575 = vpop.trf.xlu0
        %v576 = vpop.trf.xlu0
        %v577 = vpop.trf.xlu0
        %v578 = vpop.trf.xlu0
        %v579 = vpop.trf.xlu0
        %v580 = vpop.trf.xlu0
        %v581 = vpop.trf.xlu0
        %v582 = vpop.trf.xlu0
        %583 = vxpose.xlu0.b32.start [1/16] %v423, 128
        %584 = vxpose.xlu0.b32.cont [2/16] %v424, 128
        %585 = vxpose.xlu0.b32.cont [3/16] %v425, 128
        %586 = vxpose.xlu0.b32.cont [4/16] %v426, 128
        %587 = vxpose.xlu0.b32.cont [5/16] %v427, 128
        %588 = vxpose.xlu0.b32.cont [6/16] %v428, 128
        %589 = vxpose.xlu0.b32.cont [7/16] %v429, 128
        %590 = vxpose.xlu0.b32.cont [8/16] %v430, 128
        %591 = vxpose.xlu0.b32.cont [9/16] 0.0, 128
        %592 = vxpose.xlu0.b32.cont [10/16] 0.0, 128
        %593 = vxpose.xlu0.b32.cont [11/16] 0.0, 128
        %594 = vxpose.xlu0.b32.cont [12/16] 0.0, 128
        %595 = vxpose.xlu0.b32.cont [13/16] 0.0, 128
        %596 = vxpose.xlu0.b32.cont [14/16] 0.0, 128
        %597 = vxpose.xlu0.b32.cont [15/16] 0.0, 128
        %598 = vxpose.xlu0.b32.end [16/16] 0.0, 128
        %v599 = vpop.trf.xlu0
        %v600 = vpop.trf.xlu0
        %v601 = vpop.trf.xlu0
        %v602 = vpop.trf.xlu0
        %v603 = vpop.trf.xlu0
        %v604 = vpop.trf.xlu0
        %v605 = vpop.trf.xlu0
        %v606 = vpop.trf.xlu0
        %v607 = vpop.trf.xlu0
        %v608 = vpop.trf.xlu0
        %v609 = vpop.trf.xlu0
        %v610 = vpop.trf.xlu0
        %v611 = vpop.trf.xlu0
        %v612 = vpop.trf.xlu0
        %v613 = vpop.trf.xlu0
        %v614 = vpop.trf.xlu0
        %615 = vxpose.xlu0.b32.start [1/16] %v431, 128
        %616 = vxpose.xlu0.b32.cont [2/16] %v432, 128
        %617 = vxpose.xlu0.b32.cont [3/16] %v433, 128
        %618 = vxpose.xlu0.b32.cont [4/16] %v434, 128
        %619 = vxpose.xlu0.b32.cont [5/16] %v435, 128
        %620 = vxpose.xlu0.b32.cont [6/16] %v436, 128
        %621 = vxpose.xlu0.b32.cont [7/16] %v437, 128
        %622 = vxpose.xlu0.b32.cont [8/16] %v438, 128
        %623 = vxpose.xlu0.b32.cont [9/16] 0.0, 128
        %624 = vxpose.xlu0.b32.cont [10/16] 0.0, 128
        %625 = vxpose.xlu0.b32.cont [11/16] 0.0, 128
        %626 = vxpose.xlu0.b32.cont [12/16] 0.0, 128
        %627 = vxpose.xlu0.b32.cont [13/16] 0.0, 128
        %628 = vxpose.xlu0.b32.cont [14/16] 0.0, 128
        %629 = vxpose.xlu0.b32.cont [15/16] 0.0, 128
        %630 = vxpose.xlu0.b32.end [16/16] 0.0, 128
        %v631 = vpop.trf.xlu0
        %v632 = vpop.trf.xlu0
        %v633 = vpop.trf.xlu0
        %v634 = vpop.trf.xlu0
        %v635 = vpop.trf.xlu0
        %v636 = vpop.trf.xlu0
        %v637 = vpop.trf.xlu0
        %v638 = vpop.trf.xlu0
        %v639 = vpop.trf.xlu0
        %v640 = vpop.trf.xlu0
        %v641 = vpop.trf.xlu0
        %v642 = vpop.trf.xlu0
        %v643 = vpop.trf.xlu0
        %v644 = vpop.trf.xlu0
        %v645 = vpop.trf.xlu0
        %v646 = vpop.trf.xlu0
        %647 = vxpose.xlu0.b32.start [1/16] %v439, 128
        %648 = vxpose.xlu0.b32.cont [2/16] %v440, 128
        %649 = vxpose.xlu0.b32.cont [3/16] %v441, 128
        %650 = vxpose.xlu0.b32.cont [4/16] %v442, 128
        %651 = vxpose.xlu0.b32.cont [5/16] %v443, 128
        %652 = vxpose.xlu0.b32.cont [6/16] %v444, 128
        %653 = vxpose.xlu0.b32.cont [7/16] %v445, 128
        %654 = vxpose.xlu0.b32.cont [8/16] %v446, 128
        %655 = vxpose.xlu0.b32.cont [9/16] 0.0, 128
        %656 = vxpose.xlu0.b32.cont [10/16] 0.0, 128
        %657 = vxpose.xlu0.b32.cont [11/16] 0.0, 128
        %658 = vxpose.xlu0.b32.cont [12/16] 0.0, 128
        %659 = vxpose.xlu0.b32.cont [13/16] 0.0, 128
        %660 = vxpose.xlu0.b32.cont [14/16] 0.0, 128
        %661 = vxpose.xlu0.b32.cont [15/16] 0.0, 128
        %662 = vxpose.xlu0.b32.end [16/16] 0.0, 128
        %v663 = vpop.trf.xlu0
        %v664 = vpop.trf.xlu0
        %v665 = vpop.trf.xlu0
        %v666 = vpop.trf.xlu0
        %v667 = vpop.trf.xlu0
        %v668 = vpop.trf.xlu0
        %v669 = vpop.trf.xlu0
        %v670 = vpop.trf.xlu0
        %v671 = vpop.trf.xlu0
        %v672 = vpop.trf.xlu0
        %v673 = vpop.trf.xlu0
        %v674 = vpop.trf.xlu0
        %v675 = vpop.trf.xlu0
        %v676 = vpop.trf.xlu0
        %v677 = vpop.trf.xlu0
        %v678 = vpop.trf.xlu0
        %679 = vxpose.xlu0.b32.start [1/16] %v447, 128
        %680 = vxpose.xlu0.b32.cont [2/16] %v448, 128
        %681 = vxpose.xlu0.b32.cont [3/16] %v449, 128
        %682 = vxpose.xlu0.b32.cont [4/16] %v450, 128
        %683 = vxpose.xlu0.b32.cont [5/16] %v451, 128
        %684 = vxpose.xlu0.b32.cont [6/16] %v452, 128
        %685 = vxpose.xlu0.b32.cont [7/16] %v453, 128
        %686 = vxpose.xlu0.b32.cont [8/16] %v454, 128
        %687 = vxpose.xlu0.b32.cont [9/16] 0.0, 128
        %688 = vxpose.xlu0.b32.cont [10/16] 0.0, 128
        %689 = vxpose.xlu0.b32.cont [11/16] 0.0, 128
        %690 = vxpose.xlu0.b32.cont [12/16] 0.0, 128
        %691 = vxpose.xlu0.b32.cont [13/16] 0.0, 128
        %692 = vxpose.xlu0.b32.cont [14/16] 0.0, 128
        %693 = vxpose.xlu0.b32.cont [15/16] 0.0, 128
        %694 = vxpose.xlu0.b32.end [16/16] 0.0, 128
        %v695 = vpop.trf.xlu0
        %v696 = vpop.trf.xlu0
        %v697 = vpop.trf.xlu0
        %v698 = vpop.trf.xlu0
        %v699 = vpop.trf.xlu0
        %v700 = vpop.trf.xlu0
        %v701 = vpop.trf.xlu0
        %v702 = vpop.trf.xlu0
        %v703 = vpop.trf.xlu0
        %v704 = vpop.trf.xlu0
        %v705 = vpop.trf.xlu0
        %v706 = vpop.trf.xlu0
        %v707 = vpop.trf.xlu0
        %v708 = vpop.trf.xlu0
        %v709 = vpop.trf.xlu0
        %v710 = vpop.trf.xlu0
        %vm711 = vcmask 523264
        %v712 = vsel %vm711, %v471, 0.0
        %v713 = vsel %vm711, %v472, 0.0
        %v714 = vadd.f32 %v712, %v713
        %v715 = vrot.slane %v714, 4
        %v716 = vadd.f32 %v714, %v715
        %v717 = vrot.slane %v716, 2
        %v718 = vadd.f32 %v716, %v717
        %v719 = vrot.slane %v718, 1
        %v720 = vadd.f32 %v718, %v719
        %v721 = vsel %vm711, %v503, 0.0
        %v722 = vsel %vm711, %v504, 0.0
        %v723 = vadd.f32 %v721, %v722
        %v724 = vrot.slane %v723, 4
        %v725 = vadd.f32 %v723, %v724
        %v726 = vrot.slane %v725, 2
        %v727 = vadd.f32 %v725, %v726
        %v728 = vrot.slane %v727, 1
        %v729 = vadd.f32 %v727, %v728
        %v730 = vsel %vm711, %v535, 0.0
        %v731 = vsel %vm711, %v536, 0.0
        %v732 = vadd.f32 %v730, %v731
        %v733 = vrot.slane %v732, 4
        %v734 = vadd.f32 %v732, %v733
        %v735 = vrot.slane %v734, 2
        %v736 = vadd.f32 %v734, %v735
        %v737 = vrot.slane %v736, 1
        %v738 = vadd.f32 %v736, %v737
        %v739 = vsel %vm711, %v567, 0.0
        %v740 = vsel %vm711, %v568, 0.0
        %v741 = vadd.f32 %v739, %v740
        %v742 = vrot.slane %v741, 4
        %v743 = vadd.f32 %v741, %v742
        %v744 = vrot.slane %v743, 2
        %v745 = vadd.f32 %v743, %v744
        %v746 = vrot.slane %v745, 1
        %v747 = vadd.f32 %v745, %v746
        %v748 = vsel %vm711, %v599, 0.0
        %v749 = vsel %vm711, %v600, 0.0
        %v750 = vadd.f32 %v748, %v749
        %v751 = vrot.slane %v750, 4
        %v752 = vadd.f32 %v750, %v751
        %v753 = vrot.slane %v752, 2
        %v754 = vadd.f32 %v752, %v753
        %v755 = vrot.slane %v754, 1
        %v756 = vadd.f32 %v754, %v755
        %v757 = vsel %vm711, %v631, 0.0
        %v758 = vsel %vm711, %v632, 0.0
        %v759 = vadd.f32 %v757, %v758
        %v760 = vrot.slane %v759, 4
        %v761 = vadd.f32 %v759, %v760
        %v762 = vrot.slane %v761, 2
        %v763 = vadd.f32 %v761, %v762
        %v764 = vrot.slane %v763, 1
        %v765 = vadd.f32 %v763, %v764
        %v766 = vsel %vm711, %v663, 0.0
        %v767 = vsel %vm711, %v664, 0.0
        %v768 = vadd.f32 %v766, %v767
        %v769 = vrot.slane %v768, 4
        %v770 = vadd.f32 %v768, %v769
        %v771 = vrot.slane %v770, 2
        %v772 = vadd.f32 %v770, %v771
        %v773 = vrot.slane %v772, 1
        %v774 = vadd.f32 %v772, %v773
        %v775 = vsel %vm711, %v695, 0.0
        %v776 = vsel %vm711, %v696, 0.0
        %v777 = vadd.f32 %v775, %v776
        %v778 = vrot.slane %v777, 4
        %v779 = vadd.f32 %v777, %v778
        %v780 = vrot.slane %v779, 2
        %v781 = vadd.f32 %v779, %v780
        %v782 = vrot.slane %v781, 1
        %v783 = vadd.f32 %v781, %v782
        %v784 = vrcp.pop 16.0
        %v785 = vmul.f32 16.0, %v784
        %v786 = vsub.f32 1.0, %v785
        %v787 = vmul.f32 %v784, %v786
        %v788 = vadd.f32 %v784, %v787
        %vm789 = vweird.f32 %v784
        %v790 = vsel %vm789, %v784, %v788
        %v791 = vmul.f32 %v720, %v790
        %v792 = vmul.f32 %v729, %v790
        %v793 = vmul.f32 %v738, %v790
        %v794 = vmul.f32 %v747, %v790
        %v795 = vmul.f32 %v756, %v790
        %v796 = vmul.f32 %v765, %v790
        %v797 = vmul.f32 %v774, %v790
        %v798 = vmul.f32 %v783, %v790
        %v799 = vld [vmem:[%s2] sm:$0xff]
        %v800 = vld [vmem:[%s2 + $0x8] sm:$0xff]
        %v801 = vadd.f32 %v471, %v799
        %v802 = vadd.f32 %v472, %v800
        %v803 = vadd.f32 %v503, %v799
        %v804 = vadd.f32 %v504, %v800
        %v805 = vadd.f32 %v535, %v799
        %v806 = vadd.f32 %v536, %v800
        %v807 = vadd.f32 %v567, %v799
        %v808 = vadd.f32 %v568, %v800
        %v809 = vadd.f32 %v599, %v799
        %v810 = vadd.f32 %v600, %v800
        %v811 = vadd.f32 %v631, %v799
        %v812 = vadd.f32 %v632, %v800
        %v813 = vadd.f32 %v663, %v799
        %v814 = vadd.f32 %v664, %v800
        %v815 = vadd.f32 %v695, %v799
        %v816 = vadd.f32 %v696, %v800
        %v817 = vld [vmem:[%s1] sm:$0x1]
        %v819 = vperm.slane %v817, 0
        %v821 = vadd.f32 %v791, %v819
        %v822 = vadd.f32 %v792, %v819
        %v823 = vadd.f32 %v793, %v819
        %v824 = vadd.f32 %v794, %v819
        %v825 = vadd.f32 %v795, %v819
        %v826 = vadd.f32 %v796, %v819
        %v827 = vadd.f32 %v797, %v819
        %v828 = vadd.f32 %v798, %v819
        %v829 = vpack.c.bf16 %v801, %v801
        %v830 = vpack.c.bf16 %v802, %v802
        %v831 = vpack.c.bf16 %v803, %v803
        %v832 = vpack.c.bf16 %v804, %v804
        %v833 = vpack.c.bf16 %v805, %v805
        %v834 = vpack.c.bf16 %v806, %v806
        %v835 = vpack.c.bf16 %v807, %v807
        %v836 = vpack.c.bf16 %v808, %v808
        %v837 = vpack.c.bf16 %v809, %v809
        %v838 = vpack.c.bf16 %v810, %v810
        %v839 = vpack.c.bf16 %v811, %v811
        %v840 = vpack.c.bf16 %v812, %v812
        %v841 = vpack.c.bf16 %v813, %v813
        %v842 = vpack.c.bf16 %v814, %v814
        %v843 = vpack.c.bf16 %v815, %v815
        %v844 = vpack.c.bf16 %v816, %v816
        %v845 = vpack.c.bf16 %v821, %v821
        %v846 = vpack.c.bf16 %v822, %v822
        %v847 = vpack.c.bf16 %v823, %v823
        %v848 = vpack.c.bf16 %v824, %v824
        %v849 = vpack.c.bf16 %v825, %v825
        %v850 = vpack.c.bf16 %v826, %v826
        %v851 = vpack.c.bf16 %v827, %v827
        %v852 = vpack.c.bf16 %v828, %v828
        %v869 = vunpack.c.l.b16 %v829
        %v870 = vunpack.c.l.b16 %v830
        %v871 = vunpack.c.l.b16 %v831
        %v872 = vunpack.c.l.b16 %v832
        %v873 = vunpack.c.l.b16 %v833
        %v874 = vunpack.c.l.b16 %v834
        %v875 = vunpack.c.l.b16 %v835
        %v876 = vunpack.c.l.b16 %v836
        %v877 = vunpack.c.l.b16 %v837
        %v878 = vunpack.c.l.b16 %v838
        %v879 = vunpack.c.l.b16 %v839
        %v880 = vunpack.c.l.b16 %v840
        %v881 = vunpack.c.l.b16 %v841
        %v882 = vunpack.c.l.b16 %v842
        %v883 = vunpack.c.l.b16 %v843
        %v884 = vunpack.c.l.b16 %v844
        %v885 = vpack.c.b16 %v870, %v869
        %v886 = vpack.c.b16 %v872, %v871
        %v887 = vpack.c.b16 %v874, %v873
        %v888 = vpack.c.b16 %v876, %v875
        %v889 = vpack.c.b16 %v878, %v877
        %v890 = vpack.c.b16 %v880, %v879
        %v891 = vpack.c.b16 %v882, %v881
        %v892 = vpack.c.b16 %v884, %v883
        %v901 = vunpack.c.l.b16 %v845
        %v902 = vunpack.c.l.b16 %v846
        %v903 = vunpack.c.l.b16 %v847
        %v904 = vunpack.c.l.b16 %v848
        %v905 = vunpack.c.l.b16 %v849
        %v906 = vunpack.c.l.b16 %v850
        %v907 = vunpack.c.l.b16 %v851
        %v908 = vunpack.c.l.b16 %v852
        %v909 = vpack.c.b16 %v901, %v901
        %v910 = vpack.c.b16 %v902, %v902
        %v911 = vpack.c.b16 %v903, %v903
        %v912 = vpack.c.b16 %v904, %v904
        %v913 = vpack.c.b16 %v905, %v905
        %v914 = vpack.c.b16 %v906, %v906
        %v915 = vpack.c.b16 %v907, %v907
        %v916 = vpack.c.b16 %v908, %v908
        %v917 = vunpack.c.l.b16 %v909
        %v918 = vunpack.c.l.b16 %v910
        %v919 = vunpack.c.l.b16 %v911
        %v920 = vunpack.c.l.b16 %v912
        %v921 = vunpack.c.l.b16 %v913
        %v922 = vunpack.c.l.b16 %v914
        %v923 = vunpack.c.l.b16 %v915
        %v924 = vunpack.c.l.b16 %v916
        %v925 = vrot.slane %v918, 7
        %vm926 = vcmask 1041409
        %v927 = vsel %vm926, %v925, %v917
        %v928 = vrot.slane %v919, 6
        %vm929 = vcmask 1042434
        %v930 = vsel %vm929, %v928, %v927
        %v931 = vrot.slane %v920, 5
        %vm932 = vcmask 1043459
        %v933 = vsel %vm932, %v931, %v930
        %v934 = vrot.slane %v921, 4
        %vm935 = vcmask 1044484
        %v936 = vsel %vm935, %v934, %v933
        %v937 = vrot.slane %v922, 3
        %vm938 = vcmask 1045509
        %v939 = vsel %vm938, %v937, %v936
        %v940 = vrot.slane %v923, 2
        %vm941 = vcmask 1046534
        %v942 = vsel %vm941, %v940, %v939
        %v943 = vrot.slane %v924, 1
        %vm944 = vcmask 1047559
        %v945 = vsel %vm944, %v943, %v942
        %v946 = vpack.c.b16 %v945, %v945
        %v947 = vld [vmem:[%s7] sm:$0xff]
        %v948 = vld [vmem:[%s7 + $0x8] sm:$0xff]
        %v949 = vld [vmem:[%s7 + $0x10] sm:$0xff]
        %v950 = vld [vmem:[%s7 + $0x18] sm:$0xff]
        %v951 = vld [vmem:[%s7 + $0x20] sm:$0xff]
        %v952 = vld [vmem:[%s7 + $0x28] sm:$0xff]
        %v953 = vld [vmem:[%s7 + $0x30] sm:$0xff]
        %v954 = vld [vmem:[%s7 + $0x38] sm:$0xff]
        %v955 = vld [vmem:[%s8] sm:$0x3]
        %v957 = vperm.slane %v955, 0
        %v958 = vperm.slane %v955, 1
        %v969 = vunpack.c.l.b16 %v947
        %v970 = vunpack.c.h.b16 %v947
        %v971 = vunpack.c.l.b16 %v948
        %v972 = vunpack.c.h.b16 %v948
        %v973 = vunpack.c.l.b16 %v949
        %v974 = vunpack.c.h.b16 %v949
        %v975 = vunpack.c.l.b16 %v950
        %v976 = vunpack.c.h.b16 %v950
        %v977 = vunpack.c.l.b16 %v951
        %v978 = vunpack.c.h.b16 %v951
        %v979 = vunpack.c.l.b16 %v952
        %v980 = vunpack.c.h.b16 %v952
        %v981 = vunpack.c.l.b16 %v953
        %v982 = vunpack.c.h.b16 %v953
        %v983 = vunpack.c.l.b16 %v954
        %v984 = vunpack.c.h.b16 %v954
        %v985 = vpack.c.b16 %v971, %v969
        %v986 = vpack.c.b16 %v972, %v970
        %v987 = vpack.c.b16 %v975, %v973
        %v988 = vpack.c.b16 %v976, %v974
        %v989 = vpack.c.b16 %v979, %v977
        %v990 = vpack.c.b16 %v980, %v978
        %v991 = vpack.c.b16 %v983, %v981
        %v992 = vpack.c.b16 %v984, %v982
        %v1002 = vsel %vm711, %v885, 0
        %v1005 = vsel %vm711, %v886, 0
        %v1008 = vsel %vm711, %v887, 0
        %v1011 = vsel %vm711, %v888, 0
        %v1014 = vsel %vm711, %v889, 0
        %v1017 = vsel %vm711, %v890, 0
        %v1020 = vsel %vm711, %v891, 0
        %v1023 = vsel %vm711, %v892, 0
        %v1026 = vsel %vm711, %v946, 0
        %1028 = vmatpush.bf16.msra.mxu0 0
        %1029 = vmatpush.bf16.msra.mxu0 0
        %1030 = vmatpush.bf16.msra.mxu0 0
        %1031 = vmatpush.bf16.msra.mxu0 0
        %1032 = vmatpush.bf16.msra.mxu0 %v991
        %1033 = vmatpush.bf16.msra.mxu0 %v989
        %1034 = vmatpush.bf16.msra.mxu0 %v987
        %1035 = vmatpush.bf16.msra.mxu0 %v985
        %1036 = vmatmul.bf16.gmra.mxu0 %v1002
        %v1037 = vpop.f32.mrf.mxu0
        %v1038 = vadd.f32 %v957, %v1037
        %v1039 = vpop.f32.mrf.mxu0
        %v1040 = vadd.f32 %v957, %v1039
        %1041 = vmatmul.bf16.gmra.mxu0 %v1005
        %v1042 = vpop.f32.mrf.mxu0
        %v1043 = vadd.f32 %v957, %v1042
        %v1044 = vpop.f32.mrf.mxu0
        %v1045 = vadd.f32 %v957, %v1044
        %1046 = vmatmul.bf16.gmra.mxu0 %v1008
        %v1047 = vpop.f32.mrf.mxu0
        %v1048 = vadd.f32 %v957, %v1047
        %v1049 = vpop.f32.mrf.mxu0
        %v1050 = vadd.f32 %v957, %v1049
        %1051 = vmatmul.bf16.gmra.mxu0 %v1011
        %v1052 = vpop.f32.mrf.mxu0
        %v1053 = vadd.f32 %v957, %v1052
        %v1054 = vpop.f32.mrf.mxu0
        %v1055 = vadd.f32 %v957, %v1054
        %1056 = vmatmul.bf16.gmra.mxu0 %v1014
        %v1057 = vpop.f32.mrf.mxu0
        %v1058 = vadd.f32 %v957, %v1057
        %v1059 = vpop.f32.mrf.mxu0
        %v1060 = vadd.f32 %v957, %v1059
        %1061 = vmatmul.bf16.gmra.mxu0 %v1017
        %v1062 = vpop.f32.mrf.mxu0
        %v1063 = vadd.f32 %v957, %v1062
        %v1064 = vpop.f32.mrf.mxu0
        %v1065 = vadd.f32 %v957, %v1064
        %1066 = vmatmul.bf16.gmra.mxu0 %v1020
        %v1067 = vpop.f32.mrf.mxu0
        %v1068 = vadd.f32 %v957, %v1067
        %v1069 = vpop.f32.mrf.mxu0
        %v1070 = vadd.f32 %v957, %v1069
        %1071 = vmatmul.bf16.gmra.mxu0 %v1023
        %v1072 = vpop.f32.mrf.mxu0
        %v1073 = vadd.f32 %v957, %v1072
        %v1074 = vpop.f32.mrf.mxu0
        %v1075 = vadd.f32 %v957, %v1074
        %1076 = vmatmul.bf16.gmra.mxu0 %v1026
        %v1077 = vpop.f32.mrf.mxu0
        %v1078 = vadd.f32 %v957, %v1077
        %v1079 = vpop.f32.mrf.mxu0
        %1080 = vdwg.mxu0
        %1081 = vmatpush.bf16.msra.mxu0 0
        %1082 = vmatpush.bf16.msra.mxu0 0
        %1083 = vmatpush.bf16.msra.mxu0 0
        %1084 = vmatpush.bf16.msra.mxu0 0
        %1085 = vmatpush.bf16.msra.mxu0 %v992
        %1086 = vmatpush.bf16.msra.mxu0 %v990
        %1087 = vmatpush.bf16.msra.mxu0 %v988
        %1088 = vmatpush.bf16.msra.mxu0 %v986
        %1089 = vmatmul.bf16.gmra.mxu0 %v1002
        %v1090 = vpop.f32.mrf.mxu0
        %v1091 = vadd.f32 %v958, %v1090
        %v1092 = vpop.f32.mrf.mxu0
        %v1093 = vadd.f32 %v958, %v1092
        %1094 = vmatmul.bf16.gmra.mxu0 %v1005
        %v1095 = vpop.f32.mrf.mxu0
        %v1096 = vadd.f32 %v958, %v1095
        %v1097 = vpop.f32.mrf.mxu0
        %v1098 = vadd.f32 %v958, %v1097
        %1099 = vmatmul.bf16.gmra.mxu0 %v1008
        %v1100 = vpop.f32.mrf.mxu0
        %v1101 = vadd.f32 %v958, %v1100
        %v1102 = vpop.f32.mrf.mxu0
        %v1103 = vadd.f32 %v958, %v1102
        %1104 = vmatmul.bf16.gmra.mxu0 %v1011
        %v1105 = vpop.f32.mrf.mxu0
        %v1106 = vadd.f32 %v958, %v1105
        %v1107 = vpop.f32.mrf.mxu0
        %v1108 = vadd.f32 %v958, %v1107
        %1109 = vmatmul.bf16.gmra.mxu0 %v1014
        %v1110 = vpop.f32.mrf.mxu0
        %v1111 = vadd.f32 %v958, %v1110
        %v1112 = vpop.f32.mrf.mxu0
        %v1113 = vadd.f32 %v958, %v1112
        %1114 = vmatmul.bf16.gmra.mxu0 %v1017
        %v1115 = vpop.f32.mrf.mxu0
        %v1116 = vadd.f32 %v958, %v1115
        %v1117 = vpop.f32.mrf.mxu0
        %v1118 = vadd.f32 %v958, %v1117
        %1119 = vmatmul.bf16.gmra.mxu0 %v1020
        %v1120 = vpop.f32.mrf.mxu0
        %v1121 = vadd.f32 %v958, %v1120
        %v1122 = vpop.f32.mrf.mxu0
        %v1123 = vadd.f32 %v958, %v1122
        %1124 = vmatmul.bf16.gmra.mxu0 %v1023
        %v1125 = vpop.f32.mrf.mxu0
        %v1126 = vadd.f32 %v958, %v1125
        %v1127 = vpop.f32.mrf.mxu0
        %v1128 = vadd.f32 %v958, %v1127
        %1129 = vmatmul.bf16.gmra.mxu0 %v1026
        %v1130 = vpop.f32.mrf.mxu0
        %v1131 = vadd.f32 %v958, %v1130
        %v1132 = vpop.f32.mrf.mxu0
        %1133 = vdwg.mxu0
        %v1134 = vmul.f32 %v1078, 0.35355338
        %v1135 = vld [vmem:[%s3] sm:$0xff]
        %v1136 = vld [vmem:[%s3 + $0x8] sm:$0xff]
        %v1137 = vld [vmem:[%s4] sm:$0xff]
        %v1138 = vld [vmem:[%s4 + $0x8] sm:$0xff]
        %v1139 = vld [vmem:[%s4 + $0x10] sm:$0xff]
        %v1140 = vld [vmem:[%s4 + $0x18] sm:$0xff]
        %v1141 = vld [vmem:[%s4 + $0x20] sm:$0xff]
        %v1142 = vld [vmem:[%s4 + $0x28] sm:$0xff]
        %v1143 = vld [vmem:[%s4 + $0x30] sm:$0xff]
        %v1144 = vld [vmem:[%s4 + $0x38] sm:$0xff]
        %v1145 = vld [vmem:[%s4 + $0x40] sm:$0xff]
        %v1146 = vld [vmem:[%s4 + $0x48] sm:$0xff]
        %v1147 = vld [vmem:[%s4 + $0x50] sm:$0xff]
        %v1148 = vld [vmem:[%s4 + $0x58] sm:$0xff]
        %v1149 = vld [vmem:[%s4 + $0x60] sm:$0xff]
        %v1150 = vld [vmem:[%s4 + $0x68] sm:$0xff]
        %v1151 = vld [vmem:[%s4 + $0x70] sm:$0xff]
        %v1152 = vld [vmem:[%s4 + $0x78] sm:$0xff]
        %v1153 = vld [vmem:[%s4 + $0x80] sm:$0xff]
        %v1154 = vld [vmem:[%s5] sm:$0xff]
        %v1155 = vld [vmem:[%s5 + $0x8] sm:$0xff]
        %v1156 = vld [vmem:[%s5 + $0x10] sm:$0xff]
        %v1157 = vld [vmem:[%s5 + $0x18] sm:$0xff]
        %v1158 = vld [vmem:[%s5 + $0x20] sm:$0xff]
        %v1159 = vld [vmem:[%s5 + $0x28] sm:$0xff]
        %v1160 = vld [vmem:[%s5 + $0x30] sm:$0xff]
        %v1161 = vld [vmem:[%s5 + $0x38] sm:$0xff]
        %v1162 = vld [vmem:[%s6] sm:$0xff]
        %vm1163 = vcmask 64512
        %v1165 = vsel %vm1163, %v1137, 0
        %v1168 = vsel %vm1163, %v1138, 0
        %v1171 = vsel %vm1163, %v1139, 0
        %v1174 = vsel %vm1163, %v1140, 0
        %v1177 = vsel %vm1163, %v1141, 0
        %v1180 = vsel %vm1163, %v1142, 0
        %v1183 = vsel %vm1163, %v1143, 0
        %v1186 = vsel %vm1163, %v1144, 0
        %v1189 = vsel %vm1163, %v1145, 0
        %v1192 = vsel %vm1163, %v1146, 0
        %v1195 = vsel %vm1163, %v1147, 0
        %v1198 = vsel %vm1163, %v1148, 0
        %v1201 = vsel %vm1163, %v1149, 0
        %v1204 = vsel %vm1163, %v1150, 0
        %v1207 = vsel %vm1163, %v1151, 0
        %v1210 = vsel %vm1163, %v1152, 0
        %v1213 = vsel %vm1163, %v1153, 0
        %1215 = vmatpush.msra.mxu0 0.0
        %1216 = vmatpush.msra.mxu0 0.0
        %1217 = vmatpush.msra.mxu0 0.0
        %1218 = vmatpush.msra.mxu0 0.0
        %1219 = vmatpush.msra.mxu0 0.0
        %1220 = vmatpush.msra.mxu0 0.0
        %1221 = vmatpush.msra.mxu0 0.0
        %1222 = vmatpush.msra.mxu0 0.0
        %1223 = vmatpush.msra.mxu0 0.0
        %1224 = vmatpush.msra.mxu0 0.0
        %1225 = vmatpush.msra.mxu0 0.0
        %1226 = vmatpush.msra.mxu0 0.0
        %1227 = vmatpush.msra.mxu0 0.0
        %1228 = vmatpush.msra.mxu0 0.0
        %1229 = vmatpush.msra.mxu0 0.0
        %1230 = vmatpush.msra.mxu0 %v1134
        %1231 = vmatmul.f32.gmra.mxu0 %v1165
        %v1232 = vpop.f32.mrf.mxu0
        %v1233 = vadd.f32 0.0, %v1232
        %1234 = vmatmul.f32.gmra.mxu0 %v1168
        %v1235 = vpop.f32.mrf.mxu0
        %v1236 = vadd.f32 0.0, %v1235
        %1237 = vmatmul.f32.gmra.mxu0 %v1171
        %v1238 = vpop.f32.mrf.mxu0
        %v1239 = vadd.f32 0.0, %v1238
        %1240 = vmatmul.f32.gmra.mxu0 %v1174
        %v1241 = vpop.f32.mrf.mxu0
        %v1242 = vadd.f32 0.0, %v1241
        %1243 = vmatmul.f32.gmra.mxu0 %v1177
        %v1244 = vpop.f32.mrf.mxu0
        %v1245 = vadd.f32 0.0, %v1244
        %1246 = vmatmul.f32.gmra.mxu0 %v1180
        %v1247 = vpop.f32.mrf.mxu0
        %v1248 = vadd.f32 0.0, %v1247
        %1249 = vmatmul.f32.gmra.mxu0 %v1183
        %v1250 = vpop.f32.mrf.mxu0
        %v1251 = vadd.f32 0.0, %v1250
        %1252 = vmatmul.f32.gmra.mxu0 %v1186
        %v1253 = vpop.f32.mrf.mxu0
        %v1254 = vadd.f32 0.0, %v1253
        %1255 = vmatmul.f32.gmra.mxu0 %v1189
        %v1256 = vpop.f32.mrf.mxu0
        %v1257 = vadd.f32 0.0, %v1256
        %1258 = vmatmul.f32.gmra.mxu0 %v1192
        %v1259 = vpop.f32.mrf.mxu0
        %v1260 = vadd.f32 0.0, %v1259
        %1261 = vmatmul.f32.gmra.mxu0 %v1195
        %v1262 = vpop.f32.mrf.mxu0
        %v1263 = vadd.f32 0.0, %v1262
        %1264 = vmatmul.f32.gmra.mxu0 %v1198
        %v1265 = vpop.f32.mrf.mxu0
        %v1266 = vadd.f32 0.0, %v1265
        %1267 = vmatmul.f32.gmra.mxu0 %v1201
        %v1268 = vpop.f32.mrf.mxu0
        %v1269 = vadd.f32 0.0, %v1268
        %1270 = vmatmul.f32.gmra.mxu0 %v1204
        %v1271 = vpop.f32.mrf.mxu0
        %v1272 = vadd.f32 0.0, %v1271
        %1273 = vmatmul.f32.gmra.mxu0 %v1207
        %v1274 = vpop.f32.mrf.mxu0
        %v1275 = vadd.f32 0.0, %v1274
        %1276 = vmatmul.f32.gmra.mxu0 %v1210
        %v1277 = vpop.f32.mrf.mxu0
        %v1278 = vadd.f32 0.0, %v1277
        %1279 = vmatmul.f32.gmra.mxu0 %v1213
        %v1280 = vpop.f32.mrf.mxu0
        %v1281 = vadd.f32 0.0, %v1280
        %1282 = vdwg.mxu0
        %1300 = vrot.lane.b32.xlu0 %v1038, 64
        %v1301 = vpop.permute.xlu0 %1300
        %1302 = vrot.lane.b32.xlu0 %v1040, 64
        %v1303 = vpop.permute.xlu0 %1302
        %1304 = vrot.lane.b32.xlu0 %v1043, 64
        %v1305 = vpop.permute.xlu0 %1304
        %1306 = vrot.lane.b32.xlu0 %v1045, 64
        %v1307 = vpop.permute.xlu0 %1306
        %1308 = vrot.lane.b32.xlu0 %v1048, 64
        %v1309 = vpop.permute.xlu0 %1308
        %1310 = vrot.lane.b32.xlu0 %v1050, 64
        %v1311 = vpop.permute.xlu0 %1310
        %1312 = vrot.lane.b32.xlu0 %v1053, 64
        %v1313 = vpop.permute.xlu0 %1312
        %1314 = vrot.lane.b32.xlu0 %v1055, 64
        %v1315 = vpop.permute.xlu0 %1314
        %1316 = vrot.lane.b32.xlu0 %v1058, 64
        %v1317 = vpop.permute.xlu0 %1316
        %1318 = vrot.lane.b32.xlu0 %v1060, 64
        %v1319 = vpop.permute.xlu0 %1318
        %1320 = vrot.lane.b32.xlu0 %v1063, 64
        %v1321 = vpop.permute.xlu0 %1320
        %1322 = vrot.lane.b32.xlu0 %v1065, 64
        %v1323 = vpop.permute.xlu0 %1322
        %1324 = vrot.lane.b32.xlu0 %v1068, 64
        %v1325 = vpop.permute.xlu0 %1324
        %1326 = vrot.lane.b32.xlu0 %v1070, 64
        %v1327 = vpop.permute.xlu0 %1326
        %1328 = vrot.lane.b32.xlu0 %v1073, 64
        %v1329 = vpop.permute.xlu0 %1328
        %1330 = vrot.lane.b32.xlu0 %v1075, 64
        %v1331 = vpop.permute.xlu0 %1330
        %1332 = vrot.lane.b32.xlu0 %v1078, 64
        %v1333 = vpop.permute.xlu0 %1332
        %v1351 = vmul.f32 %v1233, %v1301
        %v1352 = vmul.f32 %v1236, %v1303
        %v1353 = vmul.f32 %v1239, %v1305
        %v1354 = vmul.f32 %v1242, %v1307
        %v1355 = vmul.f32 %v1245, %v1309
        %v1356 = vmul.f32 %v1248, %v1311
        %v1357 = vmul.f32 %v1251, %v1313
        %v1358 = vmul.f32 %v1254, %v1315
        %v1359 = vmul.f32 %v1257, %v1317
        %v1360 = vmul.f32 %v1260, %v1319
        %v1361 = vmul.f32 %v1263, %v1321
        %v1362 = vmul.f32 %v1266, %v1323
        %v1363 = vmul.f32 %v1269, %v1325
        %v1364 = vmul.f32 %v1272, %v1327
        %v1365 = vmul.f32 %v1275, %v1329
        %v1366 = vmul.f32 %v1278, %v1331
        %v1367 = vmul.f32 %v1281, %v1333
        %v1369 = vsel %vm711, %v1351, 0
        %v1372 = vsel %vm711, %v1352, 0
        %v1375 = vsel %vm711, %v1353, 0
        %v1378 = vsel %vm711, %v1354, 0
        %v1381 = vsel %vm711, %v1355, 0
        %v1384 = vsel %vm711, %v1356, 0
        %v1387 = vsel %vm711, %v1357, 0
        %v1390 = vsel %vm711, %v1358, 0
        %v1393 = vsel %vm711, %v1359, 0
        %v1396 = vsel %vm711, %v1360, 0
        %v1399 = vsel %vm711, %v1361, 0
        %v1402 = vsel %vm711, %v1362, 0
        %v1405 = vsel %vm711, %v1363, 0
        %v1408 = vsel %vm711, %v1364, 0
        %v1411 = vsel %vm711, %v1365, 0
        %v1414 = vsel %vm711, %v1366, 0
        %v1417 = vsel %vm711, %v1367, 0
        %1419 = vmatpush.msra.mxu0 0.0
        %1420 = vmatpush.msra.mxu0 0.0
        %1421 = vmatpush.msra.mxu0 0.0
        %1422 = vmatpush.msra.mxu0 0.0
        %1423 = vmatpush.msra.mxu0 0.0
        %1424 = vmatpush.msra.mxu0 0.0
        %1425 = vmatpush.msra.mxu0 0.0
        %1426 = vmatpush.msra.mxu0 0.0
        %1427 = vmatpush.msra.mxu0 %v1161
        %1428 = vmatpush.msra.mxu0 %v1160
        %1429 = vmatpush.msra.mxu0 %v1159
        %1430 = vmatpush.msra.mxu0 %v1158
        %1431 = vmatpush.msra.mxu0 %v1157
        %1432 = vmatpush.msra.mxu0 %v1156
        %1433 = vmatpush.msra.mxu0 %v1155
        %1434 = vmatpush.msra.mxu0 %v1154
        %1435 = vmatmul.f32.gmra.mxu0 %v1369
        %v1436 = vpop.f32.mrf.mxu0
        %v1437 = vadd.f32 0.0, %v1436
        %1438 = vmatmul.f32.gmra.mxu0 %v1372
        %v1439 = vpop.f32.mrf.mxu0
        %v1440 = vadd.f32 0.0, %v1439
        %1441 = vmatmul.f32.gmra.mxu0 %v1375
        %v1442 = vpop.f32.mrf.mxu0
        %v1443 = vadd.f32 0.0, %v1442
        %1444 = vmatmul.f32.gmra.mxu0 %v1378
        %v1445 = vpop.f32.mrf.mxu0
        %v1446 = vadd.f32 0.0, %v1445
        %1447 = vmatmul.f32.gmra.mxu0 %v1381
        %v1448 = vpop.f32.mrf.mxu0
        %v1449 = vadd.f32 0.0, %v1448
        %1450 = vmatmul.f32.gmra.mxu0 %v1384
        %v1451 = vpop.f32.mrf.mxu0
        %v1452 = vadd.f32 0.0, %v1451
        %1453 = vmatmul.f32.gmra.mxu0 %v1387
        %v1454 = vpop.f32.mrf.mxu0
        %v1455 = vadd.f32 0.0, %v1454
        %1456 = vmatmul.f32.gmra.mxu0 %v1390
        %v1457 = vpop.f32.mrf.mxu0
        %v1458 = vadd.f32 0.0, %v1457
        %1459 = vmatmul.f32.gmra.mxu0 %v1393
        %v1460 = vpop.f32.mrf.mxu0
        %v1461 = vadd.f32 0.0, %v1460
        %1462 = vmatmul.f32.gmra.mxu0 %v1396
        %v1463 = vpop.f32.mrf.mxu0
        %v1464 = vadd.f32 0.0, %v1463
        %1465 = vmatmul.f32.gmra.mxu0 %v1399
        %v1466 = vpop.f32.mrf.mxu0
        %v1467 = vadd.f32 0.0, %v1466
        %1468 = vmatmul.f32.gmra.mxu0 %v1402
        %v1469 = vpop.f32.mrf.mxu0
        %v1470 = vadd.f32 0.0, %v1469
        %1471 = vmatmul.f32.gmra.mxu0 %v1405
        %v1472 = vpop.f32.mrf.mxu0
        %v1473 = vadd.f32 0.0, %v1472
        %1474 = vmatmul.f32.gmra.mxu0 %v1408
        %v1475 = vpop.f32.mrf.mxu0
        %v1476 = vadd.f32 0.0, %v1475
        %1477 = vmatmul.f32.gmra.mxu0 %v1411
        %v1478 = vpop.f32.mrf.mxu0
        %v1479 = vadd.f32 0.0, %v1478
        %1480 = vmatmul.f32.gmra.mxu0 %v1414
        %v1481 = vpop.f32.mrf.mxu0
        %v1482 = vadd.f32 0.0, %v1481
        %1483 = vmatmul.f32.gmra.mxu0 %v1417
        %v1484 = vpop.f32.mrf.mxu0
        %v1485 = vadd.f32 0.0, %v1484
        %1486 = vdwg.mxu0
        %v1487 = vsel %vm1163, %v1437, -inf
        %v1488 = vsel %vm1163, %v1440, -inf
        %v1489 = vmax.f32 %v1487, %v1488
        %v1490 = vrot.slane %v1489, 4
        %v1491 = vmax.f32 %v1489, %v1490
        %v1492 = vrot.slane %v1491, 2
        %v1493 = vmax.f32 %v1491, %v1492
        %v1494 = vrot.slane %v1493, 1
        %v1495 = vmax.f32 %v1493, %v1494
        %v1496 = vsel %vm1163, %v1443, -inf
        %v1497 = vsel %vm1163, %v1446, -inf
        %v1498 = vmax.f32 %v1496, %v1497
        %v1499 = vrot.slane %v1498, 4
        %v1500 = vmax.f32 %v1498, %v1499
        %v1501 = vrot.slane %v1500, 2
        %v1502 = vmax.f32 %v1500, %v1501
        %v1503 = vrot.slane %v1502, 1
        %v1504 = vmax.f32 %v1502, %v1503
        %v1505 = vsel %vm1163, %v1449, -inf
        %v1506 = vsel %vm1163, %v1452, -inf
        %v1507 = vmax.f32 %v1505, %v1506
        %v1508 = vrot.slane %v1507, 4
        %v1509 = vmax.f32 %v1507, %v1508
        %v1510 = vrot.slane %v1509, 2
        %v1511 = vmax.f32 %v1509, %v1510
        %v1512 = vrot.slane %v1511, 1
        %v1513 = vmax.f32 %v1511, %v1512
        %v1514 = vsel %vm1163, %v1455, -inf
        %v1515 = vsel %vm1163, %v1458, -inf
        %v1516 = vmax.f32 %v1514, %v1515
        %v1517 = vrot.slane %v1516, 4
        %v1518 = vmax.f32 %v1516, %v1517
        %v1519 = vrot.slane %v1518, 2
        %v1520 = vmax.f32 %v1518, %v1519
        %v1521 = vrot.slane %v1520, 1
        %v1522 = vmax.f32 %v1520, %v1521
        %v1523 = vsel %vm1163, %v1461, -inf
        %v1524 = vsel %vm1163, %v1464, -inf
        %v1525 = vmax.f32 %v1523, %v1524
        %v1526 = vrot.slane %v1525, 4
        %v1527 = vmax.f32 %v1525, %v1526
        %v1528 = vrot.slane %v1527, 2
        %v1529 = vmax.f32 %v1527, %v1528
        %v1530 = vrot.slane %v1529, 1
        %v1531 = vmax.f32 %v1529, %v1530
        %v1532 = vsel %vm1163, %v1467, -inf
        %v1533 = vsel %vm1163, %v1470, -inf
        %v1534 = vmax.f32 %v1532, %v1533
        %v1535 = vrot.slane %v1534, 4
        %v1536 = vmax.f32 %v1534, %v1535
        %v1537 = vrot.slane %v1536, 2
        %v1538 = vmax.f32 %v1536, %v1537
        %v1539 = vrot.slane %v1538, 1
        %v1540 = vmax.f32 %v1538, %v1539
        %v1541 = vsel %vm1163, %v1473, -inf
        %v1542 = vsel %vm1163, %v1476, -inf
        %v1543 = vmax.f32 %v1541, %v1542
        %v1544 = vrot.slane %v1543, 4
        %v1545 = vmax.f32 %v1543, %v1544
        %v1546 = vrot.slane %v1545, 2
        %v1547 = vmax.f32 %v1545, %v1546
        %v1548 = vrot.slane %v1547, 1
        %v1549 = vmax.f32 %v1547, %v1548
        %v1550 = vsel %vm1163, %v1479, -inf
        %v1551 = vsel %vm1163, %v1482, -inf
        %v1552 = vmax.f32 %v1550, %v1551
        %v1553 = vrot.slane %v1552, 4
        %v1554 = vmax.f32 %v1552, %v1553
        %v1555 = vrot.slane %v1554, 2
        %v1556 = vmax.f32 %v1554, %v1555
        %v1557 = vrot.slane %v1556, 1
        %v1558 = vmax.f32 %v1556, %v1557
        %v1560 = vrot.slane %v1485, 1
        %v1561 = vrot.slane %v1485, 2
        %v1562 = vrot.slane %v1485, 3
        %v1563 = vrot.slane %v1485, 4
        %v1564 = vrot.slane %v1485, 5
        %v1565 = vrot.slane %v1485, 6
        %v1566 = vrot.slane %v1485, 7
        %v1575 = vmax.f32 %v1495, %v1485
        %v1576 = vmax.f32 %v1504, %v1560
        %v1577 = vmax.f32 %v1513, %v1561
        %v1578 = vmax.f32 %v1522, %v1562
        %v1579 = vmax.f32 %v1531, %v1563
        %v1580 = vmax.f32 %v1540, %v1564
        %v1581 = vmax.f32 %v1549, %v1565
        %v1582 = vmax.f32 %v1558, %v1566
        %v1591 = vrot.slane %v1576, 7
        %v1592 = vsel %vm926, %v1591, %v1575
        %v1593 = vrot.slane %v1577, 6
        %v1594 = vsel %vm929, %v1593, %v1592
        %v1595 = vrot.slane %v1578, 5
        %v1596 = vsel %vm932, %v1595, %v1594
        %v1597 = vrot.slane %v1579, 4
        %v1598 = vsel %vm935, %v1597, %v1596
        %v1599 = vrot.slane %v1580, 3
        %v1600 = vsel %vm938, %v1599, %v1598
        %v1601 = vrot.slane %v1581, 2
        %v1602 = vsel %vm941, %v1601, %v1600
        %v1603 = vrot.slane %v1582, 1
        %v1604 = vsel %vm944, %v1603, %v1602
        %1606 = vmatpush.msra.mxu0 0.0
        %1607 = vmatpush.msra.mxu0 0.0
        %1608 = vmatpush.msra.mxu0 0.0
        %1609 = vmatpush.msra.mxu0 0.0
        %1610 = vmatpush.msra.mxu0 0.0
        %1611 = vmatpush.msra.mxu0 0.0
        %1612 = vmatpush.msra.mxu0 0.0
        %1613 = vmatpush.msra.mxu0 0.0
        %1614 = vmatpush.msra.mxu0 0.0
        %1615 = vmatpush.msra.mxu0 0.0
        %1616 = vmatpush.msra.mxu0 0.0
        %1617 = vmatpush.msra.mxu0 0.0
        %1618 = vmatpush.msra.mxu0 0.0
        %1619 = vmatpush.msra.mxu0 0.0
        %1620 = vmatpush.msra.mxu0 0.0
        %1621 = vmatpush.msra.mxu0 %v1604
        %1622 = vmatmul.f32.gmra.mxu0 %v1165
        %v1623 = vpop.f32.mrf.mxu0
        %v1624 = vadd.f32 0.0, %v1623
        %1625 = vmatmul.f32.gmra.mxu0 %v1168
        %v1626 = vpop.f32.mrf.mxu0
        %v1627 = vadd.f32 0.0, %v1626
        %1628 = vmatmul.f32.gmra.mxu0 %v1171
        %v1629 = vpop.f32.mrf.mxu0
        %v1630 = vadd.f32 0.0, %v1629
        %1631 = vmatmul.f32.gmra.mxu0 %v1174
        %v1632 = vpop.f32.mrf.mxu0
        %v1633 = vadd.f32 0.0, %v1632
        %1634 = vmatmul.f32.gmra.mxu0 %v1177
        %v1635 = vpop.f32.mrf.mxu0
        %v1636 = vadd.f32 0.0, %v1635
        %1637 = vmatmul.f32.gmra.mxu0 %v1180
        %v1638 = vpop.f32.mrf.mxu0
        %v1639 = vadd.f32 0.0, %v1638
        %1640 = vmatmul.f32.gmra.mxu0 %v1183
        %v1641 = vpop.f32.mrf.mxu0
        %v1642 = vadd.f32 0.0, %v1641
        %1643 = vmatmul.f32.gmra.mxu0 %v1186
        %v1644 = vpop.f32.mrf.mxu0
        %v1645 = vadd.f32 0.0, %v1644
        %1646 = vmatmul.f32.gmra.mxu0 %v1189
        %v1647 = vpop.f32.mrf.mxu0
        %v1648 = vadd.f32 0.0, %v1647
        %1649 = vmatmul.f32.gmra.mxu0 %v1192
        %v1650 = vpop.f32.mrf.mxu0
        %v1651 = vadd.f32 0.0, %v1650
        %1652 = vmatmul.f32.gmra.mxu0 %v1195
        %v1653 = vpop.f32.mrf.mxu0
        %v1654 = vadd.f32 0.0, %v1653
        %1655 = vmatmul.f32.gmra.mxu0 %v1198
        %v1656 = vpop.f32.mrf.mxu0
        %v1657 = vadd.f32 0.0, %v1656
        %1658 = vmatmul.f32.gmra.mxu0 %v1201
        %v1659 = vpop.f32.mrf.mxu0
        %v1660 = vadd.f32 0.0, %v1659
        %1661 = vmatmul.f32.gmra.mxu0 %v1204
        %v1662 = vpop.f32.mrf.mxu0
        %v1663 = vadd.f32 0.0, %v1662
        %1664 = vmatmul.f32.gmra.mxu0 %v1207
        %v1665 = vpop.f32.mrf.mxu0
        %v1666 = vadd.f32 0.0, %v1665
        %1667 = vmatmul.f32.gmra.mxu0 %v1210
        %v1668 = vpop.f32.mrf.mxu0
        %v1669 = vadd.f32 0.0, %v1668
        %1670 = vmatmul.f32.gmra.mxu0 %v1213
        %v1671 = vpop.f32.mrf.mxu0
        %v1672 = vadd.f32 0.0, %v1671
        %1673 = vdwg.mxu0
        %v1674 = vsub.f32 %v1437, %v1624
        %v1675 = vsub.f32 %v1440, %v1627
        %v1676 = vsub.f32 %v1443, %v1630
        %v1677 = vsub.f32 %v1446, %v1633
        %v1678 = vsub.f32 %v1449, %v1636
        %v1679 = vsub.f32 %v1452, %v1639
        %v1680 = vsub.f32 %v1455, %v1642
        %v1681 = vsub.f32 %v1458, %v1645
        %v1682 = vsub.f32 %v1461, %v1648
        %v1683 = vsub.f32 %v1464, %v1651
        %v1684 = vsub.f32 %v1467, %v1654
        %v1685 = vsub.f32 %v1470, %v1657
        %v1686 = vsub.f32 %v1473, %v1660
        %v1687 = vsub.f32 %v1476, %v1663
        %v1688 = vsub.f32 %v1479, %v1666
        %v1689 = vsub.f32 %v1482, %v1669
        %v1690 = vsub.f32 %v1485, %v1672
        %v1691 = vmul.f32 %v1674, 1.442695
        %v1692 = vpow.pop %v1691
        %v1693 = vmul.f32 %v1675, 1.442695
        %v1694 = vpow.pop %v1693
        %v1695 = vmul.f32 %v1676, 1.442695
        %v1696 = vpow.pop %v1695
        %v1697 = vmul.f32 %v1677, 1.442695
        %v1698 = vpow.pop %v1697
        %v1699 = vmul.f32 %v1678, 1.442695
        %v1700 = vpow.pop %v1699
        %v1701 = vmul.f32 %v1679, 1.442695
        %v1702 = vpow.pop %v1701
        %v1703 = vmul.f32 %v1680, 1.442695
        %v1704 = vpow.pop %v1703
        %v1705 = vmul.f32 %v1681, 1.442695
        %v1706 = vpow.pop %v1705
        %v1707 = vmul.f32 %v1682, 1.442695
        %v1708 = vpow.pop %v1707
        %v1709 = vmul.f32 %v1683, 1.442695
        %v1710 = vpow.pop %v1709
        %v1711 = vmul.f32 %v1684, 1.442695
        %v1712 = vpow.pop %v1711
        %v1713 = vmul.f32 %v1685, 1.442695
        %v1714 = vpow.pop %v1713
        %v1715 = vmul.f32 %v1686, 1.442695
        %v1716 = vpow.pop %v1715
        %v1717 = vmul.f32 %v1687, 1.442695
        %v1718 = vpow.pop %v1717
        %v1719 = vmul.f32 %v1688, 1.442695
        %v1720 = vpow.pop %v1719
        %v1721 = vmul.f32 %v1689, 1.442695
        %v1722 = vpow.pop %v1721
        %v1723 = vmul.f32 %v1690, 1.442695
        %v1724 = vpow.pop %v1723
        %v1726 = vsel %vm1163, %v1136, 0
        %1728 = vmatpush.msra.mxu0 %v1722
        %1729 = vmatpush.msra.mxu0 %v1720
        %1730 = vmatpush.msra.mxu0 %v1718
        %1731 = vmatpush.msra.mxu0 %v1716
        %1732 = vmatpush.msra.mxu0 %v1714
        %1733 = vmatpush.msra.mxu0 %v1712
        %1734 = vmatpush.msra.mxu0 %v1710
        %1735 = vmatpush.msra.mxu0 %v1708
        %1736 = vmatpush.msra.mxu0 %v1706
        %1737 = vmatpush.msra.mxu0 %v1704
        %1738 = vmatpush.msra.mxu0 %v1702
        %1739 = vmatpush.msra.mxu0 %v1700
        %1740 = vmatpush.msra.mxu0 %v1698
        %1741 = vmatpush.msra.mxu0 %v1696
        %1742 = vmatpush.msra.mxu0 %v1694
        %1743 = vmatpush.msra.mxu0 %v1692
        %1744 = vmatmul.f32.gmra.mxu0 %v1135
        %v1745 = vpop.f32.mrf.mxu0
        %v1746 = vadd.f32 0.0, %v1745
        %1747 = vdwg.mxu0
        %1748 = vmatpush.msra.mxu0 0.0
        %1749 = vmatpush.msra.mxu0 0.0
        %1750 = vmatpush.msra.mxu0 0.0
        %1751 = vmatpush.msra.mxu0 0.0
        %1752 = vmatpush.msra.mxu0 0.0
        %1753 = vmatpush.msra.mxu0 0.0
        %1754 = vmatpush.msra.mxu0 0.0
        %1755 = vmatpush.msra.mxu0 0.0
        %1756 = vmatpush.msra.mxu0 0.0
        %1757 = vmatpush.msra.mxu0 0.0
        %1758 = vmatpush.msra.mxu0 0.0
        %1759 = vmatpush.msra.mxu0 0.0
        %1760 = vmatpush.msra.mxu0 0.0
        %1761 = vmatpush.msra.mxu0 0.0
        %1762 = vmatpush.msra.mxu0 0.0
        %1763 = vmatpush.msra.mxu0 %v1724
        %1764 = vmatmul.f32.gmra.mxu0 %v1726
        %v1765 = vpop.f32.mrf.mxu0
        %v1766 = vadd.f32 %v1746, %v1765
        %1767 = vdwg.mxu0
        %v1768 = vrcp.pop %v1766
        %v1770 = vsel %vm1163, %v1692, 0
        %v1773 = vsel %vm1163, %v1694, 0
        %v1776 = vsel %vm1163, %v1696, 0
        %v1779 = vsel %vm1163, %v1698, 0
        %v1782 = vsel %vm1163, %v1700, 0
        %v1785 = vsel %vm1163, %v1702, 0
        %v1788 = vsel %vm1163, %v1704, 0
        %v1791 = vsel %vm1163, %v1706, 0
        %v1794 = vsel %vm1163, %v1708, 0
        %v1797 = vsel %vm1163, %v1710, 0
        %v1800 = vsel %vm1163, %v1712, 0
        %v1803 = vsel %vm1163, %v1714, 0
        %v1806 = vsel %vm1163, %v1716, 0
        %v1809 = vsel %vm1163, %v1718, 0
        %v1812 = vsel %vm1163, %v1720, 0
        %v1815 = vsel %vm1163, %v1722, 0
        %v1818 = vsel %vm1163, %v1724, 0
        %1820 = vmatpush.msra.mxu0 0.0
        %1821 = vmatpush.msra.mxu0 0.0
        %1822 = vmatpush.msra.mxu0 0.0
        %1823 = vmatpush.msra.mxu0 0.0
        %1824 = vmatpush.msra.mxu0 0.0
        %1825 = vmatpush.msra.mxu0 0.0
        %1826 = vmatpush.msra.mxu0 0.0
        %1827 = vmatpush.msra.mxu0 0.0
        %1828 = vmatpush.msra.mxu0 0.0
        %1829 = vmatpush.msra.mxu0 0.0
        %1830 = vmatpush.msra.mxu0 0.0
        %1831 = vmatpush.msra.mxu0 0.0
        %1832 = vmatpush.msra.mxu0 0.0
        %1833 = vmatpush.msra.mxu0 0.0
        %1834 = vmatpush.msra.mxu0 0.0
        %1835 = vmatpush.msra.mxu0 %v1162
        %1836 = vmatmul.f32.gmra.mxu0 %v1770
        %v1837 = vpop.f32.mrf.mxu0
        %v1838 = vadd.f32 0.0, %v1837
        %1839 = vmatmul.f32.gmra.mxu0 %v1773
        %v1840 = vpop.f32.mrf.mxu0
        %v1841 = vadd.f32 0.0, %v1840
        %1842 = vmatmul.f32.gmra.mxu0 %v1776
        %v1843 = vpop.f32.mrf.mxu0
        %v1844 = vadd.f32 0.0, %v1843
        %1845 = vmatmul.f32.gmra.mxu0 %v1779
        %v1846 = vpop.f32.mrf.mxu0
        %v1847 = vadd.f32 0.0, %v1846
        %1848 = vmatmul.f32.gmra.mxu0 %v1782
        %v1849 = vpop.f32.mrf.mxu0
        %v1850 = vadd.f32 0.0, %v1849
        %1851 = vmatmul.f32.gmra.mxu0 %v1785
        %v1852 = vpop.f32.mrf.mxu0
        %v1853 = vadd.f32 0.0, %v1852
        %1854 = vmatmul.f32.gmra.mxu0 %v1788
        %v1855 = vpop.f32.mrf.mxu0
        %v1856 = vadd.f32 0.0, %v1855
        %1857 = vmatmul.f32.gmra.mxu0 %v1791
        %v1858 = vpop.f32.mrf.mxu0
        %v1859 = vadd.f32 0.0, %v1858
        %1860 = vmatmul.f32.gmra.mxu0 %v1794
        %v1861 = vpop.f32.mrf.mxu0
        %v1862 = vadd.f32 0.0, %v1861
        %1863 = vmatmul.f32.gmra.mxu0 %v1797
        %v1864 = vpop.f32.mrf.mxu0
        %v1865 = vadd.f32 0.0, %v1864
        %1866 = vmatmul.f32.gmra.mxu0 %v1800
        %v1867 = vpop.f32.mrf.mxu0
        %v1868 = vadd.f32 0.0, %v1867
        %1869 = vmatmul.f32.gmra.mxu0 %v1803
        %v1870 = vpop.f32.mrf.mxu0
        %v1871 = vadd.f32 0.0, %v1870
        %1872 = vmatmul.f32.gmra.mxu0 %v1806
        %v1873 = vpop.f32.mrf.mxu0
        %v1874 = vadd.f32 0.0, %v1873
        %1875 = vmatmul.f32.gmra.mxu0 %v1809
        %v1876 = vpop.f32.mrf.mxu0
        %v1877 = vadd.f32 0.0, %v1876
        %1878 = vmatmul.f32.gmra.mxu0 %v1812
        %v1879 = vpop.f32.mrf.mxu0
        %v1880 = vadd.f32 0.0, %v1879
        %1881 = vmatmul.f32.gmra.mxu0 %v1815
        %v1882 = vpop.f32.mrf.mxu0
        %v1883 = vadd.f32 0.0, %v1882
        %1884 = vmatmul.f32.gmra.mxu0 %v1818
        %v1885 = vpop.f32.mrf.mxu0
        %v1886 = vadd.f32 0.0, %v1885
        %1887 = vdwg.mxu0
        %v1888 = vmul.f32 %v1838, %v1091
        %v1889 = vmul.f32 %v1841, %v1093
        %v1890 = vmul.f32 %v1844, %v1096
        %v1891 = vmul.f32 %v1847, %v1098
        %v1892 = vmul.f32 %v1850, %v1101
        %v1893 = vmul.f32 %v1853, %v1103
        %v1894 = vmul.f32 %v1856, %v1106
        %v1895 = vmul.f32 %v1859, %v1108
        %v1896 = vmul.f32 %v1862, %v1111
        %v1897 = vmul.f32 %v1865, %v1113
        %v1898 = vmul.f32 %v1868, %v1116
        %v1899 = vmul.f32 %v1871, %v1118
        %v1900 = vmul.f32 %v1874, %v1121
        %v1901 = vmul.f32 %v1877, %v1123
        %v1902 = vmul.f32 %v1880, %v1126
        %v1903 = vmul.f32 %v1883, %v1128
        %v1904 = vmul.f32 %v1886, %v1131
        %1905 = vmatpush.msra.mxu0 %v1903
        %1906 = vmatpush.msra.mxu0 %v1902
        %1907 = vmatpush.msra.mxu0 %v1901
        %1908 = vmatpush.msra.mxu0 %v1900
        %1909 = vmatpush.msra.mxu0 %v1899
        %1910 = vmatpush.msra.mxu0 %v1898
        %1911 = vmatpush.msra.mxu0 %v1897
        %1912 = vmatpush.msra.mxu0 %v1896
        %1913 = vmatpush.msra.mxu0 %v1895
        %1914 = vmatpush.msra.mxu0 %v1894
        %1915 = vmatpush.msra.mxu0 %v1893
        %1916 = vmatpush.msra.mxu0 %v1892
        %1917 = vmatpush.msra.mxu0 %v1891
        %1918 = vmatpush.msra.mxu0 %v1890
        %1919 = vmatpush.msra.mxu0 %v1889
        %1920 = vmatpush.msra.mxu0 %v1888
        %1921 = vmatmul.f32.gmra.mxu0 %v1135
        %v1922 = vpop.f32.mrf.mxu0
        %v1923 = vadd.f32 0.0, %v1922
        %1924 = vdwg.mxu0
        %1925 = vmatpush.msra.mxu0 0.0
        %1926 = vmatpush.msra.mxu0 0.0
        %1927 = vmatpush.msra.mxu0 0.0
        %1928 = vmatpush.msra.mxu0 0.0
        %1929 = vmatpush.msra.mxu0 0.0
        %1930 = vmatpush.msra.mxu0 0.0
        %1931 = vmatpush.msra.mxu0 0.0
        %1932 = vmatpush.msra.mxu0 0.0
        %1933 = vmatpush.msra.mxu0 0.0
        %1934 = vmatpush.msra.mxu0 0.0
        %1935 = vmatpush.msra.mxu0 0.0
        %1936 = vmatpush.msra.mxu0 0.0
        %1937 = vmatpush.msra.mxu0 0.0
        %1938 = vmatpush.msra.mxu0 0.0
        %1939 = vmatpush.msra.mxu0 0.0
        %1940 = vmatpush.msra.mxu0 %v1904
        %1941 = vmatmul.f32.gmra.mxu0 %v1726
        %v1942 = vpop.f32.mrf.mxu0
        %v1943 = vadd.f32 %v1923, %v1942
        %1944 = vdwg.mxu0
        %v1946 = vsel %vm1163, %v1768, 0
        %1948 = vmatpush.msra.mxu0 0.0
        %1949 = vmatpush.msra.mxu0 0.0
        %1950 = vmatpush.msra.mxu0 0.0
        %1951 = vmatpush.msra.mxu0 0.0
        %1952 = vmatpush.msra.mxu0 0.0
        %1953 = vmatpush.msra.mxu0 0.0
        %1954 = vmatpush.msra.mxu0 0.0
        %1955 = vmatpush.msra.mxu0 0.0
        %1956 = vmatpush.msra.mxu0 0.0
        %1957 = vmatpush.msra.mxu0 0.0
        %1958 = vmatpush.msra.mxu0 0.0
        %1959 = vmatpush.msra.mxu0 0.0
        %1960 = vmatpush.msra.mxu0 0.0
        %1961 = vmatpush.msra.mxu0 0.0
        %1962 = vmatpush.msra.mxu0 0.0
        %1963 = vmatpush.msra.mxu0 %v1162
        %1964 = vmatmul.f32.gmra.mxu0 %v1946
        %v1965 = vpop.f32.mrf.mxu0
        %v1966 = vadd.f32 0.0, %v1965
        %1967 = vdwg.mxu0
        %v1968 = vmul.f32 %v1943, %v1966
        %v1969 = vpack.c.bf16 %v1968, %v1968
        %v1970 = vld [vmem:[%s9] sm:$0xf]
        %v1971 = vld [vmem:[%s9 + $0x4] sm:$0xf]
        %v1972 = vld [vmem:[%s9 + $0x8] sm:$0xf]
        %v1973 = vld [vmem:[%s9 + $0xc] sm:$0xf]
        %v1974 = vld [vmem:[%s9 + $0x10] sm:$0xf]
        %v1975 = vld [vmem:[%s9 + $0x14] sm:$0xf]
        %v1976 = vld [vmem:[%s9 + $0x18] sm:$0xf]
        %v1977 = vld [vmem:[%s9 + $0x1c] sm:$0xf]
        %v1978 = vld [vmem:[%s10] sm:$0x1]
        %v1980 = vperm.slane %v1978, 0
        %v1990 = vunpack.c.l.b16 %v1970
        %v1991 = vunpack.c.l.b16 %v1971
        %v1992 = vunpack.c.l.b16 %v1972
        %v1993 = vunpack.c.l.b16 %v1973
        %v1994 = vunpack.c.l.b16 %v1974
        %v1995 = vunpack.c.l.b16 %v1975
        %v1996 = vunpack.c.l.b16 %v1976
        %v1997 = vunpack.c.l.b16 %v1977
        %v1998 = vpack.c.b16 %v1991, %v1990
        %v1999 = vpack.c.b16 %v1993, %v1992
        %v2000 = vpack.c.b16 %v1995, %v1994
        %v2001 = vpack.c.b16 %v1997, %v1996
        %v2007 = vsel %vm711, %v1969, 0
        %2009 = vmatpush.bf16.msra.mxu0 0
        %2010 = vmatpush.bf16.msra.mxu0 0
        %2011 = vmatpush.bf16.msra.mxu0 0
        %2012 = vmatpush.bf16.msra.mxu0 0
        %2013 = vmatpush.bf16.msra.mxu0 %v2001
        %2014 = vmatpush.bf16.msra.mxu0 %v2000
        %2015 = vmatpush.bf16.msra.mxu0 %v1999
        %2016 = vmatpush.bf16.msra.mxu0 %v1998
        %2017 = vmatmul.bf16.gmra.mxu0 %v2007
        %v2018 = vpop.f32.mrf.mxu0
        %v2019 = vadd.f32 %v1980, %v2018
        %v2020 = vpop.f32.mrf.mxu0
        %2021 = vdwg.mxu0
        %2022 = vst [vmem:[%s382] sm:$0xff] %v2019
        %s2023 = sand.u32 %s269, 1
        %s2024 = scalar_lea.sflag [#allocation3], %s2023
        %s2025 = sand.u32 %s269, 1
        %s2026 = smul.addr %s2025, 8
        %s2027 = scalar_lea.vmem [#allocation2], %s2026
        // Predicated region
        $region65: #{tpu_custom_call.1} parent=63 // pred_check
          %p2028 = pneg %p279
        $region66: #{tpu_custom_call.1} parent=63 // pred_check_branch
          %2030 = sbr.rel (%p2028) target = $region68
        $region67: #{tpu_custom_call.1} parent=63 // pred_region
          %2032 = vsyncadd %s2024, 0
          %s2033 = smul.addr %s25, 8
          %s2034 = scalar_lea.hbm %s11, %s2033
          %s2036 = sshll.u32 %s2027, 4
          %s2037 = int_to_ptr.vmem [resolvable:$true] %s2036
          %s2038 = sshll.u32 %s2034, 4
          %s2039 = int_to_ptr.hbm [resolvable:$true] %s2038
          %2041 = dma.vmem_to_hbm [thread:$0]  %s2037, 128, %s2039, %s2024
        $region68: #{tpu_custom_call.1} parent=63 // pred_fallthru
          _
      $region64: #{tpu_custom_call.1} parent=5 // pred_fallthru
        _
      %p2042 = scmp.le.s32.totalorder 2, %s20
      // Predicated region
      $region69: #{tpu_custom_call.1} parent=5 // pred_check
        %p2043 = pneg %p2042
      $region70: #{tpu_custom_call.1} parent=5 // pred_check_branch
        %2045 = sbr.rel (%p2043) target = $region72
      $region71: #{tpu_custom_call.1} parent=5 // pred_region
        %s2046 = ssub.s32 %s20, 2
        // Predicated region
        $region73: #{tpu_custom_call.1} parent=71 // pred_check
          %p2047 = pneg %p285
        $region74: #{tpu_custom_call.1} parent=71 // pred_check_branch
          %2049 = sbr.rel (%p2047) target = $region76
        $region75: #{tpu_custom_call.1} parent=71 // pred_region
          %s2050 = sand.u32 %s270, 1
          %s2051 = scalar_lea.sflag [#allocation3], %s2050
          %s2052 = sand.u32 %s270, 1
          %s2053 = smul.addr %s2052, 8
          %s2054 = scalar_lea.vmem [#allocation2], %s2053
          %2056 = dma.done %s2051, 128
        $region76: #{tpu_custom_call.1} parent=71 // pred_fallthru
          _
      $region72: #{tpu_custom_call.1} parent=5 // pred_fallthru
        _
    $region6: #{tpu_custom_call.1} parent=1 // loop_footer
      %s24 = sadd.s32 1, %s20
    $region7: #{tpu_custom_call.1} parent=1 // loop_footer_branch
      %19 = sbr.rel target = $region3
    $region8: #{tpu_custom_call.1} parent=1 // loop_exit
      _
    %2057 = vsyncpa [#allocation3], 1
    %s2058 = scalar_lea.sflag [#allocation3], 1
    %2059 = vsyncpa %s2058, 1

// kernel: tpu_custom_call.1
$region0: #{tpu_custom_call.1}
  #allocation0 [shape = 'u32[]', space=smem, size = 0x4, offset = 0x4, fixed_abs, tag = 'smem constant byte address 0x4 - core index']
  #allocation1 [shape = 'u32[72,128]{1,0:T(1,128)}', space=vmem, size = 0x9000, scoped, tag = 'internal scratch']
  %s0 = inlined_call_operand.vmem [shape: f32[16,64,16], index: 0, kind: input, shape index: {}]
  %s1 = inlined_call_operand.vmem [shape: f32[1,64], index: 1, kind: input, shape index: {}]
  %s2 = inlined_call_operand.vmem [shape: f32[16,64], index: 2, kind: input, shape index: {}]
  %s3 = inlined_call_operand.vmem [shape: f32[8,136], index: 3, kind: input, shape index: {}]
  %s4 = inlined_call_operand.vmem [shape: f32[136,8], index: 4, kind: input, shape index: {}]
  %s5 = inlined_call_operand.vmem [shape: f32[64,8], index: 5, kind: input, shape index: {}]
  %s6 = inlined_call_operand.vmem [shape: f32[8,64], index: 6, kind: input, shape index: {}]
  %s7 = inlined_call_operand.vmem [shape: bf16[64,192], index: 7, kind: input, shape index: {}]
  %s8 = inlined_call_operand.vmem [shape: f32[1,192], index: 8, kind: input, shape index: {}]
  %s9 = inlined_call_operand.vmem [shape: bf16[64,128], index: 9, kind: input, shape index: {}]
  %s10 = inlined_call_operand.vmem [shape: f32[1,128], index: 10, kind: input, shape index: {}]
  %s11 = inlined_call_operand.hbm [shape: f32[16,128], index: 11, kind: output, shape index: {}]
  %s12 = sld [smem:[#allocation0]]
  $region77: #{tpu_custom_call.1} parent=0
    _
  %s14 = ssub.s32 1, %s12
  %s15 = scalar_select 0, %s14, %s12
  $region1: #{tpu_custom_call.1} parent=0
    #allocation2 [shape = 'u8[8192]{0}', space=vmem, size = 0x2000, scoped, tag = 'output window, operand 0']
    #allocation3 [shape = 's32[2]{0}', space=sflag, size = 0x8, scoped, tag = 'scoped memory for tpu_custom_call.1']
    %16 = vsyncpa [#allocation3], 0
    %s17 = scalar_lea.sflag [#allocation3], 1
    %18 = vsyncpa %s17, 0
    loop: start=0, step=1, limit=4
    $region2: #{tpu_custom_call.1} parent=1 // loop_pre_header
      _
    $region3: #{tpu_custom_call.1} parent=1 // loop_header
      %s20 = sphi 0, %s24
      %p21 = scmp.ge.s32.totalorder %s20, 4
      %s30 = sphi 0, %s32
      %s33 = sphi 0, %s30
      %s34 = sphi 0, %s33
      %s50 = sphi 0, %s34
      %s54 = sphi 0, %s54
      %s56 = sphi 0, %s54
      %s57 = sphi 0, %s56
      %s71 = sphi 0, %s57
      %s75 = sphi 0, %s75
      %s77 = sphi 0, %s75
      %s78 = sphi 0, %s77
      %s92 = sphi 0, %s78
      %s96 = sphi 0, %s96
      %s98 = sphi 0, %s96
      %s99 = sphi 0, %s98
      %s113 = sphi 0, %s99
      %s117 = sphi 0, %s117
      %s119 = sphi 0, %s117
      %s120 = sphi 0, %s119
      %s134 = sphi 0, %s120
      %s138 = sphi 0, %s138
      %s140 = sphi 0, %s138
      %s141 = sphi 0, %s140
      %s155 = sphi 0, %s141
      %s159 = sphi 0, %s159
      %s161 = sphi 0, %s159
      %s162 = sphi 0, %s161
      %s176 = sphi 0, %s162
      %s180 = sphi 0, %s180
      %s182 = sphi 0, %s180
      %s183 = sphi 0, %s182
      %s197 = sphi 0, %s183
      %s201 = sphi 0, %s201
      %s203 = sphi 0, %s201
      %s204 = sphi 0, %s203
      %s218 = sphi 0, %s204
      %s222 = sphi 0, %s222
      %s224 = sphi 0, %s222
      %s225 = sphi 0, %s224
      %s239 = sphi 0, %s225
      %s243 = sphi 0, %s243
      %s245 = sphi 0, %s243
      %s246 = sphi 0, %s245
      %s260 = sphi 0, %s246
      %s266 = sphi 0, %s268
      %s269 = sphi 0, %s266
      %s270 = sphi 0, %s269
      %s286 = sphi 0, %s270
    $region4: #{tpu_custom_call.1} parent=1 // loop_header_branch
      %23 = sbr.rel (%p21) target = $region8
    $region5: #{tpu_custom_call.1} parent=1 // loop_body
      %s25 = ssub.s32 %s20, 1
      %s26 = ssub.s32 %s20, 2
      %s27 = sadd.s32 %s20, 1
      %s28 = ssub.s32 %s20, %s27
      %p29 = scmp.eq.s32.totalorder %s28, 0
      %s31 = sadd.s32 %s30, 1
      %s32 = scalar_select %p29, %s30, %s31
      %p35 = pneg %p29
      %p36 = scmp.eq.s32.totalorder %s20, 1
      %p37 = por %p35, %p36
      %p38 = scmp.ne.s32.totalorder %s30, %s33
      %p39 = scmp.eq.s32.totalorder %s20, 0
      %p40 = por %p38, %p39
      %p41 = scmp.ne.s32.totalorder %s30, %s33
      %p42 = scmp.eq.s32.totalorder %s25, 1
      %p43 = por %p41, %p42
      %p44 = scmp.ne.s32.totalorder %s33, %s34
      %p45 = scmp.eq.s32.totalorder %s25, 0
      %p46 = por %p44, %p45
      %p47 = scmp.ne.s32.totalorder %s33, %s34
      %p48 = scmp.eq.s32.totalorder %s26, 1
      %p49 = por %p47, %p48
      %p51 = scmp.ne.s32.totalorder %s34, %s50
      %p52 = scmp.eq.s32.totalorder %s26, 0
      %p53 = por %p51, %p52
      %s55 = sadd.s32 %s54, 1
      %p58 = scmp.eq.s32.totalorder %s20, 1
      %p59 = scmp.ne.s32.totalorder %s54, %s56
      %p60 = scmp.eq.s32.totalorder %s20, 0
      %p61 = por %p59, %p60
      %p62 = scmp.ne.s32.totalorder %s54, %s56
      %p63 = scmp.eq.s32.totalorder %s25, 1
      %p64 = por %p62, %p63
      %p65 = scmp.ne.s32.totalorder %s56, %s57
      %p66 = scmp.eq.s32.totalorder %s25, 0
      %p67 = por %p65, %p66
      %p68 = scmp.ne.s32.totalorder %s56, %s57
      %p69 = scmp.eq.s32.totalorder %s26, 1
      %p70 = por %p68, %p69
      %p72 = scmp.ne.s32.totalorder %s57, %s71
      %p73 = scmp.eq.s32.totalorder %s26, 0
      %p74 = por %p72, %p73
      %s76 = sadd.s32 %s75, 1
      %p79 = scmp.eq.s32.totalorder %s20, 1
      %p80 = scmp.ne.s32.totalorder %s75, %s77
      %p81 = scmp.eq.s32.totalorder %s20, 0
      %p82 = por %p80, %p81
      %p83 = scmp.ne.s32.totalorder %s75, %s77
      %p84 = scmp.eq.s32.totalorder %s25, 1
      %p85 = por %p83, %p84
      %p86 = scmp.ne.s32.totalorder %s77, %s78
      %p87 = scmp.eq.s32.totalorder %s25, 0
      %p88 = por %p86, %p87
      %p89 = scmp.ne.s32.totalorder %s77, %s78
      %p90 = scmp.eq.s32.totalorder %s26, 1
      %p91 = por %p89, %p90
      %p93 = scmp.ne.s32.totalorder %s78, %s92
      %p94 = scmp.eq.s32.totalorder %s26, 0
      %p95 = por %p93, %p94
      %s97 = sadd.s32 %s96, 1
      %p100 = scmp.eq.s32.totalorder %s20, 1
      %p101 = scmp.ne.s32.totalorder %s96, %s98
      %p102 = scmp.eq.s32.totalorder %s20, 0
      %p103 = por %p101, %p102
      %p104 = scmp.ne.s32.totalorder %s96, %s98
      %p105 = scmp.eq.s32.totalorder %s25, 1
      %p106 = por %p104, %p105
      %p107 = scmp.ne.s32.totalorder %s98, %s99
      %p108 = scmp.eq.s32.totalorder %s25, 0
      %p109 = por %p107, %p108
      %p110 = scmp.ne.s32.totalorder %s98, %s99
      %p111 = scmp.eq.s32.totalorder %s26, 1
      %p112 = por %p110, %p111
      %p114 = scmp.ne.s32.totalorder %s99, %s113
      %p115 = scmp.eq.s32.totalorder %s26, 0
      %p116 = por %p114, %p115
      %s118 = sadd.s32 %s117, 1
      %p121 = scmp.eq.s32.totalorder %s20, 1
      %p122 = scmp.ne.s32.totalorder %s117, %s119
      %p123 = scmp.eq.s32.totalorder %s20, 0
      %p124 = por %p122, %p123
      %p125 = scmp.ne.s32.totalorder %s117, %s119
      %p126 = scmp.eq.s32.totalorder %s25, 1
      %p127 = por %p125, %p126
      %p128 = scmp.ne.s32.totalorder %s119, %s120
      %p129 = scmp.eq.s32.totalorder %s25, 0
      %p130 = por %p128, %p129
      %p131 = scmp.ne.s32.totalorder %s119, %s120
      %p132 = scmp.eq.s32.totalorder %s26, 1
      %p133 = por %p131, %p132
      %p135 = scmp.ne.s32.totalorder %s120, %s134
      %p136 = scmp.eq.s32.totalorder %s26, 0
      %p137 = por %p135, %p136
      %s139 = sadd.s32 %s138, 1
      %p142 = scmp.eq.s32.totalorder %s20, 1
      %p143 = scmp.ne.s32.totalorder %s138, %s140
      %p144 = scmp.eq.s32.totalorder %s20, 0
      %p145 = por %p143, %p144
      %p146 = scmp.ne.s32.totalorder %s138, %s140
      %p147 = scmp.eq.s32.totalorder %s25, 1
      %p148 = por %p146, %p147
      %p149 = scmp.ne.s32.totalorder %s140, %s141
      %p150 = scmp.eq.s32.totalorder %s25, 0
      %p151 = por %p149, %p150
      %p152 = scmp.ne.s32.totalorder %s140, %s141
      %p153 = scmp.eq.s32.totalorder %s26, 1
      %p154 = por %p152, %p153
      %p156 = scmp.ne.s32.totalorder %s141, %s155
      %p157 = scmp.eq.s32.totalorder %s26, 0
      %p158 = por %p156, %p157
      %s160 = sadd.s32 %s159, 1
      %p163 = scmp.eq.s32.totalorder %s20, 1
      %p164 = scmp.ne.s32.totalorder %s159, %s161
      %p165 = scmp.eq.s32.totalorder %s20, 0
      %p166 = por %p164, %p165
      %p167 = scmp.ne.s32.totalorder %s159, %s161
      %p168 = scmp.eq.s32.totalorder %s25, 1
      %p169 = por %p167, %p168
      %p170 = scmp.ne.s32.totalorder %s161, %s162
      %p171 = scmp.eq.s32.totalorder %s25, 0
      %p172 = por %p170, %p171
      %p173 = scmp.ne.s32.totalorder %s161, %s162
      %p174 = scmp.eq.s32.totalorder %s26, 1
      %p175 = por %p173, %p174
      %p177 = scmp.ne.s32.totalorder %s162, %s176
      %p178 = scmp.eq.s32.totalorder %s26, 0
      %p179 = por %p177, %p178
      %s181 = sadd.s32 %s180, 1
      %p184 = scmp.eq.s32.totalorder %s20, 1
      %p185 = scmp.ne.s32.totalorder %s180, %s182
      %p186 = scmp.eq.s32.totalorder %s20, 0
      %p187 = por %p185, %p186
      %p188 = scmp.ne.s32.totalorder %s180, %s182
      %p189 = scmp.eq.s32.totalorder %s25, 1
      %p190 = por %p188, %p189
      %p191 = scmp.ne.s32.totalorder %s182, %s183
      %p192 = scmp.eq.s32.totalorder %s25, 0
      %p193 = por %p191, %p192
      %p194 = scmp.ne.s32.totalorder %s182, %s183
      %p195 = scmp.eq.s32.totalorder %s26, 1
      %p196 = por %p194, %p195
      %p198 = scmp.ne.s32.totalorder %s183, %s197
      %p199 = scmp.eq.s32.totalorder %s26, 0
      %p200 = por %p198, %p199
      %s202 = sadd.s32 %s201, 1
      %p205 = scmp.eq.s32.totalorder %s20, 1
      %p206 = scmp.ne.s32.totalorder %s201, %s203
      %p207 = scmp.eq.s32.totalorder %s20, 0
      %p208 = por %p206, %p207
      %p209 = scmp.ne.s32.totalorder %s201, %s203
      %p210 = scmp.eq.s32.totalorder %s25, 1
      %p211 = por %p209, %p210
      %p212 = scmp.ne.s32.totalorder %s203, %s204
      %p213 = scmp.eq.s32.totalorder %s25, 0
      %p214 = por %p212, %p213
      %p215 = scmp.ne.s32.totalorder %s203, %s204
      %p216 = scmp.eq.s32.totalorder %s26, 1
      %p217 = por %p215, %p216
      %p219 = scmp.ne.s32.totalorder %s204, %s218
      %p220 = scmp.eq.s32.totalorder %s26, 0
      %p221 = por %p219, %p220
      %s223 = sadd.s32 %s222, 1
      %p226 = scmp.eq.s32.totalorder %s20, 1
      %p227 = scmp.ne.s32.totalorder %s222, %s224
      %p228 = scmp.eq.s32.totalorder %s20, 0
      %p229 = por %p227, %p228
      %p230 = scmp.ne.s32.totalorder %s222, %s224
      %p231 = scmp.eq.s32.totalorder %s25, 1
      %p232 = por %p230, %p231
      %p233 = scmp.ne.s32.totalorder %s224, %s225
      %p234 = scmp.eq.s32.totalorder %s25, 0
      %p235 = por %p233, %p234
      %p236 = scmp.ne.s32.totalorder %s224, %s225
      %p237 = scmp.eq.s32.totalorder %s26, 1
      %p238 = por %p236, %p237
      %p240 = scmp.ne.s32.totalorder %s225, %s239
      %p241 = scmp.eq.s32.totalorder %s26, 0
      %p242 = por %p240, %p241
      %s244 = sadd.s32 %s243, 1
      %p247 = scmp.eq.s32.totalorder %s20, 1
      %p248 = scmp.ne.s32.totalorder %s243, %s245
      %p249 = scmp.eq.s32.totalorder %s20, 0
      %p250 = por %p248, %p249
      %p251 = scmp.ne.s32.totalorder %s243, %s245
      %p252 = scmp.eq.s32.totalorder %s25, 1
      %p253 = por %p251, %p252
      %p254 = scmp.ne.s32.totalorder %s245, %s246
      %p255 = scmp.eq.s32.totalorder %s25, 0
      %p256 = por %p254, %p255
      %p257 = scmp.ne.s32.totalorder %s245, %s246
      %p258 = scmp.eq.s32.totalorder %s26, 1
      %p259 = por %p257, %p258
      %p261 = scmp.ne.s32.totalorder %s246, %s260
      %p262 = scmp.eq.s32.totalorder %s26, 0
      %p263 = por %p261, %p262
      %s264 = ssub.s32 %s20, %s27
      %p265 = scmp.eq.s32.totalorder %s264, 0
      %s267 = sadd.s32 %s266, 1
      %s268 = scalar_select %p265, %s266, %s267
      %p271 = pneg %p265
      %p272 = scmp.eq.s32.totalorder %s20, 1
      %p273 = por %p271, %p272
      %p274 = scmp.ne.s32.totalorder %s266, %s269
      %p275 = scmp.eq.s32.totalorder %s20, 0
      %p276 = por %p274, %p275
      %p277 = scmp.ne.s32.totalorder %s266, %s269
      %p278 = scmp.eq.s32.totalorder %s25, 1
      %p279 = por %p277, %p278
      %p280 = scmp.ne.s32.totalorder %s269, %s270
      %p281 = scmp.eq.s32.totalorder %s25, 0
      %p282 = por %p280, %p281
      %p283 = scmp.ne.s32.totalorder %s269, %s270
      %p284 = scmp.eq.s32.totalorder %s26, 1
      %p285 = por %p283, %p284
      %p287 = scmp.ne.s32.totalorder %s270, %s286
      %p288 = scmp.eq.s32.totalorder %s26, 0
      %p289 = por %p287, %p288
      %p290 = scmp.le.s32.totalorder 1, %s20
      %p291 = scmp.lt.s32.totalorder %s20, 3
      %p292 = pnand %p290, %p291
      %p293 = pneg %p292
      // Predicated region
      $region9: #{tpu_custom_call.1} parent=5 // pred_check
        _
      $region10: #{tpu_custom_call.1} parent=5 // pred_check_branch
        %295 = sbr.rel (%p292) target = $region12
      $region11: #{tpu_custom_call.1} parent=5 // pred_region
        %s296 = ssub.s32 %s20, 1
        // Predicated region
        $region13: #{tpu_custom_call.1} parent=11 // pred_check
          %p297 = pneg %p67
        $region14: #{tpu_custom_call.1} parent=11 // pred_check_branch
          %299 = sbr.rel (%p297) target = $region16
        $region15: #{tpu_custom_call.1} parent=11 // pred_region
          _
        $region16: #{tpu_custom_call.1} parent=11 // pred_fallthru
          _
        // Predicated region
        $region17: #{tpu_custom_call.1} parent=11 // pred_check
          %p300 = pneg %p88
        $region18: #{tpu_custom_call.1} parent=11 // pred_check_branch
          %302 = sbr.rel (%p300) target = $region20
        $region19: #{tpu_custom_call.1} parent=11 // pred_region
          _
        $region20: #{tpu_custom_call.1} parent=11 // pred_fallthru
          _
        // Predicated region
        $region21: #{tpu_custom_call.1} parent=11 // pred_check
          %p303 = pneg %p109
        $region22: #{tpu_custom_call.1} parent=11 // pred_check_branch
          %305 = sbr.rel (%p303) target = $region24
        $region23: #{tpu_custom_call.1} parent=11 // pred_region
          _
        $region24: #{tpu_custom_call.1} parent=11 // pred_fallthru
          _
        // Predicated region
        $region25: #{tpu_custom_call.1} parent=11 // pred_check
          %p306 = pneg %p130
        $region26: #{tpu_custom_call.1} parent=11 // pred_check_branch
          %308 = sbr.rel (%p306) target = $region28
        $region27: #{tpu_custom_call.1} parent=11 // pred_region
          _
        $region28: #{tpu_custom_call.1} parent=11 // pred_fallthru
          _
        // Predicated region
        $region29: #{tpu_custom_call.1} parent=11 // pred_check
          %p309 = pneg %p151
        $region30: #{tpu_custom_call.1} parent=11 // pred_check_branch
          %311 = sbr.rel (%p309) target = $region32
        $region31: #{tpu_custom_call.1} parent=11 // pred_region
          _
        $region32: #{tpu_custom_call.1} parent=11 // pred_fallthru
          _
        // Predicated region
        $region33: #{tpu_custom_call.1} parent=11 // pred_check
          %p312 = pneg %p172
        $region34: #{tpu_custom_call.1} parent=11 // pred_check_branch
          %314 = sbr.rel (%p312) target = $region36
        $region35: #{tpu_custom_call.1} parent=11 // pred_region
          _
        $region36: #{tpu_custom_call.1} parent=11 // pred_fallthru
          _
        // Predicated region
        $region37: #{tpu_custom_call.1} parent=11 // pred_check
          %p315 = pneg %p193
        $region38: #{tpu_custom_call.1} parent=11 // pred_check_branch
          %317 = sbr.rel (%p315) target = $region40
        $region39: #{tpu_custom_call.1} parent=11 // pred_region
          _
        $region40: #{tpu_custom_call.1} parent=11 // pred_fallthru
          _
        // Predicated region
        $region41: #{tpu_custom_call.1} parent=11 // pred_check
          %p318 = pneg %p214
        $region42: #{tpu_custom_call.1} parent=11 // pred_check_branch
          %320 = sbr.rel (%p318) target = $region44
        $region43: #{tpu_custom_call.1} parent=11 // pred_region
          _
        $region44: #{tpu_custom_call.1} parent=11 // pred_fallthru
          _
        // Predicated region
        $region45: #{tpu_custom_call.1} parent=11 // pred_check
          %p321 = pneg %p235
        $region46: #{tpu_custom_call.1} parent=11 // pred_check_branch
          %323 = sbr.rel (%p321) target = $region48
        $region47: #{tpu_custom_call.1} parent=11 // pred_region
          _
        $region48: #{tpu_custom_call.1} parent=11 // pred_fallthru
          _
        // Predicated region
        $region49: #{tpu_custom_call.1} parent=11 // pred_check
          %p324 = pneg %p256
        $region50: #{tpu_custom_call.1} parent=11 // pred_check_branch
          %326 = sbr.rel (%p324) target = $region52
        $region51: #{tpu_custom_call.1} parent=11 // pred_region
          _
        $region52: #{tpu_custom_call.1} parent=11 // pred_fallthru
          _
      $region12: #{tpu_custom_call.1} parent=5 // pred_fallthru
        _
      %p327 = scmp.lt.s32.totalorder %s20, 2
      // Predicated region
      $region53: #{tpu_custom_call.1} parent=5 // pred_check
        %p328 = pneg %p327
      $region54: #{tpu_custom_call.1} parent=5 // pred_check_branch
        %330 = sbr.rel (%p328) target = $region56
      $region55: #{tpu_custom_call.1} parent=5 // pred_region
        // Predicated region
        $region57: #{tpu_custom_call.1} parent=55 // pred_check
          %p331 = pneg %p40
        $region58: #{tpu_custom_call.1} parent=55 // pred_check_branch
          %333 = sbr.rel (%p331) target = $region60
        $region59: #{tpu_custom_call.1} parent=55 // pred_region
          %s334 = smul.u32 8, %s20
          %p335 = scmp.lt.s32.totalorder %s334, 15
          %s336 = scalar_select %p335, %s334, 15
          %s337 = smul.addr %s336, 8
          %s338 = smul.addr %s337, 8
          %s339 = scalar_lea.vmem %s0, %s338
          %s340 = smul.u32 8, %s20
        $region60: #{tpu_custom_call.1} parent=55 // pred_fallthru
          _
      $region56: #{tpu_custom_call.1} parent=5 // pred_fallthru
        _
      %p341 = scmp.le.s32.totalorder 1, %s20
      %p342 = scmp.lt.s32.totalorder %s20, 3
      %p343 = pnand %p341, %p342
      %p344 = pneg %p343
      // Predicated region
      $region61: #{tpu_custom_call.1} parent=5 // pred_check
        _
      $region62: #{tpu_custom_call.1} parent=5 // pred_check_branch
        %346 = sbr.rel (%p343) target = $region64
      $region63: #{tpu_custom_call.1} parent=5 // pred_region
        %s347 = ssub.s32 %s20, 1
        %s348 = smul.u32 8, %s25
        %p349 = scmp.lt.s32.totalorder %s348, 15
        %s350 = scalar_select %p349, %s348, 15
        %s351 = smul.addr %s350, 8
        %s352 = smul.addr %s351, 8
        %s353 = scalar_lea.vmem %s0, %s352
        %p354 = pneg %p46
        %p355 = pneg %p43
        %p356 = pneg %p67
        %p357 = pneg %p64
        %p358 = pneg %p88
        %p359 = pneg %p85
        %p360 = pneg %p109
        %p361 = pneg %p106
        %p362 = pneg %p130
        %p363 = pneg %p127
        %p364 = pneg %p151
        %p365 = pneg %p148
        %p366 = pneg %p172
        %p367 = pneg %p169
        %p368 = pneg %p193
        %p369 = pneg %p190
        %p370 = pneg %p214
        %p371 = pneg %p211
        %p372 = pneg %p235
        %p373 = pneg %p232
        %p374 = pneg %p256
        %p375 = pneg %p253
        %p376 = pneg %p282
        %p377 = pneg %p279
        %s378 = sand.u32 %s269, 1
        %s379 = scalar_lea.sflag [#allocation3], %s378
        %s380 = sand.u32 %s269, 1
        %s381 = smul.addr %s380, 8
        %s382 = scalar_lea.vmem [#allocation2], %s381
        %s383 = smul.u32 8, %s25
        %p384 = scmp.lt.s32.totalorder %s383, 15
        %s385 = scalar_select %p384, %s383, 15
        %s386 = smul.addr %s385, 8
        %s387 = smul.addr %s386, 8
        %s388 = scalar_lea.vmem %s0, %s387
        %s389 = smul.u32 8, %s25
        %v391 = vld [vmem:[%s388] sm:$0xff]
        %v392 = vld [vmem:[%s388 + $0x8] sm:$0xff]
        %v393 = vld [vmem:[%s388 + $0x10] sm:$0xff]
        %v394 = vld [vmem:[%s388 + $0x18] sm:$0xff]
        %v395 = vld [vmem:[%s388 + $0x20] sm:$0xff]
        %v396 = vld [vmem:[%s388 + $0x28] sm:$0xff]
        %v397 = vld [vmem:[%s388 + $0x30] sm:$0xff]
        %v398 = vld [vmem:[%s388 + $0x38] sm:$0xff]
        %v399 = vld [vmem:[%s388 + $0x40] sm:$0xff]
        %v400 = vld [vmem:[%s388 + $0x48] sm:$0xff]
        %v401 = vld [vmem:[%s388 + $0x50] sm:$0xff]
        %v402 = vld [vmem:[%s388 + $0x58] sm:$0xff]
        %v403 = vld [vmem:[%s388 + $0x60] sm:$0xff]
        %v404 = vld [vmem:[%s388 + $0x68] sm:$0xff]
        %v405 = vld [vmem:[%s388 + $0x70] sm:$0xff]
        %v406 = vld [vmem:[%s388 + $0x78] sm:$0xff]
        %v407 = vld [vmem:[%s388 + $0x80] sm:$0xff]
        %v408 = vld [vmem:[%s388 + $0x88] sm:$0xff]
        %v409 = vld [vmem:[%s388 + $0x90] sm:$0xff]
        %v410 = vld [vmem:[%s388 + $0x98] sm:$0xff]
        %v411 = vld [vmem:[%s388 + $0xa0] sm:$0xff]
        %v412 = vld [vmem:[%s388 + $0xa8] sm:$0xff]
        %v413 = vld [vmem:[%s388 + $0xb0] sm:$0xff]
        %v414 = vld [vmem:[%s388 + $0xb8] sm:$0xff]
        %v415 = vld [vmem:[%s388 + $0xc0] sm:$0xff]
        %v416 = vld [vmem:[%s388 + $0xc8] sm:$0xff]
        %v417 = vld [vmem:[%s388 + $0xd0] sm:$0xff]
        %v418 = vld [vmem:[%s388 + $0xd8] sm:$0xff]
        %v419 = vld [vmem:[%s388 + $0xe0] sm:$0xff]
        %v420 = vld [vmem:[%s388 + $0xe8] sm:$0xff]
        %v421 = vld [vmem:[%s388 + $0xf0] sm:$0xff]
        %v422 = vld [vmem:[%s388 + $0xf8] sm:$0xff]
        %v423 = vld [vmem:[%s388 + $0x100] sm:$0xff]
        %v424 = vld [vmem:[%s388 + $0x108] sm:$0xff]
        %v425 = vld [vmem:[%s388 + $0x110] sm:$0xff]
        %v426 = vld [vmem:[%s388 + $0x118] sm:$0xff]
        %v427 = vld [vmem:[%s388 + $0x120] sm:$0xff]
        %v428 = vld [vmem:[%s388 + $0x128] sm:$0xff]
        %v429 = vld [vmem:[%s388 + $0x130] sm:$0xff]
        %v430 = vld [vmem:[%s388 + $0x138] sm:$0xff]
        %v431 = vld [vmem:[%s388 + $0x140] sm:$0xff]
        %v432 = vld [vmem:[%s388 + $0x148] sm:$0xff]
        %v433 = vld [vmem:[%s388 + $0x150] sm:$0xff]
        %v434 = vld [vmem:[%s388 + $0x158] sm:$0xff]
        %v435 = vld [vmem:[%s388 + $0x160] sm:$0xff]
        %v436 = vld [vmem:[%s388 + $0x168] sm:$0xff]
        %v437 = vld [vmem:[%s388 + $0x170] sm:$0xff]
        %v438 = vld [vmem:[%s388 + $0x178] sm:$0xff]
        %v439 = vld [vmem:[%s388 + $0x180] sm:$0xff]
        %v440 = vld [vmem:[%s388 + $0x188] sm:$0xff]
        %v441 = vld [vmem:[%s388 + $0x190] sm:$0xff]
        %v442 = vld [vmem:[%s388 + $0x198] sm:$0xff]
        %v443 = vld [vmem:[%s388 + $0x1a0] sm:$0xff]
        %v444 = vld [vmem:[%s388 + $0x1a8] sm:$0xff]
        %v445 = vld [vmem:[%s388 + $0x1b0] sm:$0xff]
        %v446 = vld [vmem:[%s388 + $0x1b8] sm:$0xff]
        %v447 = vld [vmem:[%s388 + $0x1c0] sm:$0xff]
        %v448 = vld [vmem:[%s388 + $0x1c8] sm:$0xff]
        %v449 = vld [vmem:[%s388 + $0x1d0] sm:$0xff]
        %v450 = vld [vmem:[%s388 + $0x1d8] sm:$0xff]
        %v451 = vld [vmem:[%s388 + $0x1e0] sm:$0xff]
        %v452 = vld [vmem:[%s388 + $0x1e8] sm:$0xff]
        %v453 = vld [vmem:[%s388 + $0x1f0] sm:$0xff]
        %v454 = vld [vmem:[%s388 + $0x1f8] sm:$0xff]
        %455 = vxpose.xlu0.b32.start [1/16] %v391, 128
        %456 = vxpose.xlu0.b32.cont [2/16] %v392, 128
        %457 = vxpose.xlu0.b32.cont [3/16] %v393, 128
        %458 = vxpose.xlu0.b32.cont [4/16] %v394, 128
        %459 = vxpose.xlu0.b32.cont [5/16] %v395, 128
        %460 = vxpose.xlu0.b32.cont [6/16] %v396, 128
        %461 = vxpose.xlu0.b32.cont [7/16] %v397, 128
        %462 = vxpose.xlu0.b32.cont [8/16] %v398, 128
        %463 = vxpose.xlu0.b32.cont [9/16] 0.0, 128
        %464 = vxpose.xlu0.b32.cont [10/16] 0.0, 128
        %465 = vxpose.xlu0.b32.cont [11/16] 0.0, 128
        %466 = vxpose.xlu0.b32.cont [12/16] 0.0, 128
        %467 = vxpose.xlu0.b32.cont [13/16] 0.0, 128
        %468 = vxpose.xlu0.b32.cont [14/16] 0.0, 128
        %469 = vxpose.xlu0.b32.cont [15/16] 0.0, 128
        %470 = vxpose.xlu0.b32.end [16/16] 0.0, 128
        %v471 = vpop.trf.xlu0
        %v472 = vpop.trf.xlu0
        %v473 = vpop.trf.xlu0
        %v474 = vpop.trf.xlu0
        %v475 = vpop.trf.xlu0
        %v476 = vpop.trf.xlu0
        %v477 = vpop.trf.xlu0
        %v478 = vpop.trf.xlu0
        %v479 = vpop.trf.xlu0
        %v480 = vpop.trf.xlu0
        %v481 = vpop.trf.xlu0
        %v482 = vpop.trf.xlu0
        %v483 = vpop.trf.xlu0
        %v484 = vpop.trf.xlu0
        %v485 = vpop.trf.xlu0
        %v486 = vpop.trf.xlu0
        %487 = vxpose.xlu0.b32.start [1/16] %v399, 128
        %488 = vxpose.xlu0.b32.cont [2/16] %v400, 128
        %489 = vxpose.xlu0.b32.cont [3/16] %v401, 128
        %490 = vxpose.xlu0.b32.cont [4/16] %v402, 128
        %491 = vxpose.xlu0.b32.cont [5/16] %v403, 128
        %492 = vxpose.xlu0.b32.cont [6/16] %v404, 128
        %493 = vxpose.xlu0.b32.cont [7/16] %v405, 128
        %494 = vxpose.xlu0.b32.cont [8/16] %v406, 128
        %495 = vxpose.xlu0.b32.cont [9/16] 0.0, 128
        %496 = vxpose.xlu0.b32.cont [10/16] 0.0, 128
        %497 = vxpose.xlu0.b32.cont [11/16] 0.0, 128
        %498 = vxpose.xlu0.b32.cont [12/16] 0.0, 128
        %499 = vxpose.xlu0.b32.cont [13/16] 0.0, 128
        %500 = vxpose.xlu0.b32.cont [14/16] 0.0, 128
        %501 = vxpose.xlu0.b32.cont [15/16] 0.0, 128
        %502 = vxpose.xlu0.b32.end [16/16] 0.0, 128
        %v503 = vpop.trf.xlu0
        %v504 = vpop.trf.xlu0
        %v505 = vpop.trf.xlu0
        %v506 = vpop.trf.xlu0
        %v507 = vpop.trf.xlu0
        %v508 = vpop.trf.xlu0
        %v509 = vpop.trf.xlu0
        %v510 = vpop.trf.xlu0
        %v511 = vpop.trf.xlu0
        %v512 = vpop.trf.xlu0
        %v513 = vpop.trf.xlu0
        %v514 = vpop.trf.xlu0
        %v515 = vpop.trf.xlu0
        %v516 = vpop.trf.xlu0
        %v517 = vpop.trf.xlu0
        %v518 = vpop.trf.xlu0
        %519 = vxpose.xlu0.b32.start [1/16] %v407, 128
        %520 = vxpose.xlu0.b32.cont [2/16] %v408, 128
        %521 = vxpose.xlu0.b32.cont [3/16] %v409, 128
        %522 = vxpose.xlu0.b32.cont [4/16] %v410, 128
        %523 = vxpose.xlu0.b32.cont [5/16] %v411, 128
        %524 = vxpose.xlu0.b32.cont [6/16] %v412, 128
        %525 = vxpose.xlu0.b32.cont [7/16] %v413, 128
        %526 = vxpose.xlu0.b32.cont [8/16] %v414, 128
        %527 = vxpose.xlu0.b32.cont [9/16] 0.0, 128
        %528 = vxpose.xlu0.b32.cont [10/16] 0.0, 128
        %529 = vxpose.xlu0.b32.cont [11/16] 0.0, 128
        %530 = vxpose.xlu0.b32.cont [12/16] 0.0, 128
        %531 = vxpose.xlu0.b32.cont [13/16] 0.0, 128
        %532 = vxpose.xlu0.b32.cont [14/16] 0.0, 128
        %533 = vxpose.xlu0.b32.cont [15/16] 0.0, 128
        %534 = vxpose.xlu0.b32.end [16/16] 0.0, 128
        %v535 = vpop.trf.xlu0
        %v536 = vpop.trf.xlu0
        %v537 = vpop.trf.xlu0
        %v538 = vpop.trf.xlu0
        %v539 = vpop.trf.xlu0
        %v540 = vpop.trf.xlu0
        %v541 = vpop.trf.xlu0
        %v542 = vpop.trf.xlu0
        %v543 = vpop.trf.xlu0
        %v544 = vpop.trf.xlu0
        %v545 = vpop.trf.xlu0
        %v546 = vpop.trf.xlu0
        %v547 = vpop.trf.xlu0
        %v548 = vpop.trf.xlu0
        %v549 = vpop.trf.xlu0
        %v550 = vpop.trf.xlu0
        %551 = vxpose.xlu0.b32.start [1/16] %v415, 128
        %552 = vxpose.xlu0.b32.cont [2/16] %v416, 128
        %553 = vxpose.xlu0.b32.cont [3/16] %v417, 128
        %554 = vxpose.xlu0.b32.cont [4/16] %v418, 128
        %555 = vxpose.xlu0.b32.cont [5/16] %v419, 128
        %556 = vxpose.xlu0.b32.cont [6/16] %v420, 128
        %557 = vxpose.xlu0.b32.cont [7/16] %v421, 128
        %558 = vxpose.xlu0.b32.cont [8/16] %v422, 128
        %559 = vxpose.xlu0.b32.cont [9/16] 0.0, 128
        %560 = vxpose.xlu0.b32.cont [10/16] 0.0, 128
        %561 = vxpose.xlu0.b32.cont [11/16] 0.0, 128
        %562 = vxpose.xlu0.b32.cont [12/16] 0.0, 128
        %563 = vxpose.xlu0.b32.cont [13/16] 0.0, 128
        %564 = vxpose.xlu0.b32.cont [14/16] 0.0, 128
        %565 = vxpose.xlu0.b32.cont [15/16] 0.0, 128
        %566 = vxpose.xlu0.b32.end [16/16] 0.0, 128
        %v567 = vpop.trf.xlu0
        %v568 = vpop.trf.xlu0
        %v569 = vpop.trf.xlu0
        %v570 = vpop.trf.xlu0
        %v571 = vpop.trf.xlu0
        %v572 = vpop.trf.xlu0
        %v573 = vpop.trf.xlu0
        %v574 = vpop.trf.xlu0
        %v575 = vpop.trf.xlu0
        %v576 = vpop.trf.xlu0
        %v577 = vpop.trf.xlu0
        %v578 = vpop.trf.xlu0
        %v579 = vpop.trf.xlu0
        %v580 = vpop.trf.xlu0
        %v581 = vpop.trf.xlu0
        %v582 = vpop.trf.xlu0
        %583 = vxpose.xlu0.b32.start [1/16] %v423, 128
        %584 = vxpose.xlu0.b32.cont [2/16] %v424, 128
        %585 = vxpose.xlu0.b32.cont [3/16] %v425, 128
        %586 = vxpose.xlu0.b32.cont [4/16] %v426, 128
        %587 = vxpose.xlu0.b32.cont [5/16] %v427, 128
        %588 = vxpose.xlu0.b32.cont [6/16] %v428, 128
        %589 = vxpose.xlu0.b32.cont [7/16] %v429, 128
        %590 = vxpose.xlu0.b32.cont [8/16] %v430, 128
        %591 = vxpose.xlu0.b32.cont [9/16] 0.0, 128
        %592 = vxpose.xlu0.b32.cont [10/16] 0.0, 128
        %593 = vxpose.xlu0.b32.cont [11/16] 0.0, 128
        %594 = vxpose.xlu0.b32.cont [12/16] 0.0, 128
        %595 = vxpose.xlu0.b32.cont [13/16] 0.0, 128
        %596 = vxpose.xlu0.b32.cont [14/16] 0.0, 128
        %597 = vxpose.xlu0.b32.cont [15/16] 0.0, 128
        %598 = vxpose.xlu0.b32.end [16/16] 0.0, 128
        %v599 = vpop.trf.xlu0
        %v600 = vpop.trf.xlu0
        %v601 = vpop.trf.xlu0
        %v602 = vpop.trf.xlu0
        %v603 = vpop.trf.xlu0
        %v604 = vpop.trf.xlu0
        %v605 = vpop.trf.xlu0
        %v606 = vpop.trf.xlu0
        %v607 = vpop.trf.xlu0
        %v608 = vpop.trf.xlu0
        %v609 = vpop.trf.xlu0
        %v610 = vpop.trf.xlu0
        %v611 = vpop.trf.xlu0
        %v612 = vpop.trf.xlu0
        %v613 = vpop.trf.xlu0
        %v614 = vpop.trf.xlu0
        %615 = vxpose.xlu0.b32.start [1/16] %v431, 128
        %616 = vxpose.xlu0.b32.cont [2/16] %v432, 128
        %617 = vxpose.xlu0.b32.cont [3/16] %v433, 128
        %618 = vxpose.xlu0.b32.cont [4/16] %v434, 128
        %619 = vxpose.xlu0.b32.cont [5/16] %v435, 128
        %620 = vxpose.xlu0.b32.cont [6/16] %v436, 128
        %621 = vxpose.xlu0.b32.cont [7/16] %v437, 128
        %622 = vxpose.xlu0.b32.cont [8/16] %v438, 128
        %623 = vxpose.xlu0.b32.cont [9/16] 0.0, 128
        %624 = vxpose.xlu0.b32.cont [10/16] 0.0, 128
        %625 = vxpose.xlu0.b32.cont [11/16] 0.0, 128
        %626 = vxpose.xlu0.b32.cont [12/16] 0.0, 128
        %627 = vxpose.xlu0.b32.cont [13/16] 0.0, 128
        %628 = vxpose.xlu0.b32.cont [14/16] 0.0, 128
        %629 = vxpose.xlu0.b32.cont [15/16] 0.0, 128
        %630 = vxpose.xlu0.b32.end [16/16] 0.0, 128
        %v631 = vpop.trf.xlu0
        %v632 = vpop.trf.xlu0
        %v633 = vpop.trf.xlu0
        %v634 = vpop.trf.xlu0
        %v635 = vpop.trf.xlu0
        %v636 = vpop.trf.xlu0
        %v637 = vpop.trf.xlu0
        %v638 = vpop.trf.xlu0
        %v639 = vpop.trf.xlu0
        %v640 = vpop.trf.xlu0
        %v641 = vpop.trf.xlu0
        %v642 = vpop.trf.xlu0
        %v643 = vpop.trf.xlu0
        %v644 = vpop.trf.xlu0
        %v645 = vpop.trf.xlu0
        %v646 = vpop.trf.xlu0
        %647 = vxpose.xlu0.b32.start [1/16] %v439, 128
        %648 = vxpose.xlu0.b32.cont [2/16] %v440, 128
        %649 = vxpose.xlu0.b32.cont [3/16] %v441, 128
        %650 = vxpose.xlu0.b32.cont [4/16] %v442, 128
        %651 = vxpose.xlu0.b32.cont [5/16] %v443, 128
        %652 = vxpose.xlu0.b32.cont [6/16] %v444, 128
        %653 = vxpose.xlu0.b32.cont [7/16] %v445, 128
        %654 = vxpose.xlu0.b32.cont [8/16] %v446, 128
        %655 = vxpose.xlu0.b32.cont [9/16] 0.0, 128
        %656 = vxpose.xlu0.b32.cont [10/16] 0.0, 128
        %657 = vxpose.xlu0.b32.cont [11/16] 0.0, 128
        %658 = vxpose.xlu0.b32.cont [12/16] 0.0, 128
        %659 = vxpose.xlu0.b32.cont [13/16] 0.0, 128
        %660 = vxpose.xlu0.b32.cont [14/16] 0.0, 128
        %661 = vxpose.xlu0.b32.cont [15/16] 0.0, 128
        %662 = vxpose.xlu0.b32.end [16/16] 0.0, 128
        %v663 = vpop.trf.xlu0
        %v664 = vpop.trf.xlu0
        %v665 = vpop.trf.xlu0
        %v666 = vpop.trf.xlu0
        %v667 = vpop.trf.xlu0
        %v668 = vpop.trf.xlu0
        %v669 = vpop.trf.xlu0
        %v670 = vpop.trf.xlu0
        %v671 = vpop.trf.xlu0
        %v672 = vpop.trf.xlu0
        %v673 = vpop.trf.xlu0
        %v674 = vpop.trf.xlu0
        %v675 = vpop.trf.xlu0
        %v676 = vpop.trf.xlu0
        %v677 = vpop.trf.xlu0
        %v678 = vpop.trf.xlu0
        %679 = vxpose.xlu0.b32.start [1/16] %v447, 128
        %680 = vxpose.xlu0.b32.cont [2/16] %v448, 128
        %681 = vxpose.xlu0.b32.cont [3/16] %v449, 128
        %682 = vxpose.xlu0.b32.cont [4/16] %v450, 128
        %683 = vxpose.xlu0.b32.cont [5/16] %v451, 128
        %684 = vxpose.xlu0.b32.cont [6/16] %v452, 128
        %685 = vxpose.xlu0.b32.cont [7/16] %v453, 128
        %686 = vxpose.xlu0.b32.cont [8/16] %v454, 128
        %687 = vxpose.xlu0.b32.cont [9/16] 0.0, 128
        %688 = vxpose.xlu0.b32.cont [10/16] 0.0, 128
        %689 = vxpose.xlu0.b32.cont [11/16] 0.0, 128
        %690 = vxpose.xlu0.b32.cont [12/16] 0.0, 128
        %691 = vxpose.xlu0.b32.cont [13/16] 0.0, 128
        %692 = vxpose.xlu0.b32.cont [14/16] 0.0, 128
        %693 = vxpose.xlu0.b32.cont [15/16] 0.0, 128
        %694 = vxpose.xlu0.b32.end [16/16] 0.0, 128
        %v695 = vpop.trf.xlu0
        %v696 = vpop.trf.xlu0
        %v697 = vpop.trf.xlu0
        %v698 = vpop.trf.xlu0
        %v699 = vpop.trf.xlu0
        %v700 = vpop.trf.xlu0
        %v701 = vpop.trf.xlu0
        %v702 = vpop.trf.xlu0
        %v703 = vpop.trf.xlu0
        %v704 = vpop.trf.xlu0
        %v705 = vpop.trf.xlu0
        %v706 = vpop.trf.xlu0
        %v707 = vpop.trf.xlu0
        %v708 = vpop.trf.xlu0
        %v709 = vpop.trf.xlu0
        %v710 = vpop.trf.xlu0
        %vm711 = vcmask 523264
        %v712 = vsel %vm711, %v471, 0.0
        %v713 = vsel %vm711, %v472, 0.0
        %v714 = vadd.f32 %v712, %v713
        %v715 = vrot.slane %v714, 4
        %v716 = vadd.f32 %v714, %v715
        %v717 = vrot.slane %v716, 2
        %v718 = vadd.f32 %v716, %v717
        %v719 = vrot.slane %v718, 1
        %v720 = vadd.f32 %v718, %v719
        %v721 = vsel %vm711, %v503, 0.0
        %v722 = vsel %vm711, %v504, 0.0
        %v723 = vadd.f32 %v721, %v722
        %v724 = vrot.slane %v723, 4
        %v725 = vadd.f32 %v723, %v724
        %v726 = vrot.slane %v725, 2
        %v727 = vadd.f32 %v725, %v726
        %v728 = vrot.slane %v727, 1
        %v729 = vadd.f32 %v727, %v728
        %v730 = vsel %vm711, %v535, 0.0
        %v731 = vsel %vm711, %v536, 0.0
        %v732 = vadd.f32 %v730, %v731
        %v733 = vrot.slane %v732, 4
        %v734 = vadd.f32 %v732, %v733
        %v735 = vrot.slane %v734, 2
        %v736 = vadd.f32 %v734, %v735
        %v737 = vrot.slane %v736, 1
        %v738 = vadd.f32 %v736, %v737
        %v739 = vsel %vm711, %v567, 0.0
        %v740 = vsel %vm711, %v568, 0.0
        %v741 = vadd.f32 %v739, %v740
        %v742 = vrot.slane %v741, 4
        %v743 = vadd.f32 %v741, %v742
        %v744 = vrot.slane %v743, 2
        %v745 = vadd.f32 %v743, %v744
        %v746 = vrot.slane %v745, 1
        %v747 = vadd.f32 %v745, %v746
        %v748 = vsel %vm711, %v599, 0.0
        %v749 = vsel %vm711, %v600, 0.0
        %v750 = vadd.f32 %v748, %v749
        %v751 = vrot.slane %v750, 4
        %v752 = vadd.f32 %v750, %v751
        %v753 = vrot.slane %v752, 2
        %v754 = vadd.f32 %v752, %v753
        %v755 = vrot.slane %v754, 1
        %v756 = vadd.f32 %v754, %v755
        %v757 = vsel %vm711, %v631, 0.0
        %v758 = vsel %vm711, %v632, 0.0
        %v759 = vadd.f32 %v757, %v758
        %v760 = vrot.slane %v759, 4
        %v761 = vadd.f32 %v759, %v760
        %v762 = vrot.slane %v761, 2
        %v763 = vadd.f32 %v761, %v762
        %v764 = vrot.slane %v763, 1
        %v765 = vadd.f32 %v763, %v764
        %v766 = vsel %vm711, %v663, 0.0
        %v767 = vsel %vm711, %v664, 0.0
        %v768 = vadd.f32 %v766, %v767
        %v769 = vrot.slane %v768, 4
        %v770 = vadd.f32 %v768, %v769
        %v771 = vrot.slane %v770, 2
        %v772 = vadd.f32 %v770, %v771
        %v773 = vrot.slane %v772, 1
        %v774 = vadd.f32 %v772, %v773
        %v775 = vsel %vm711, %v695, 0.0
        %v776 = vsel %vm711, %v696, 0.0
        %v777 = vadd.f32 %v775, %v776
        %v778 = vrot.slane %v777, 4
        %v779 = vadd.f32 %v777, %v778
        %v780 = vrot.slane %v779, 2
        %v781 = vadd.f32 %v779, %v780
        %v782 = vrot.slane %v781, 1
        %v783 = vadd.f32 %v781, %v782
        %v784 = vrcp.pop 16.0
        %v785 = vmul.f32 16.0, %v784
        %v786 = vsub.f32 1.0, %v785
        %v787 = vmul.f32 %v784, %v786
        %v788 = vadd.f32 %v784, %v787
        %vm789 = vweird.f32 %v784
        %v790 = vsel %vm789, %v784, %v788
        %v791 = vmul.f32 %v720, %v790
        %v792 = vmul.f32 %v729, %v790
        %v793 = vmul.f32 %v738, %v790
        %v794 = vmul.f32 %v747, %v790
        %v795 = vmul.f32 %v756, %v790
        %v796 = vmul.f32 %v765, %v790
        %v797 = vmul.f32 %v774, %v790
        %v798 = vmul.f32 %v783, %v790
        %v799 = vld [vmem:[%s2] sm:$0xff]
        %v800 = vld [vmem:[%s2 + $0x8] sm:$0xff]
        %v801 = vadd.f32 %v471, %v799
        %v802 = vadd.f32 %v472, %v800
        %v803 = vadd.f32 %v503, %v799
        %v804 = vadd.f32 %v504, %v800
        %v805 = vadd.f32 %v535, %v799
        %v806 = vadd.f32 %v536, %v800
        %v807 = vadd.f32 %v567, %v799
        %v808 = vadd.f32 %v568, %v800
        %v809 = vadd.f32 %v599, %v799
        %v810 = vadd.f32 %v600, %v800
        %v811 = vadd.f32 %v631, %v799
        %v812 = vadd.f32 %v632, %v800
        %v813 = vadd.f32 %v663, %v799
        %v814 = vadd.f32 %v664, %v800
        %v815 = vadd.f32 %v695, %v799
        %v816 = vadd.f32 %v696, %v800
        %v817 = vld [vmem:[%s1] sm:$0x1]
        %v819 = vperm.slane %v817, 0
        %v821 = vadd.f32 %v791, %v819
        %v822 = vadd.f32 %v792, %v819
        %v823 = vadd.f32 %v793, %v819
        %v824 = vadd.f32 %v794, %v819
        %v825 = vadd.f32 %v795, %v819
        %v826 = vadd.f32 %v796, %v819
        %v827 = vadd.f32 %v797, %v819
        %v828 = vadd.f32 %v798, %v819
        %v829 = vpack.c.bf16 %v801, %v801
        %v830 = vpack.c.bf16 %v802, %v802
        %v831 = vpack.c.bf16 %v803, %v803
        %v832 = vpack.c.bf16 %v804, %v804
        %v833 = vpack.c.bf16 %v805, %v805
        %v834 = vpack.c.bf16 %v806, %v806
        %v835 = vpack.c.bf16 %v807, %v807
        %v836 = vpack.c.bf16 %v808, %v808
        %v837 = vpack.c.bf16 %v809, %v809
        %v838 = vpack.c.bf16 %v810, %v810
        %v839 = vpack.c.bf16 %v811, %v811
        %v840 = vpack.c.bf16 %v812, %v812
        %v841 = vpack.c.bf16 %v813, %v813
        %v842 = vpack.c.bf16 %v814, %v814
        %v843 = vpack.c.bf16 %v815, %v815
        %v844 = vpack.c.bf16 %v816, %v816
        %v845 = vpack.c.bf16 %v821, %v821
        %v846 = vpack.c.bf16 %v822, %v822
        %v847 = vpack.c.bf16 %v823, %v823
        %v848 = vpack.c.bf16 %v824, %v824
        %v849 = vpack.c.bf16 %v825, %v825
        %v850 = vpack.c.bf16 %v826, %v826
        %v851 = vpack.c.bf16 %v827, %v827
        %v852 = vpack.c.bf16 %v828, %v828
        %v869 = vunpack.c.l.b16 %v829
        %v870 = vunpack.c.l.b16 %v830
        %v871 = vunpack.c.l.b16 %v831
        %v872 = vunpack.c.l.b16 %v832
        %v873 = vunpack.c.l.b16 %v833
        %v874 = vunpack.c.l.b16 %v834
        %v875 = vunpack.c.l.b16 %v835
        %v876 = vunpack.c.l.b16 %v836
        %v877 = vunpack.c.l.b16 %v837
        %v878 = vunpack.c.l.b16 %v838
        %v879 = vunpack.c.l.b16 %v839
        %v880 = vunpack.c.l.b16 %v840
        %v881 = vunpack.c.l.b16 %v841
        %v882 = vunpack.c.l.b16 %v842
        %v883 = vunpack.c.l.b16 %v843
        %v884 = vunpack.c.l.b16 %v844
        %v885 = vpack.c.b16 %v870, %v869
        %v886 = vpack.c.b16 %v872, %v871
        %v887 = vpack.c.b16 %v874, %v873
        %v888 = vpack.c.b16 %v876, %v875
        %v889 = vpack.c.b16 %v878, %v877
        %v890 = vpack.c.b16 %v880, %v879
        %v891 = vpack.c.b16 %v882, %v881
        %v892 = vpack.c.b16 %v884, %v883
        %v901 = vunpack.c.l.b16 %v845
        %v902 = vunpack.c.l.b16 %v846
        %v903 = vunpack.c.l.b16 %v847
        %v904 = vunpack.c.l.b16 %v848
        %v905 = vunpack.c.l.b16 %v849
        %v906 = vunpack.c.l.b16 %v850
        %v907 = vunpack.c.l.b16 %v851
        %v908 = vunpack.c.l.b16 %v852
        %v909 = vpack.c.b16 %v901, %v901
        %v910 = vpack.c.b16 %v902, %v902
        %v911 = vpack.c.b16 %v903, %v903
        %v912 = vpack.c.b16 %v904, %v904
        %v913 = vpack.c.b16 %v905, %v905
        %v914 = vpack.c.b16 %v906, %v906
        %v915 = vpack.c.b16 %v907, %v907
        %v916 = vpack.c.b16 %v908, %v908
        %v917 = vunpack.c.l.b16 %v909
        %v918 = vunpack.c.l.b16 %v910
        %v919 = vunpack.c.l.b16 %v911
        %v920 = vunpack.c.l.b16 %v912
        %v921 = vunpack.c.l.b16 %v913
        %v922 = vunpack.c.l.b16 %v914
        %v923 = vunpack.c.l.b16 %v915
        %v924 = vunpack.c.l.b16 %v916
        %v925 = vrot.slane %v918, 7
        %vm926 = vcmask 1041409
        %v927 = vsel %vm926, %v925, %v917
        %v928 = vrot.slane %v919, 6
        %vm929 = vcmask 1042434
        %v930 = vsel %vm929, %v928, %v927
        %v931 = vrot.slane %v920, 5
        %vm932 = vcmask 1043459
        %v933 = vsel %vm932, %v931, %v930
        %v934 = vrot.slane %v921, 4
        %vm935 = vcmask 1044484
        %v936 = vsel %vm935, %v934, %v933
        %v937 = vrot.slane %v922, 3
        %vm938 = vcmask 1045509
        %v939 = vsel %vm938, %v937, %v936
        %v940 = vrot.slane %v923, 2
        %vm941 = vcmask 1046534
        %v942 = vsel %vm941, %v940, %v939
        %v943 = vrot.slane %v924, 1
        %vm944 = vcmask 1047559
        %v945 = vsel %vm944, %v943, %v942
        %v946 = vpack.c.b16 %v945, %v945
        %v947 = vld [vmem:[%s7] sm:$0xff]
        %v948 = vld [vmem:[%s7 + $0x8] sm:$0xff]
        %v949 = vld [vmem:[%s7 + $0x10] sm:$0xff]
        %v950 = vld [vmem:[%s7 + $0x18] sm:$0xff]
        %v951 = vld [vmem:[%s7 + $0x20] sm:$0xff]
        %v952 = vld [vmem:[%s7 + $0x28] sm:$0xff]
        %v953 = vld [vmem:[%s7 + $0x30] sm:$0xff]
        %v954 = vld [vmem:[%s7 + $0x38] sm:$0xff]
        %v955 = vld [vmem:[%s8] sm:$0x3]
        %v957 = vperm.slane %v955, 0
        %v958 = vperm.slane %v955, 1
        %v969 = vunpack.c.l.b16 %v947
        %v970 = vunpack.c.h.b16 %v947
        %v971 = vunpack.c.l.b16 %v948
        %v972 = vunpack.c.h.b16 %v948
        %v973 = vunpack.c.l.b16 %v949
        %v974 = vunpack.c.h.b16 %v949
        %v975 = vunpack.c.l.b16 %v950
        %v976 = vunpack.c.h.b16 %v950
        %v977 = vunpack.c.l.b16 %v951
        %v978 = vunpack.c.h.b16 %v951
        %v979 = vunpack.c.l.b16 %v952
        %v980 = vunpack.c.h.b16 %v952
        %v981 = vunpack.c.l.b16 %v953
        %v982 = vunpack.c.h.b16 %v953
        %v983 = vunpack.c.l.b16 %v954
        %v984 = vunpack.c.h.b16 %v954
        %v985 = vpack.c.b16 %v971, %v969
        %v986 = vpack.c.b16 %v972, %v970
        %v987 = vpack.c.b16 %v975, %v973
        %v988 = vpack.c.b16 %v976, %v974
        %v989 = vpack.c.b16 %v979, %v977
        %v990 = vpack.c.b16 %v980, %v978
        %v991 = vpack.c.b16 %v983, %v981
        %v992 = vpack.c.b16 %v984, %v982
        %v1002 = vsel %vm711, %v885, 0
        %v1005 = vsel %vm711, %v886, 0
        %v1008 = vsel %vm711, %v887, 0
        %v1011 = vsel %vm711, %v888, 0
        %v1014 = vsel %vm711, %v889, 0
        %v1017 = vsel %vm711, %v890, 0
        %v1020 = vsel %vm711, %v891, 0
        %v1023 = vsel %vm711, %v892, 0
        %v1026 = vsel %vm711, %v946, 0
        %1028 = vmatpush.bf16.msra.mxu0 0
        %1029 = vmatpush.bf16.msra.mxu0 0
        %1030 = vmatpush.bf16.msra.mxu0 0
        %1031 = vmatpush.bf16.msra.mxu0 0
        %1032 = vmatpush.bf16.msra.mxu0 %v991
        %1033 = vmatpush.bf16.msra.mxu0 %v989
        %1034 = vmatpush.bf16.msra.mxu0 %v987
        %1035 = vmatpush.bf16.msra.mxu0 %v985
        %1036 = vmatmul.bf16.gmra.mxu0 %v1002
        %v1037 = vpop.f32.mrf.mxu0
        %v1038 = vadd.f32 %v957, %v1037
        %v1039 = vpop.f32.mrf.mxu0
        %v1040 = vadd.f32 %v957, %v1039
        %1041 = vmatmul.bf16.gmra.mxu0 %v1005
        %v1042 = vpop.f32.mrf.mxu0
        %v1043 = vadd.f32 %v957, %v1042
        %v1044 = vpop.f32.mrf.mxu0
        %v1045 = vadd.f32 %v957, %v1044
        %1046 = vmatmul.bf16.gmra.mxu0 %v1008
        %v1047 = vpop.f32.mrf.mxu0
        %v1048 = vadd.f32 %v957, %v1047
        %v1049 = vpop.f32.mrf.mxu0
        %v1050 = vadd.f32 %v957, %v1049
        %1051 = vmatmul.bf16.gmra.mxu0 %v1011
        %v1052 = vpop.f32.mrf.mxu0
        %v1053 = vadd.f32 %v957, %v1052
        %v1054 = vpop.f32.mrf.mxu0
        %v1055 = vadd.f32 %v957, %v1054
        %1056 = vmatmul.bf16.gmra.mxu0 %v1014
        %v1057 = vpop.f32.mrf.mxu0
        %v1058 = vadd.f32 %v957, %v1057
        %v1059 = vpop.f32.mrf.mxu0
        %v1060 = vadd.f32 %v957, %v1059
        %1061 = vmatmul.bf16.gmra.mxu0 %v1017
        %v1062 = vpop.f32.mrf.mxu0
        %v1063 = vadd.f32 %v957, %v1062
        %v1064 = vpop.f32.mrf.mxu0
        %v1065 = vadd.f32 %v957, %v1064
        %1066 = vmatmul.bf16.gmra.mxu0 %v1020
        %v1067 = vpop.f32.mrf.mxu0
        %v1068 = vadd.f32 %v957, %v1067
        %v1069 = vpop.f32.mrf.mxu0
        %v1070 = vadd.f32 %v957, %v1069
        %1071 = vmatmul.bf16.gmra.mxu0 %v1023
        %v1072 = vpop.f32.mrf.mxu0
        %v1073 = vadd.f32 %v957, %v1072
        %v1074 = vpop.f32.mrf.mxu0
        %v1075 = vadd.f32 %v957, %v1074
        %1076 = vmatmul.bf16.gmra.mxu0 %v1026
        %v1077 = vpop.f32.mrf.mxu0
        %v1078 = vadd.f32 %v957, %v1077
        %v1079 = vpop.f32.mrf.mxu0
        %1080 = vdwg.mxu0
        %1081 = vmatpush.bf16.msra.mxu0 0
        %1082 = vmatpush.bf16.msra.mxu0 0
        %1083 = vmatpush.bf16.msra.mxu0 0
        %1084 = vmatpush.bf16.msra.mxu0 0
        %1085 = vmatpush.bf16.msra.mxu0 %v992
        %1086 = vmatpush.bf16.msra.mxu0 %v990
        %1087 = vmatpush.bf16.msra.mxu0 %v988
        %1088 = vmatpush.bf16.msra.mxu0 %v986
        %1089 = vmatmul.bf16.gmra.mxu0 %v1002
        %v1090 = vpop.f32.mrf.mxu0
        %v1091 = vadd.f32 %v958, %v1090
        %v1092 = vpop.f32.mrf.mxu0
        %v1093 = vadd.f32 %v958, %v1092
        %1094 = vmatmul.bf16.gmra.mxu0 %v1005
        %v1095 = vpop.f32.mrf.mxu0
        %v1096 = vadd.f32 %v958, %v1095
        %v1097 = vpop.f32.mrf.mxu0
        %v1098 = vadd.f32 %v958, %v1097
        %1099 = vmatmul.bf16.gmra.mxu0 %v1008
        %v1100 = vpop.f32.mrf.mxu0
        %v1101 = vadd.f32 %v958, %v1100
        %v1102 = vpop.f32.mrf.mxu0
        %v1103 = vadd.f32 %v958, %v1102
        %1104 = vmatmul.bf16.gmra.mxu0 %v1011
        %v1105 = vpop.f32.mrf.mxu0
        %v1106 = vadd.f32 %v958, %v1105
        %v1107 = vpop.f32.mrf.mxu0
        %v1108 = vadd.f32 %v958, %v1107
        %1109 = vmatmul.bf16.gmra.mxu0 %v1014
        %v1110 = vpop.f32.mrf.mxu0
        %v1111 = vadd.f32 %v958, %v1110
        %v1112 = vpop.f32.mrf.mxu0
        %v1113 = vadd.f32 %v958, %v1112
        %1114 = vmatmul.bf16.gmra.mxu0 %v1017
        %v1115 = vpop.f32.mrf.mxu0
        %v1116 = vadd.f32 %v958, %v1115
        %v1117 = vpop.f32.mrf.mxu0
        %v1118 = vadd.f32 %v958, %v1117
        %1119 = vmatmul.bf16.gmra.mxu0 %v1020
        %v1120 = vpop.f32.mrf.mxu0
        %v1121 = vadd.f32 %v958, %v1120
        %v1122 = vpop.f32.mrf.mxu0
        %v1123 = vadd.f32 %v958, %v1122
        %1124 = vmatmul.bf16.gmra.mxu0 %v1023
        %v1125 = vpop.f32.mrf.mxu0
        %v1126 = vadd.f32 %v958, %v1125
        %v1127 = vpop.f32.mrf.mxu0
        %v1128 = vadd.f32 %v958, %v1127
        %1129 = vmatmul.bf16.gmra.mxu0 %v1026
        %v1130 = vpop.f32.mrf.mxu0
        %v1131 = vadd.f32 %v958, %v1130
        %v1132 = vpop.f32.mrf.mxu0
        %1133 = vdwg.mxu0
        %v1134 = vmul.f32 %v1078, 0.35355338
        %v1135 = vld [vmem:[%s3] sm:$0xff]
        %v1136 = vld [vmem:[%s3 + $0x8] sm:$0xff]
        %v1137 = vld [vmem:[%s4] sm:$0xff]
        %v1138 = vld [vmem:[%s4 + $0x8] sm:$0xff]
        %v1139 = vld [vmem:[%s4 + $0x10] sm:$0xff]
        %v1140 = vld [vmem:[%s4 + $0x18] sm:$0xff]
        %v1141 = vld [vmem:[%s4 + $0x20] sm:$0xff]
        %v1142 = vld [vmem:[%s4 + $0x28] sm:$0xff]
        %v1143 = vld [vmem:[%s4 + $0x30] sm:$0xff]
        %v1144 = vld [vmem:[%s4 + $0x38] sm:$0xff]
        %v1145 = vld [vmem:[%s4 + $0x40] sm:$0xff]
        %v1146 = vld [vmem:[%s4 + $0x48] sm:$0xff]
        %v1147 = vld [vmem:[%s4 + $0x50] sm:$0xff]
        %v1148 = vld [vmem:[%s4 + $0x58] sm:$0xff]
        %v1149 = vld [vmem:[%s4 + $0x60] sm:$0xff]
        %v1150 = vld [vmem:[%s4 + $0x68] sm:$0xff]
        %v1151 = vld [vmem:[%s4 + $0x70] sm:$0xff]
        %v1152 = vld [vmem:[%s4 + $0x78] sm:$0xff]
        %v1153 = vld [vmem:[%s4 + $0x80] sm:$0xff]
        %v1154 = vld [vmem:[%s5] sm:$0xff]
        %v1155 = vld [vmem:[%s5 + $0x8] sm:$0xff]
        %v1156 = vld [vmem:[%s5 + $0x10] sm:$0xff]
        %v1157 = vld [vmem:[%s5 + $0x18] sm:$0xff]
        %v1158 = vld [vmem:[%s5 + $0x20] sm:$0xff]
        %v1159 = vld [vmem:[%s5 + $0x28] sm:$0xff]
        %v1160 = vld [vmem:[%s5 + $0x30] sm:$0xff]
        %v1161 = vld [vmem:[%s5 + $0x38] sm:$0xff]
        %v1162 = vld [vmem:[%s6] sm:$0xff]
        %vm1163 = vcmask 64512
        %v1165 = vsel %vm1163, %v1137, 0
        %v1168 = vsel %vm1163, %v1138, 0
        %v1171 = vsel %vm1163, %v1139, 0
        %v1174 = vsel %vm1163, %v1140, 0
        %v1177 = vsel %vm1163, %v1141, 0
        %v1180 = vsel %vm1163, %v1142, 0
        %v1183 = vsel %vm1163, %v1143, 0
        %v1186 = vsel %vm1163, %v1144, 0
        %v1189 = vsel %vm1163, %v1145, 0
        %v1192 = vsel %vm1163, %v1146, 0
        %v1195 = vsel %vm1163, %v1147, 0
        %v1198 = vsel %vm1163, %v1148, 0
        %v1201 = vsel %vm1163, %v1149, 0
        %v1204 = vsel %vm1163, %v1150, 0
        %v1207 = vsel %vm1163, %v1151, 0
        %v1210 = vsel %vm1163, %v1152, 0
        %v1213 = vsel %vm1163, %v1153, 0
        %1215 = vmatpush.msra.mxu0 0.0
        %1216 = vmatpush.msra.mxu0 0.0
        %1217 = vmatpush.msra.mxu0 0.0
        %1218 = vmatpush.msra.mxu0 0.0
        %1219 = vmatpush.msra.mxu0 0.0
        %1220 = vmatpush.msra.mxu0 0.0
        %1221 = vmatpush.msra.mxu0 0.0
        %1222 = vmatpush.msra.mxu0 0.0
        %1223 = vmatpush.msra.mxu0 0.0
        %1224 = vmatpush.msra.mxu0 0.0
        %1225 = vmatpush.msra.mxu0 0.0
        %1226 = vmatpush.msra.mxu0 0.0
        %1227 = vmatpush.msra.mxu0 0.0
        %1228 = vmatpush.msra.mxu0 0.0
        %1229 = vmatpush.msra.mxu0 0.0
        %1230 = vmatpush.msra.mxu0 %v1134
        %1231 = vmatmul.f32.gmra.mxu0 %v1165
        %v1232 = vpop.f32.mrf.mxu0
        %v1233 = vadd.f32 0.0, %v1232
        %1234 = vmatmul.f32.gmra.mxu0 %v1168
        %v1235 = vpop.f32.mrf.mxu0
        %v1236 = vadd.f32 0.0, %v1235
        %1237 = vmatmul.f32.gmra.mxu0 %v1171
        %v1238 = vpop.f32.mrf.mxu0
        %v1239 = vadd.f32 0.0, %v1238
        %1240 = vmatmul.f32.gmra.mxu0 %v1174
        %v1241 = vpop.f32.mrf.mxu0
        %v1242 = vadd.f32 0.0, %v1241
        %1243 = vmatmul.f32.gmra.mxu0 %v1177
        %v1244 = vpop.f32.mrf.mxu0
        %v1245 = vadd.f32 0.0, %v1244
        %1246 = vmatmul.f32.gmra.mxu0 %v1180
        %v1247 = vpop.f32.mrf.mxu0
        %v1248 = vadd.f32 0.0, %v1247
        %1249 = vmatmul.f32.gmra.mxu0 %v1183
        %v1250 = vpop.f32.mrf.mxu0
        %v1251 = vadd.f32 0.0, %v1250
        %1252 = vmatmul.f32.gmra.mxu0 %v1186
        %v1253 = vpop.f32.mrf.mxu0
        %v1254 = vadd.f32 0.0, %v1253
        %1255 = vmatmul.f32.gmra.mxu0 %v1189
        %v1256 = vpop.f32.mrf.mxu0
        %v1257 = vadd.f32 0.0, %v1256
        %1258 = vmatmul.f32.gmra.mxu0 %v1192
        %v1259 = vpop.f32.mrf.mxu0
        %v1260 = vadd.f32 0.0, %v1259
        %1261 = vmatmul.f32.gmra.mxu0 %v1195
        %v1262 = vpop.f32.mrf.mxu0
        %v1263 = vadd.f32 0.0, %v1262
        %1264 = vmatmul.f32.gmra.mxu0 %v1198
        %v1265 = vpop.f32.mrf.mxu0
        %v1266 = vadd.f32 0.0, %v1265
        %1267 = vmatmul.f32.gmra.mxu0 %v1201
        %v1268 = vpop.f32.mrf.mxu0
        %v1269 = vadd.f32 0.0, %v1268
        %1270 = vmatmul.f32.gmra.mxu0 %v1204
        %v1271 = vpop.f32.mrf.mxu0
        %v1272 = vadd.f32 0.0, %v1271
        %1273 = vmatmul.f32.gmra.mxu0 %v1207
        %v1274 = vpop.f32.mrf.mxu0
        %v1275 = vadd.f32 0.0, %v1274
        %1276 = vmatmul.f32.gmra.mxu0 %v1210
        %v1277 = vpop.f32.mrf.mxu0
        %v1278 = vadd.f32 0.0, %v1277
        %1279 = vmatmul.f32.gmra.mxu0 %v1213
        %v1280 = vpop.f32.mrf.mxu0
        %v1281 = vadd.f32 0.0, %v1280
        %1282 = vdwg.mxu0
        %1300 = vrot.lane.b32.xlu0 %v1038, 64
        %v1301 = vpop.permute.xlu0 %1300
        %1302 = vrot.lane.b32.xlu0 %v1040, 64
        %v1303 = vpop.permute.xlu0 %1302
        %1304 = vrot.lane.b32.xlu0 %v1043, 64
        %v1305 = vpop.permute.xlu0 %1304
        %1306 = vrot.lane.b32.xlu0 %v1045, 64
        %v1307 = vpop.permute.xlu0 %1306
        %1308 = vrot.lane.b32.xlu0 %v1048, 64
        %v1309 = vpop.permute.xlu0 %1308
        %1310 = vrot.lane.b32.xlu0 %v1050, 64
        %v1311 = vpop.permute.xlu0 %1310
        %1312 = vrot.lane.b32.xlu0 %v1053, 64
        %v1313 = vpop.permute.xlu0 %1312
        %1314 = vrot.lane.b32.xlu0 %v1055, 64
        %v1315 = vpop.permute.xlu0 %1314
        %1316 = vrot.lane.b32.xlu0 %v1058, 64
        %v1317 = vpop.permute.xlu0 %1316
        %1318 = vrot.lane.b32.xlu0 %v1060, 64
        %v1319 = vpop.permute.xlu0 %1318
        %1320 = vrot.lane.b32.xlu0 %v1063, 64
        %v1321 = vpop.permute.xlu0 %1320
        %1322 = vrot.lane.b32.xlu0 %v1065, 64
        %v1323 = vpop.permute.xlu0 %1322
        %1324 = vrot.lane.b32.xlu0 %v1068, 64
        %v1325 = vpop.permute.xlu0 %1324
        %1326 = vrot.lane.b32.xlu0 %v1070, 64
        %v1327 = vpop.permute.xlu0 %1326
        %1328 = vrot.lane.b32.xlu0 %v1073, 64
        %v1329 = vpop.permute.xlu0 %1328
        %1330 = vrot.lane.b32.xlu0 %v1075, 64
        %v1331 = vpop.permute.xlu0 %1330
        %1332 = vrot.lane.b32.xlu0 %v1078, 64
        %v1333 = vpop.permute.xlu0 %1332
        %v1351 = vmul.f32 %v1233, %v1301
        %v1352 = vmul.f32 %v1236, %v1303
        %v1353 = vmul.f32 %v1239, %v1305
        %v1354 = vmul.f32 %v1242, %v1307
        %v1355 = vmul.f32 %v1245, %v1309
        %v1356 = vmul.f32 %v1248, %v1311
        %v1357 = vmul.f32 %v1251, %v1313
        %v1358 = vmul.f32 %v1254, %v1315
        %v1359 = vmul.f32 %v1257, %v1317
        %v1360 = vmul.f32 %v1260, %v1319
        %v1361 = vmul.f32 %v1263, %v1321
        %v1362 = vmul.f32 %v1266, %v1323
        %v1363 = vmul.f32 %v1269, %v1325
        %v1364 = vmul.f32 %v1272, %v1327
        %v1365 = vmul.f32 %v1275, %v1329
        %v1366 = vmul.f32 %v1278, %v1331
        %v1367 = vmul.f32 %v1281, %v1333
        %v1369 = vsel %vm711, %v1351, 0
        %v1372 = vsel %vm711, %v1352, 0
        %v1375 = vsel %vm711, %v1353, 0
        %v1378 = vsel %vm711, %v1354, 0
        %v1381 = vsel %vm711, %v1355, 0
        %v1384 = vsel %vm711, %v1356, 0
        %v1387 = vsel %vm711, %v1357, 0
        %v1390 = vsel %vm711, %v1358, 0
        %v1393 = vsel %vm711, %v1359, 0
        %v1396 = vsel %vm711, %v1360, 0
        %v1399 = vsel %vm711, %v1361, 0
        %v1402 = vsel %vm711, %v1362, 0
        %v1405 = vsel %vm711, %v1363, 0
        %v1408 = vsel %vm711, %v1364, 0
        %v1411 = vsel %vm711, %v1365, 0
        %v1414 = vsel %vm711, %v1366, 0
        %v1417 = vsel %vm711, %v1367, 0
        %1419 = vmatpush.msra.mxu0 0.0
        %1420 = vmatpush.msra.mxu0 0.0
        %1421 = vmatpush.msra.mxu0 0.0
        %1422 = vmatpush.msra.mxu0 0.0
        %1423 = vmatpush.msra.mxu0 0.0
        %1424 = vmatpush.msra.mxu0 0.0
        %1425 = vmatpush.msra.mxu0 0.0
        %1426 = vmatpush.msra.mxu0 0.0
        %1427 = vmatpush.msra.mxu0 %v1161
        %1428 = vmatpush.msra.mxu0 %v1160
        %1429 = vmatpush.msra.mxu0 %v1159
        %1430 = vmatpush.msra.mxu0 %v1158
        %1431 = vmatpush.msra.mxu0 %v1157
        %1432 = vmatpush.msra.mxu0 %v1156
        %1433 = vmatpush.msra.mxu0 %v1155
        %1434 = vmatpush.msra.mxu0 %v1154
        %1435 = vmatmul.f32.gmra.mxu0 %v1369
        %v1436 = vpop.f32.mrf.mxu0
        %v1437 = vadd.f32 0.0, %v1436
        %1438 = vmatmul.f32.gmra.mxu0 %v1372
        %v1439 = vpop.f32.mrf.mxu0
        %v1440 = vadd.f32 0.0, %v1439
        %1441 = vmatmul.f32.gmra.mxu0 %v1375
        %v1442 = vpop.f32.mrf.mxu0
        %v1443 = vadd.f32 0.0, %v1442
        %1444 = vmatmul.f32.gmra.mxu0 %v1378
        %v1445 = vpop.f32.mrf.mxu0
        %v1446 = vadd.f32 0.0, %v1445
        %1447 = vmatmul.f32.gmra.mxu0 %v1381
        %v1448 = vpop.f32.mrf.mxu0
        %v1449 = vadd.f32 0.0, %v1448
        %1450 = vmatmul.f32.gmra.mxu0 %v1384
        %v1451 = vpop.f32.mrf.mxu0
        %v1452 = vadd.f32 0.0, %v1451
        %1453 = vmatmul.f32.gmra.mxu0 %v1387
        %v1454 = vpop.f32.mrf.mxu0
        %v1455 = vadd.f32 0.0, %v1454
        %1456 = vmatmul.f32.gmra.mxu0 %v1390
        %v1457 = vpop.f32.mrf.mxu0
        %v1458 = vadd.f32 0.0, %v1457
        %1459 = vmatmul.f32.gmra.mxu0 %v1393
        %v1460 = vpop.f32.mrf.mxu0
        %v1461 = vadd.f32 0.0, %v1460
        %1462 = vmatmul.f32.gmra.mxu0 %v1396
        %v1463 = vpop.f32.mrf.mxu0
        %v1464 = vadd.f32 0.0, %v1463
        %1465 = vmatmul.f32.gmra.mxu0 %v1399
        %v1466 = vpop.f32.mrf.mxu0
        %v1467 = vadd.f32 0.0, %v1466
        %1468 = vmatmul.f32.gmra.mxu0 %v1402
        %v1469 = vpop.f32.mrf.mxu0
        %v1470 = vadd.f32 0.0, %v1469
        %1471 = vmatmul.f32.gmra.mxu0 %v1405
        %v1472 = vpop.f32.mrf.mxu0
        %v1473 = vadd.f32 0.0, %v1472
        %1474 = vmatmul.f32.gmra.mxu0 %v1408
        %v1475 = vpop.f32.mrf.mxu0
        %v1476 = vadd.f32 0.0, %v1475
        %1477 = vmatmul.f32.gmra.mxu0 %v1411
        %v1478 = vpop.f32.mrf.mxu0
        %v1479 = vadd.f32 0.0, %v1478
        %1480 = vmatmul.f32.gmra.mxu0 %v1414
        %v1481 = vpop.f32.mrf.mxu0
        %v1482 = vadd.f32 0.0, %v1481
        %1483 = vmatmul.f32.gmra.mxu0 %v1417
        %v1484 = vpop.f32.mrf.mxu0
        %v1485 = vadd.f32 0.0, %v1484
        %1486 = vdwg.mxu0
        %v1487 = vsel %vm1163, %v1437, -inf
        %v1488 = vsel %vm1163, %v1440, -inf
        %v1489 = vmax.f32 %v1487, %v1488
        %v1490 = vrot.slane %v1489, 4
        %v1491 = vmax.f32 %v1489, %v1490
        %v1492 = vrot.slane %v1491, 2
        %v1493 = vmax.f32 %v1491, %v1492
        %v1494 = vrot.slane %v1493, 1
        %v1495 = vmax.f32 %v1493, %v1494
        %v1496 = vsel %vm1163, %v1443, -inf
        %v1497 = vsel %vm1163, %v1446, -inf
        %v1498 = vmax.f32 %v1496, %v1497
        %v1499 = vrot.slane %v1498, 4
        %v1500 = vmax.f32 %v1498, %v1499
        %v1501 = vrot.slane %v1500, 2
        %v1502 = vmax.f32 %v1500, %v1501
        %v1503 = vrot.slane %v1502, 1
        %v1504 = vmax.f32 %v1502, %v1503
        %v1505 = vsel %vm1163, %v1449, -inf
        %v1506 = vsel %vm1163, %v1452, -inf
        %v1507 = vmax.f32 %v1505, %v1506
        %v1508 = vrot.slane %v1507, 4
        %v1509 = vmax.f32 %v1507, %v1508
        %v1510 = vrot.slane %v1509, 2
        %v1511 = vmax.f32 %v1509, %v1510
        %v1512 = vrot.slane %v1511, 1
        %v1513 = vmax.f32 %v1511, %v1512
        %v1514 = vsel %vm1163, %v1455, -inf
        %v1515 = vsel %vm1163, %v1458, -inf
        %v1516 = vmax.f32 %v1514, %v1515
        %v1517 = vrot.slane %v1516, 4
        %v1518 = vmax.f32 %v1516, %v1517
        %v1519 = vrot.slane %v1518, 2
        %v1520 = vmax.f32 %v1518, %v1519
        %v1521 = vrot.slane %v1520, 1
        %v1522 = vmax.f32 %v1520, %v1521
        %v1523 = vsel %vm1163, %v1461, -inf
        %v1524 = vsel %vm1163, %v1464, -inf
        %v1525 = vmax.f32 %v1523, %v1524
        %v1526 = vrot.slane %v1525, 4
        %v1527 = vmax.f32 %v1525, %v1526
        %v1528 = vrot.slane %v1527, 2
        %v1529 = vmax.f32 %v1527, %v1528
        %v1530 = vrot.slane %v1529, 1
        %v1531 = vmax.f32 %v1529, %v1530
        %v1532 = vsel %vm1163, %v1467, -inf
        %v1533 = vsel %vm1163, %v1470, -inf
        %v1534 = vmax.f32 %v1532, %v1533
        %v1535 = vrot.slane %v1534, 4
        %v1536 = vmax.f32 %v1534, %v1535
        %v1537 = vrot.slane %v1536, 2
        %v1538 = vmax.f32 %v1536, %v1537
        %v1539 = vrot.slane %v1538, 1
        %v1540 = vmax.f32 %v1538, %v1539
        %v1541 = vsel %vm1163, %v1473, -inf
        %v1542 = vsel %vm1163, %v1476, -inf
        %v1543 = vmax.f32 %v1541, %v1542
        %v1544 = vrot.slane %v1543, 4
        %v1545 = vmax.f32 %v1543, %v1544
        %v1546 = vrot.slane %v1545, 2
        %v1547 = vmax.f32 %v1545, %v1546
        %v1548 = vrot.slane %v1547, 1
        %v1549 = vmax.f32 %v1547, %v1548
        %v1550 = vsel %vm1163, %v1479, -inf
        %v1551 = vsel %vm1163, %v1482, -inf
        %v1552 = vmax.f32 %v1550, %v1551
        %v1553 = vrot.slane %v1552, 4
        %v1554 = vmax.f32 %v1552, %v1553
        %v1555 = vrot.slane %v1554, 2
        %v1556 = vmax.f32 %v1554, %v1555
        %v1557 = vrot.slane %v1556, 1
        %v1558 = vmax.f32 %v1556, %v1557
        %v1560 = vrot.slane %v1485, 1
        %v1561 = vrot.slane %v1485, 2
        %v1562 = vrot.slane %v1485, 3
        %v1563 = vrot.slane %v1485, 4
        %v1564 = vrot.slane %v1485, 5
        %v1565 = vrot.slane %v1485, 6
        %v1566 = vrot.slane %v1485, 7
        %v1575 = vmax.f32 %v1495, %v1485
        %v1576 = vmax.f32 %v1504, %v1560
        %v1577 = vmax.f32 %v1513, %v1561
        %v1578 = vmax.f32 %v1522, %v1562
        %v1579 = vmax.f32 %v1531, %v1563
        %v1580 = vmax.f32 %v1540, %v1564
        %v1581 = vmax.f32 %v1549, %v1565
        %v1582 = vmax.f32 %v1558, %v1566
        %v1591 = vrot.slane %v1576, 7
        %v1592 = vsel %vm926, %v1591, %v1575
        %v1593 = vrot.slane %v1577, 6
        %v1594 = vsel %vm929, %v1593, %v1592
        %v1595 = vrot.slane %v1578, 5
        %v1596 = vsel %vm932, %v1595, %v1594
        %v1597 = vrot.slane %v1579, 4
        %v1598 = vsel %vm935, %v1597, %v1596
        %v1599 = vrot.slane %v1580, 3
        %v1600 = vsel %vm938, %v1599, %v1598
        %v1601 = vrot.slane %v1581, 2
        %v1602 = vsel %vm941, %v1601, %v1600
        %v1603 = vrot.slane %v1582, 1
        %v1604 = vsel %vm944, %v1603, %v1602
        %1606 = vmatpush.msra.mxu0 0.0
        %1607 = vmatpush.msra.mxu0 0.0
        %1608 = vmatpush.msra.mxu0 0.0
        %1609 = vmatpush.msra.mxu0 0.0
        %1610 = vmatpush.msra.mxu0 0.0
        %1611 = vmatpush.msra.mxu0 0.0
        %1612 = vmatpush.msra.mxu0 0.0
        %1613 = vmatpush.msra.mxu0 0.0
        %1614 = vmatpush.msra.mxu0 0.0
        %1615 = vmatpush.msra.mxu0 0.0
        %1616 = vmatpush.msra.mxu0 0.0
        %1617 = vmatpush.msra.mxu0 0.0
        %1618 = vmatpush.msra.mxu0 0.0
        %1619 = vmatpush.msra.mxu0 0.0
        %1620 = vmatpush.msra.mxu0 0.0
        %1621 = vmatpush.msra.mxu0 %v1604
        %1622 = vmatmul.f32.gmra.mxu0 %v1165
        %v1623 = vpop.f32.mrf.mxu0
        %v1624 = vadd.f32 0.0, %v1623
        %1625 = vmatmul.f32.gmra.mxu0 %v1168
        %v1626 = vpop.f32.mrf.mxu0
        %v1627 = vadd.f32 0.0, %v1626
        %1628 = vmatmul.f32.gmra.mxu0 %v1171
        %v1629 = vpop.f32.mrf.mxu0
        %v1630 = vadd.f32 0.0, %v1629
        %1631 = vmatmul.f32.gmra.mxu0 %v1174
        %v1632 = vpop.f32.mrf.mxu0
        %v1633 = vadd.f32 0.0, %v1632
        %1634 = vmatmul.f32.gmra.mxu0 %v1177
        %v1635 = vpop.f32.mrf.mxu0
        %v1636 = vadd.f32 0.0, %v1635
        %1637 = vmatmul.f32.gmra.mxu0 %v1180
        %v1638 = vpop.f32.mrf.mxu0
        %v1639 = vadd.f32 0.0, %v1638
        %1640 = vmatmul.f32.gmra.mxu0 %v1183
        %v1641 = vpop.f32.mrf.mxu0
        %v1642 = vadd.f32 0.0, %v1641
        %1643 = vmatmul.f32.gmra.mxu0 %v1186
        %v1644 = vpop.f32.mrf.mxu0
        %v1645 = vadd.f32 0.0, %v1644
        %1646 = vmatmul.f32.gmra.mxu0 %v1189
        %v1647 = vpop.f32.mrf.mxu0
        %v1648 = vadd.f32 0.0, %v1647
        %1649 = vmatmul.f32.gmra.mxu0 %v1192
        %v1650 = vpop.f32.mrf.mxu0
        %v1651 = vadd.f32 0.0, %v1650
        %1652 = vmatmul.f32.gmra.mxu0 %v1195
        %v1653 = vpop.f32.mrf.mxu0
        %v1654 = vadd.f32 0.0, %v1653
        %1655 = vmatmul.f32.gmra.mxu0 %v1198
        %v1656 = vpop.f32.mrf.mxu0
        %v1657 = vadd.f32 0.0, %v1656
        %1658 = vmatmul.f32.gmra.mxu0 %v1201
        %v1659 = vpop.f32.mrf.mxu0
        %v1660 = vadd.f32 0.0, %v1659
        %1661 = vmatmul.f32.gmra.mxu0 %v1204
        %v1662 = vpop.f32.mrf.mxu0
        %v1663 = vadd.f32 0.0, %v1662
        %1664 = vmatmul.f32.gmra.mxu0 %v1207
        %v1665 = vpop.f32.mrf.mxu0
        %v1666 = vadd.f32 0.0, %v1665
        %1667 = vmatmul.f32.gmra.mxu0 %v1210
        %v1668 = vpop.f32.mrf.mxu0
        %v1669 = vadd.f32 0.0, %v1668
        %1670 = vmatmul.f32.gmra.mxu0 %v1213
        %v1671 = vpop.f32.mrf.mxu0
        %v1672 = vadd.f32 0.0, %v1671
        %1673 = vdwg.mxu0
        %v1674 = vsub.f32 %v1437, %v1624
        %v1675 = vsub.f32 %v1440, %v1627
        %v1676 = vsub.f32 %v1443, %v1630
        %v1677 = vsub.f32 %v1446, %v1633
        %v1678 = vsub.f32 %v1449, %v1636
        %v1679 = vsub.f32 %v1452, %v1639
        %v1680 = vsub.f32 %v1455, %v1642
        %v1681 = vsub.f32 %v1458, %v1645
        %v1682 = vsub.f32 %v1461, %v1648
        %v1683 = vsub.f32 %v1464, %v1651
        %v1684 = vsub.f32 %v1467, %v1654
        %v1685 = vsub.f32 %v1470, %v1657
        %v1686 = vsub.f32 %v1473, %v1660
        %v1687 = vsub.f32 %v1476, %v1663
        %v1688 = vsub.f32 %v1479, %v1666
        %v1689 = vsub.f32 %v1482, %v1669
        %v1690 = vsub.f32 %v1485, %v1672
        %v1691 = vmul.f32 %v1674, 1.442695
        %v1692 = vpow.pop %v1691
        %v1693 = vmul.f32 %v1675, 1.442695
        %v1694 = vpow.pop %v1693
        %v1695 = vmul.f32 %v1676, 1.442695
        %v1696 = vpow.pop %v1695
        %v1697 = vmul.f32 %v1677, 1.442695
        %v1698 = vpow.pop %v1697
        %v1699 = vmul.f32 %v1678, 1.442695
        %v1700 = vpow.pop %v1699
        %v1701 = vmul.f32 %v1679, 1.442695
        %v1702 = vpow.pop %v1701
        %v1703 = vmul.f32 %v1680, 1.442695
        %v1704 = vpow.pop %v1703
        %v1705 = vmul.f32 %v1681, 1.442695
        %v1706 = vpow.pop %v1705
        %v1707 = vmul.f32 %v1682, 1.442695
        %v1708 = vpow.pop %v1707
        %v1709 = vmul.f32 %v1683, 1.442695
        %v1710 = vpow.pop %v1709
        %v1711 = vmul.f32 %v1684, 1.442695
        %v1712 = vpow.pop %v1711
        %v1713 = vmul.f32 %v1685, 1.442695
        %v1714 = vpow.pop %v1713
        %v1715 = vmul.f32 %v1686, 1.442695
        %v1716 = vpow.pop %v1715
        %v1717 = vmul.f32 %v1687, 1.442695
        %v1718 = vpow.pop %v1717
        %v1719 = vmul.f32 %v1688, 1.442695
        %v1720 = vpow.pop %v1719
        %v1721 = vmul.f32 %v1689, 1.442695
        %v1722 = vpow.pop %v1721
        %v1723 = vmul.f32 %v1690, 1.442695
        %v1724 = vpow.pop %v1723
        %v1726 = vsel %vm1163, %v1136, 0
        %1728 = vmatpush.msra.mxu0 %v1722
        %1729 = vmatpush.msra.mxu0 %v1720
        %1730 = vmatpush.msra.mxu0 %v1718
        %1731 = vmatpush.msra.mxu0 %v1716
        %1732 = vmatpush.msra.mxu0 %v1714
        %1733 = vmatpush.msra.mxu0 %v1712
        %1734 = vmatpush.msra.mxu0 %v1710
        %1735 = vmatpush.msra.mxu0 %v1708
        %1736 = vmatpush.msra.mxu0 %v1706
        %1737 = vmatpush.msra.mxu0 %v1704
        %1738 = vmatpush.msra.mxu0 %v1702
        %1739 = vmatpush.msra.mxu0 %v1700
        %1740 = vmatpush.msra.mxu0 %v1698
        %1741 = vmatpush.msra.mxu0 %v1696
        %1742 = vmatpush.msra.mxu0 %v1694
        %1743 = vmatpush.msra.mxu0 %v1692
        %1744 = vmatmul.f32.gmra.mxu0 %v1135
        %v1745 = vpop.f32.mrf.mxu0
        %v1746 = vadd.f32 0.0, %v1745
        %1747 = vdwg.mxu0
        %1748 = vmatpush.msra.mxu0 0.0
        %1749 = vmatpush.msra.mxu0 0.0
        %1750 = vmatpush.msra.mxu0 0.0
        %1751 = vmatpush.msra.mxu0 0.0
        %1752 = vmatpush.msra.mxu0 0.0
        %1753 = vmatpush.msra.mxu0 0.0
        %1754 = vmatpush.msra.mxu0 0.0
        %1755 = vmatpush.msra.mxu0 0.0
        %1756 = vmatpush.msra.mxu0 0.0
        %1757 = vmatpush.msra.mxu0 0.0
        %1758 = vmatpush.msra.mxu0 0.0
        %1759 = vmatpush.msra.mxu0 0.0
        %1760 = vmatpush.msra.mxu0 0.0
        %1761 = vmatpush.msra.mxu0 0.0
        %1762 = vmatpush.msra.mxu0 0.0
        %1763 = vmatpush.msra.mxu0 %v1724
        %1764 = vmatmul.f32.gmra.mxu0 %v1726
        %v1765 = vpop.f32.mrf.mxu0
        %v1766 = vadd.f32 %v1746, %v1765
        %1767 = vdwg.mxu0
        %v1768 = vrcp.pop %v1766
        %v1770 = vsel %vm1163, %v1692, 0
        %v1773 = vsel %vm1163, %v1694, 0
        %v1776 = vsel %vm1163, %v1696, 0
        %v1779 = vsel %vm1163, %v1698, 0
        %v1782 = vsel %vm1163, %v1700, 0
        %v1785 = vsel %vm1163, %v1702, 0
        %v1788 = vsel %vm1163, %v1704, 0
        %v1791 = vsel %vm1163, %v1706, 0
        %v1794 = vsel %vm1163, %v1708, 0
        %v1797 = vsel %vm1163, %v1710, 0
        %v1800 = vsel %vm1163, %v1712, 0
        %v1803 = vsel %vm1163, %v1714, 0
        %v1806 = vsel %vm1163, %v1716, 0
        %v1809 = vsel %vm1163, %v1718, 0
        %v1812 = vsel %vm1163, %v1720, 0
        %v1815 = vsel %vm1163, %v1722, 0
        %v1818 = vsel %vm1163, %v1724, 0
        %1820 = vmatpush.msra.mxu0 0.0
        %1821 = vmatpush.msra.mxu0 0.0
        %1822 = vmatpush.msra.mxu0 0.0
        %1823 = vmatpush.msra.mxu0 0.0
        %1824 = vmatpush.msra.mxu0 0.0
        %1825 = vmatpush.msra.mxu0 0.0
        %1826 = vmatpush.msra.mxu0 0.0
        %1827 = vmatpush.msra.mxu0 0.0
        %1828 = vmatpush.msra.mxu0 0.0
        %1829 = vmatpush.msra.mxu0 0.0
        %1830 = vmatpush.msra.mxu0 0.0
        %1831 = vmatpush.msra.mxu0 0.0
        %1832 = vmatpush.msra.mxu0 0.0
        %1833 = vmatpush.msra.mxu0 0.0
        %1834 = vmatpush.msra.mxu0 0.0
        %1835 = vmatpush.msra.mxu0 %v1162
        %1836 = vmatmul.f32.gmra.mxu0 %v1770
        %v1837 = vpop.f32.mrf.mxu0
        %v1838 = vadd.f32 0.0, %v1837
        %1839 = vmatmul.f32.gmra.mxu0 %v1773
        %v1840 = vpop.f32.mrf.mxu0
        %v1841 = vadd.f32 0.0, %v1840
        %1842 = vmatmul.f32.gmra.mxu0 %v1776
        %v1843 = vpop.f32.mrf.mxu0
        %v1844 = vadd.f32 0.0, %v1843
        %1845 = vmatmul.f32.gmra.mxu0 %v1779
        %v1846 = vpop.f32.mrf.mxu0
        %v1847 = vadd.f32 0.0, %v1846
        %1848 = vmatmul.f32.gmra.mxu0 %v1782
        %v1849 = vpop.f32.mrf.mxu0
        %v1850 = vadd.f32 0.0, %v1849
        %1851 = vmatmul.f32.gmra.mxu0 %v1785
        %v1852 = vpop.f32.mrf.mxu0
        %v1853 = vadd.f32 0.0, %v1852
        %1854 = vmatmul.f32.gmra.mxu0 %v1788
        %v1855 = vpop.f32.mrf.mxu0
        %v1856 = vadd.f32 0.0, %v1855
        %1857 = vmatmul.f32.gmra.mxu0 %v1791
        %v1858 = vpop.f32.mrf.mxu0
        %v1859 = vadd.f32 0.0, %v1858
        %1860 = vmatmul.f32.gmra.mxu0 %v1794
        %v1861 = vpop.f32.mrf.mxu0
        %v1862 = vadd.f32 0.0, %v1861
        %1863 = vmatmul.f32.gmra.mxu0 %v1797
        %v1864 = vpop.f32.mrf.mxu0
        %v1865 = vadd.f32 0.0, %v1864
        %1866 = vmatmul.f32.gmra.mxu0 %v1800
        %v1867 = vpop.f32.mrf.mxu0
        %v1868 = vadd.f32 0.0, %v1867
        %1869 = vmatmul.f32.gmra.mxu0 %v1803
        %v1870 = vpop.f32.mrf.mxu0
        %v1871 = vadd.f32 0.0, %v1870
        %1872 = vmatmul.f32.gmra.mxu0 %v1806
        %v1873 = vpop.f32.mrf.mxu0
        %v1874 = vadd.f32 0.0, %v1873
        %1875 = vmatmul.f32.gmra.mxu0 %v1809
        %v1876 = vpop.f32.mrf.mxu0
        %v1877 = vadd.f32 0.0, %v1876
        %1878 = vmatmul.f32.gmra.mxu0 %v1812
        %v1879 = vpop.f32.mrf.mxu0
        %v1880 = vadd.f32 0.0, %v1879
        %1881 = vmatmul.f32.gmra.mxu0 %v1815
        %v1882 = vpop.f32.mrf.mxu0
        %v1883 = vadd.f32 0.0, %v1882
        %1884 = vmatmul.f32.gmra.mxu0 %v1818
        %v1885 = vpop.f32.mrf.mxu0
        %v1886 = vadd.f32 0.0, %v1885
        %1887 = vdwg.mxu0
        %v1888 = vmul.f32 %v1838, %v1091
        %v1889 = vmul.f32 %v1841, %v1093
        %v1890 = vmul.f32 %v1844, %v1096
        %v1891 = vmul.f32 %v1847, %v1098
        %v1892 = vmul.f32 %v1850, %v1101
        %v1893 = vmul.f32 %v1853, %v1103
        %v1894 = vmul.f32 %v1856, %v1106
        %v1895 = vmul.f32 %v1859, %v1108
        %v1896 = vmul.f32 %v1862, %v1111
        %v1897 = vmul.f32 %v1865, %v1113
        %v1898 = vmul.f32 %v1868, %v1116
        %v1899 = vmul.f32 %v1871, %v1118
        %v1900 = vmul.f32 %v1874, %v1121
        %v1901 = vmul.f32 %v1877, %v1123
        %v1902 = vmul.f32 %v1880, %v1126
        %v1903 = vmul.f32 %v1883, %v1128
        %v1904 = vmul.f32 %v1886, %v1131
        %1905 = vmatpush.msra.mxu0 %v1903
        %1906 = vmatpush.msra.mxu0 %v1902
        %1907 = vmatpush.msra.mxu0 %v1901
        %1908 = vmatpush.msra.mxu0 %v1900
        %1909 = vmatpush.msra.mxu0 %v1899
        %1910 = vmatpush.msra.mxu0 %v1898
        %1911 = vmatpush.msra.mxu0 %v1897
        %1912 = vmatpush.msra.mxu0 %v1896
        %1913 = vmatpush.msra.mxu0 %v1895
        %1914 = vmatpush.msra.mxu0 %v1894
        %1915 = vmatpush.msra.mxu0 %v1893
        %1916 = vmatpush.msra.mxu0 %v1892
        %1917 = vmatpush.msra.mxu0 %v1891
        %1918 = vmatpush.msra.mxu0 %v1890
        %1919 = vmatpush.msra.mxu0 %v1889
        %1920 = vmatpush.msra.mxu0 %v1888
        %1921 = vmatmul.f32.gmra.mxu0 %v1135
        %v1922 = vpop.f32.mrf.mxu0
        %v1923 = vadd.f32 0.0, %v1922
        %1924 = vdwg.mxu0
        %1925 = vmatpush.msra.mxu0 0.0
        %1926 = vmatpush.msra.mxu0 0.0
        %1927 = vmatpush.msra.mxu0 0.0
        %1928 = vmatpush.msra.mxu0 0.0
        %1929 = vmatpush.msra.mxu0 0.0
        %1930 = vmatpush.msra.mxu0 0.0
        %1931 = vmatpush.msra.mxu0 0.0
        %1932 = vmatpush.msra.mxu0 0.0
        %1933 = vmatpush.msra.mxu0 0.0
        %1934 = vmatpush.msra.mxu0 0.0
        %1935 = vmatpush.msra.mxu0 0.0
        %1936 = vmatpush.msra.mxu0 0.0
        %1937 = vmatpush.msra.mxu0 0.0
        %1938 = vmatpush.msra.mxu0 0.0
        %1939 = vmatpush.msra.mxu0 0.0
        %1940 = vmatpush.msra.mxu0 %v1904
        %1941 = vmatmul.f32.gmra.mxu0 %v1726
        %v1942 = vpop.f32.mrf.mxu0
        %v1943 = vadd.f32 %v1923, %v1942
        %1944 = vdwg.mxu0
        %v1946 = vsel %vm1163, %v1768, 0
        %1948 = vmatpush.msra.mxu0 0.0
        %1949 = vmatpush.msra.mxu0 0.0
        %1950 = vmatpush.msra.mxu0 0.0
        %1951 = vmatpush.msra.mxu0 0.0
        %1952 = vmatpush.msra.mxu0 0.0
        %1953 = vmatpush.msra.mxu0 0.0
        %1954 = vmatpush.msra.mxu0 0.0
        %1955 = vmatpush.msra.mxu0 0.0
        %1956 = vmatpush.msra.mxu0 0.0
        %1957 = vmatpush.msra.mxu0 0.0
        %1958 = vmatpush.msra.mxu0 0.0
        %1959 = vmatpush.msra.mxu0 0.0
        %1960 = vmatpush.msra.mxu0 0.0
        %1961 = vmatpush.msra.mxu0 0.0
        %1962 = vmatpush.msra.mxu0 0.0
        %1963 = vmatpush.msra.mxu0 %v1162
        %1964 = vmatmul.f32.gmra.mxu0 %v1946
        %v1965 = vpop.f32.mrf.mxu0
        %v1966 = vadd.f32 0.0, %v1965
        %1967 = vdwg.mxu0
        %v1968 = vmul.f32 %v1943, %v1966
        %v1969 = vpack.c.bf16 %v1968, %v1968
        %v1970 = vld [vmem:[%s9] sm:$0xf]
        %v1971 = vld [vmem:[%s9 + $0x4] sm:$0xf]
        %v1972 = vld [vmem:[%s9 + $0x8] sm:$0xf]
        %v1973 = vld [vmem:[%s9 + $0xc] sm:$0xf]
        %v1974 = vld [vmem:[%s9 + $0x10] sm:$0xf]
        %v1975 = vld [vmem:[%s9 + $0x14] sm:$0xf]
        %v1976 = vld [vmem:[%s9 + $0x18] sm:$0xf]
        %v1977 = vld [vmem:[%s9 + $0x1c] sm:$0xf]
        %v1978 = vld [vmem:[%s10] sm:$0x1]
        %v1980 = vperm.slane %v1978, 0
        %v1990 = vunpack.c.l.b16 %v1970
        %v1991 = vunpack.c.l.b16 %v1971
        %v1992 = vunpack.c.l.b16 %v1972
        %v1993 = vunpack.c.l.b16 %v1973
        %v1994 = vunpack.c.l.b16 %v1974
        %v1995 = vunpack.c.l.b16 %v1975
        %v1996 = vunpack.c.l.b16 %v1976
        %v1997 = vunpack.c.l.b16 %v1977
        %v1998 = vpack.c.b16 %v1991, %v1990
        %v1999 = vpack.c.b16 %v1993, %v1992
        %v2000 = vpack.c.b16 %v1995, %v1994
        %v2001 = vpack.c.b16 %v1997, %v1996
        %v2007 = vsel %vm711, %v1969, 0
        %2009 = vmatpush.bf16.msra.mxu0 0
        %2010 = vmatpush.bf16.msra.mxu0 0
        %2011 = vmatpush.bf16.msra.mxu0 0
        %2012 = vmatpush.bf16.msra.mxu0 0
        %2013 = vmatpush.bf16.msra.mxu0 %v2001
        %2014 = vmatpush.bf16.msra.mxu0 %v2000
        %2015 = vmatpush.bf16.msra.mxu0 %v1999
        %2016 = vmatpush.bf16.msra.mxu0 %v1998
        %2017 = vmatmul.bf16.gmra.mxu0 %v2007
        %v2018 = vpop.f32.mrf.mxu0
        %v2019 = vadd.f32 %v1980, %v2018
        %v2020 = vpop.f32.mrf.mxu0
        %2021 = vdwg.mxu0
        %2022 = vst [vmem:[%s382] sm:$0xff] %v2019
        %s2023 = sand.u32 %s269, 1
        %s2024 = scalar_lea.sflag [#allocation3], %s2023
        %s2025 = sand.u32 %s269, 1
        %s2026 = smul.addr %s2025, 8
        %s2027 = scalar_lea.vmem [#allocation2], %s2026
        // Predicated region
        $region65: #{tpu_custom_call.1} parent=63 // pred_check
          %p2028 = pneg %p279
        $region66: #{tpu_custom_call.1} parent=63 // pred_check_branch
          %2030 = sbr.rel (%p2028) target = $region68
        $region67: #{tpu_custom_call.1} parent=63 // pred_region
          %2032 = vsyncadd %s2024, 0
          %s2033 = smul.addr %s25, 8
          %s2034 = scalar_lea.hbm %s11, %s2033
          %s2036 = sshll.u32 %s2027, 4
          %s2037 = int_to_ptr.vmem [resolvable:$true] %s2036
          %s2038 = sshll.u32 %s2034, 4
          %s2039 = int_to_ptr.hbm [resolvable:$true] %s2038
          %2041 = dma.vmem_to_hbm [thread:$0]  %s2037, 128, %s2039, %s2024
        $region68: #{tpu_custom_call.1} parent=63 // pred_fallthru
          _
      $region64: #{tpu_custom_call.1} parent=5 // pred_fallthru
        _
      %p2042 = scmp.le.s32.totalorder 2, %s20
      // Predicated region
      $region69: #{tpu_custom_call.1} parent=5 // pred_check
        %p2043 = pneg %p2042
      $region70: #{tpu_custom_call.1} parent=5 // pred_check_branch
        %2045 = sbr.rel (%p2043) target = $region72
      $region71: #{tpu_custom_call.1} parent=5 // pred_region
        %s2046 = ssub.s32 %s20, 2
        // Predicated region
        $region73: #{tpu_custom_call.1} parent=71 // pred_check
          %p2047 = pneg %p285
        $region74: #{tpu_custom_call.1} parent=71 // pred_check_branch
          %2049 = sbr.rel (%p2047) target = $region76
        $region75: #{tpu_custom_call.1} parent=71 // pred_region
          %s2050 = sand.u32 %s270, 1
          %s2051 = scalar_lea.sflag [#allocation3], %s2050
          %s2052 = sand.u32 %s270, 1
          %s2053 = smul.addr %s2052, 8
          %s2054 = scalar_lea.vmem [#allocation2], %s2053
          %2056 = dma.done %s2051, 128
        $region76: #{tpu_custom_call.1} parent=71 // pred_fallthru
          _
      $region72: #{tpu_custom_call.1} parent=5 // pred_fallthru
        _
    $region6: #{tpu_custom_call.1} parent=1 // loop_footer
      %s24 = sadd.s32 1, %s20
    $region7: #{tpu_custom_call.1} parent=1 // loop_footer_branch
      %19 = sbr.rel target = $region3
    $region8: #{tpu_custom_call.1} parent=1 // loop_exit
      _
    %2057 = vsyncpa [#allocation3], 1
    %s2058 = scalar_lea.sflag [#allocation3], 1
    %2059 = vsyncpa %s2058, 1

</llo_original>
